<compile_context>
chip_gen: v6e
topology: v6e:2x2x1
jax: 0.10.0
libtpu: 0.0.40
codegen_flags: <defaults>
</compile_context>

<pallas_src>
import functools

import jax
import jax.numpy as jnp
from jax.experimental import pallas as pl
from jax.experimental.pallas import tpu as pltpu

NEG_INF = -1e30
HEADS = 8
C1 = 8        # gat1 out_channels per head
TT = 8        # timesteps processed per grid step (TT*N = 128 rows)


def _leaky_relu(x, slope=0.2):
    return jnp.where(x >= 0, x, slope * x)


def _masked_softmax(logits_plus_bias):
    # bias is 0 on allowed edges and -1e30 elsewhere; masked entries underflow
    # to exactly 0 after exp, so no extra select is needed.
    m = jnp.max(logits_plus_bias, axis=-1, keepdims=True)
    p = jnp.exp(logits_plus_bias - m)
    return p / jnp.sum(p, axis=-1, keepdims=True)


def gat_kernel(x_ref, bias_ref, w1_ref, a1_ref, b1_ref,
               w2_ref, a2_ref, b2_ref, out_ref, y_scr, *, heads, c1):
    xr = x_ref[...]                 # [M, F]   (M = TT*N rows = TT timesteps)
    mask_bias = bias_ref[...]       # [M, M]   block-diag adjacency bias

    # ---------------- GAT layer 1: fused multi-head transform ----------------
    hh = jnp.dot(xr.astype(jnp.bfloat16), w1_ref[...].astype(jnp.bfloat16),
                 preferred_element_type=jnp.float32)         # [M, heads*c1]
    hh_bf = hh.astype(jnp.bfloat16)

    # one matmul gives e_src (cols 0..heads-1) and e_dst (cols heads..2h-1)
    ee = jnp.dot(hh_bf, a1_ref[...].astype(jnp.bfloat16),
                 preferred_element_type=jnp.float32)         # [M, 2*heads]
    e_src_t = jnp.transpose(ee[:, :heads])                   # [heads, M]
    e_dst = ee[:, heads:]                                    # [M, heads]

    for h in range(heads):
        # logits[i, j] = leaky_relu(e_dst[i] + e_src[j]) masked to edges j -> i
        logits = _leaky_relu(e_dst[:, h:h + 1] + e_src_t[h:h + 1, :]) + mask_bias
        alpha = _masked_softmax(logits)                      # [M, M]
        y_scr[:, h * c1:(h + 1) * c1] = jnp.dot(
            alpha.astype(jnp.bfloat16), hh_bf[:, h * c1:(h + 1) * c1],
            preferred_element_type=jnp.float32)

    y = y_scr[...] + b1_ref[...]
    y = jnp.where(y > 0, y, jnp.exp(y) - 1.0)                # ELU(alpha=1.0)

    # ---------------- GAT layer 2: single head ----------------
    h2 = jnp.dot(y.astype(jnp.bfloat16), w2_ref[...].astype(jnp.bfloat16),
                 preferred_element_type=jnp.float32)         # [M, F]
    h2_bf = h2.astype(jnp.bfloat16)
    ee2 = jnp.dot(h2_bf, a2_ref[...].astype(jnp.bfloat16),
                  preferred_element_type=jnp.float32)        # [M, 2]
    logits2 = _leaky_relu(ee2[:, 1:2] + jnp.transpose(ee2[:, 0:1])) + mask_bias
    alpha2 = _masked_softmax(logits2)
    z = jnp.dot(alpha2.astype(jnp.bfloat16), h2_bf,
                preferred_element_type=jnp.float32) + b2_ref[...]   # [M, F]

    # ---------------- log_softmax over feature axis ----------------
    zmax = jnp.max(z, axis=-1, keepdims=True)
    lse = jnp.log(jnp.sum(jnp.exp(z - zmax), axis=-1, keepdims=True)) + zmax
    # lane-dense store: write the [F, M] transpose instead of a 4-lane slab.
    out_ref[...] = jnp.transpose(z - lse).astype(out_ref.dtype)


def gat_network_forward(x, adj, params, *, tt=TT):
    T, N, F = x.shape
    assert T % tt == 0, "sequence length must be a multiple of the time block"
    M = tt * N

    # ---- host-side glue (plain JAX, done once per call) ----
    # Fused per-head attention projections: [heads*C1, 2*heads] block matrix.
    a1 = jnp.zeros((HEADS * C1, 2 * HEADS), jnp.float32)
    for h in range(HEADS):
        a1 = a1.at[h * C1:(h + 1) * C1, h].set(params["asrc1"][h])
        a1 = a1.at[h * C1:(h + 1) * C1, HEADS + h].set(params["adst1"][h])
    a2 = jnp.stack([params["asrc2"][0], params["adst2"][0]], axis=1)   # [F, 2]

    # Block-diagonal additive mask: adjacency inside a timestep, -inf across.
    blk = jnp.where(adj > 0, 0.0, NEG_INF).astype(jnp.float32)         # [N, N]
    bias = jnp.full((M, M), NEG_INF, jnp.float32)
    for t in range(tt):
        bias = bias.at[t * N:(t + 1) * N, t * N:(t + 1) * N].set(blk)

    x_flat = x.reshape(T * N, F)
    kernel = functools.partial(gat_kernel, heads=HEADS, c1=C1)
    const = lambda t: (0, 0)

    out_flat = pl.pallas_call(
        kernel,
        out_shape=jax.ShapeDtypeStruct((F, T * N), jnp.float32),
        grid=(T // tt,),
        in_specs=[
            pl.BlockSpec((M, F), lambda t: (t, 0)),           # x (tt timesteps)
            pl.BlockSpec((M, M), const),                      # additive mask
            pl.BlockSpec((F, HEADS * C1), const),             # W1
            pl.BlockSpec((HEADS * C1, 2 * HEADS), const),     # fused att1
            pl.BlockSpec((1, HEADS * C1), const),             # bias1
            pl.BlockSpec((HEADS * C1, F), const),             # W2
            pl.BlockSpec((F, 2), const),                      # fused att2
            pl.BlockSpec((1, F), const),                      # bias2
        ],
        out_specs=pl.BlockSpec((F, M), lambda t: (0, t)),
        scratch_shapes=[pltpu.VMEM((M, HEADS * C1), jnp.float32)],
        compiler_params=pltpu.CompilerParams(
            dimension_semantics=("parallel",)),
    )(x_flat, bias, params["w1"], a1, params["b1"],
      params["w2"], a2, params["b2"])

    return jnp.transpose(out_flat).reshape(T, N, F)


def make_params(n_features, key):
    ks = jax.random.split(key, 6)
    glorot = lambda k, shape: (jax.random.normal(k, shape, jnp.float32)
                               * jnp.sqrt(2.0 / (shape[0] + shape[1])))
    return {
        "w1": glorot(ks[0], (n_features, HEADS * C1)),
        "asrc1": glorot(ks[1], (HEADS, C1)),
        "adst1": glorot(ks[2], (HEADS, C1)),
        "b1": jnp.zeros((1, HEADS * C1), jnp.float32),
        "w2": glorot(ks[3], (HEADS * C1, n_features)),
        "asrc2": glorot(ks[4], (1, n_features)),
        "adst2": glorot(ks[5], (1, n_features)),
        "b2": jnp.zeros((1, n_features), jnp.float32),
    }


def edge_index_to_adj(edge_index, n_node):
    # adj[dst, src] = 1 for every edge src -> dst, plus self-loops
    # (PyG GATConv add_self_loops=True default). Parallel edges collapse.
    src, dst = edge_index
    adj = jnp.zeros((n_node, n_node), jnp.float32)
    adj = adj.at[dst, src].set(1.0)
    adj = adj.at[jnp.arange(n_node), jnp.arange(n_node)].set(1.0)
    return adj


if __name__ == "__main__":
    T, N, F = 16, 16, 4   # sequence_length, n_node, n_features

    key = jax.random.PRNGKey(0)
    kx, kp = jax.random.split(key)
    x = jax.random.normal(kx, (T, N, F), jnp.float32)

    # deterministic bidirectional ring graph
    src = jnp.concatenate([jnp.arange(N), (jnp.arange(N) + 1) % N])
    dst = jnp.concatenate([(jnp.arange(N) + 1) % N, jnp.arange(N)])
    edge_index = jnp.stack([src, dst], axis=0)
    adj = edge_index_to_adj(edge_index, N)

    params = make_params(F, kp)

    out = gat_network_forward(x, adj, params)
    jax.block_until_ready(out)
    assert out.shape == (T, N, F)
    assert bool(jnp.all(jnp.isfinite(out)))
    print("KERNEL_OK")
</pallas_src>

<mosaic_0001>
module attributes {stable_mosaic.version = 11 : i64} {
  func.func @gat_kernel(%arg0: i32, %arg1: memref<128x4xf32, #tpu.memory_space<vmem>>, %arg2: memref<128x128xf32, #tpu.memory_space<vmem>>, %arg3: memref<4x64xf32, #tpu.memory_space<vmem>>, %arg4: memref<64x16xf32, #tpu.memory_space<vmem>>, %arg5: memref<1x64xf32, #tpu.memory_space<vmem>>, %arg6: memref<64x4xf32, #tpu.memory_space<vmem>>, %arg7: memref<4x2xf32, #tpu.memory_space<vmem>>, %arg8: memref<1x4xf32, #tpu.memory_space<vmem>>, %arg9: memref<4x128xf32, #tpu.memory_space<vmem>>, %arg10: memref<128x64xf32, #tpu.memory_space<vmem>>) attributes {dimension_semantics = [#tpu.dimension_semantics<parallel>], iteration_bounds = array<i64: 2>, scalar_prefetch = 0 : i64, scratch_operands = 1 : i64, tpu.core_type = #tpu.core_type<tc>, window_params = [{transform_indices = @transform_0, window_bounds = array<i64: 128, 4>}, {pipeline_mode = #tpu.pipeline_mode<synchronous>, transform_indices = @transform_1, window_bounds = array<i64: 128, 128>}, {pipeline_mode = #tpu.pipeline_mode<synchronous>, transform_indices = @transform_2, window_bounds = array<i64: 4, 64>}, {pipeline_mode = #tpu.pipeline_mode<synchronous>, transform_indices = @transform_3, window_bounds = array<i64: 64, 16>}, {pipeline_mode = #tpu.pipeline_mode<synchronous>, transform_indices = @transform_4, window_bounds = array<i64: 1, 64>}, {pipeline_mode = #tpu.pipeline_mode<synchronous>, transform_indices = @transform_5, window_bounds = array<i64: 64, 4>}, {pipeline_mode = #tpu.pipeline_mode<synchronous>, transform_indices = @transform_6, window_bounds = array<i64: 4, 2>}, {pipeline_mode = #tpu.pipeline_mode<synchronous>, transform_indices = @transform_7, window_bounds = array<i64: 1, 4>}, {transform_indices = @transform_8, window_bounds = array<i64: 4, 128>}]} {
    %c0 = arith.constant 0 : index
    %c0_0 = arith.constant 0 : index
    %0 = vector.load %arg1[%c0, %c0_0] : memref<128x4xf32, #tpu.memory_space<vmem>>, vector<128x4xf32>
    %c0_1 = arith.constant 0 : index
    %c0_2 = arith.constant 0 : index
    %1 = vector.load %arg2[%c0_1, %c0_2] : memref<128x128xf32, #tpu.memory_space<vmem>>, vector<128x128xf32>
    %2 = arith.truncf %0 : vector<128x4xf32> to vector<128x4xbf16>
    %c0_3 = arith.constant 0 : index
    %c0_4 = arith.constant 0 : index
    %3 = vector.load %arg3[%c0_3, %c0_4] : memref<4x64xf32, #tpu.memory_space<vmem>>, vector<4x64xf32>
    %4 = arith.truncf %3 : vector<4x64xf32> to vector<4x64xbf16>
    %cst = arith.constant dense<0.000000e+00> : vector<128x64xf32>
    %5 = tpu.matmul %2, %4, %cst {dimension_numbers = #tpu.dot_dimension_numbers<[1], [0], [0], [1], [0, 0, 1, 1], [], []>} : vector<128x4xbf16>, vector<4x64xbf16>, vector<128x64xf32> -> vector<128x64xf32>
    %6 = arith.truncf %5 : vector<128x64xf32> to vector<128x64xbf16>
    %c0_5 = arith.constant 0 : index
    %c0_6 = arith.constant 0 : index
    %7 = vector.load %arg4[%c0_5, %c0_6] : memref<64x16xf32, #tpu.memory_space<vmem>>, vector<64x16xf32>
    %8 = arith.truncf %7 : vector<64x16xf32> to vector<64x16xbf16>
    %cst_7 = arith.constant dense<0.000000e+00> : vector<128x16xf32>
    %9 = tpu.matmul %6, %8, %cst_7 {dimension_numbers = #tpu.dot_dimension_numbers<[1], [0], [0], [1], [0, 0, 1, 1], [], []>} : vector<128x64xbf16>, vector<64x16xbf16>, vector<128x16xf32> -> vector<128x16xf32>
    %10 = vector.extract_strided_slice %9 {offsets = [0, 0], sizes = [128, 8], strides = [1, 1]} : vector<128x16xf32> to vector<128x8xf32>
    %11 = tpu.transpose %10, [1, 0] : vector<128x8xf32> -> vector<8x128xf32>
    %12 = vector.extract_strided_slice %9 {offsets = [0, 8], sizes = [128, 8], strides = [1, 1]} : vector<128x16xf32> to vector<128x8xf32>
    %13 = vector.extract_strided_slice %12 {offsets = [0, 0], sizes = [128, 1], strides = [1, 1]} : vector<128x8xf32> to vector<128x1xf32>
    %14 = vector.extract_strided_slice %11 {offsets = [0, 0], sizes = [1, 128], strides = [1, 1]} : vector<8x128xf32> to vector<1x128xf32>
    %15 = vector.broadcast %13 : vector<128x1xf32> to vector<128x128xf32>
    %16 = vector.broadcast %14 : vector<1x128xf32> to vector<128x128xf32>
    %17 = arith.addf %15, %16 : vector<128x128xf32>
    %cst_8 = arith.constant 0.000000e+00 : f32
    %18 = vector.broadcast %cst_8 : f32 to vector<128x128xf32>
    %19 = arith.cmpf oge, %17, %18 : vector<128x128xf32>
    %cst_9 = arith.constant 2.000000e-01 : f32
    %20 = vector.broadcast %cst_9 : f32 to vector<128x128xf32>
    %21 = arith.mulf %20, %17 : vector<128x128xf32>
    %22 = arith.select %19, %17, %21 : vector<128x128xi1>, vector<128x128xf32>
    %23 = arith.addf %22, %1 : vector<128x128xf32>
    %cst_10 = arith.constant dense<0xFF800000> : vector<128xf32>
    %24 = vector.multi_reduction <maximumf>, %23, %cst_10 [1] : vector<128x128xf32> to vector<128xf32>
    %25 = vector.shape_cast %24 : vector<128xf32> to vector<128x1xf32>
    %26 = vector.broadcast %25 : vector<128x1xf32> to vector<128x128xf32>
    %27 = arith.subf %23, %26 : vector<128x128xf32>
    %28 = math.exp %27 : vector<128x128xf32>
    %cst_11 = arith.constant dense<0.000000e+00> : vector<128xf32>
    %29 = vector.multi_reduction <add>, %28, %cst_11 [1] : vector<128x128xf32> to vector<128xf32>
    %30 = vector.shape_cast %29 : vector<128xf32> to vector<128x1xf32>
    %31 = vector.broadcast %30 : vector<128x1xf32> to vector<128x128xf32>
    %32 = arith.divf %28, %31 : vector<128x128xf32>
    %33 = arith.truncf %32 : vector<128x128xf32> to vector<128x128xbf16>
    %34 = vector.extract_strided_slice %6 {offsets = [0, 0], sizes = [128, 8], strides = [1, 1]} : vector<128x64xbf16> to vector<128x8xbf16>
    %cst_12 = arith.constant dense<0.000000e+00> : vector<128x8xf32>
    %35 = tpu.matmul %33, %34, %cst_12 {dimension_numbers = #tpu.dot_dimension_numbers<[1], [0], [0], [1], [0, 0, 1, 1], [], []>} : vector<128x128xbf16>, vector<128x8xbf16>, vector<128x8xf32> -> vector<128x8xf32>
    %c0_13 = arith.constant 0 : index
    %c0_14 = arith.constant 0 : index
    %36 = vector.load %arg10[%c0_13, %c0_14] : memref<128x64xf32, #tpu.memory_space<vmem>>, vector<128x8xf32>
    tpu.vector_store %arg10[%c0_13, %c0_14], %35 {strides = array<i32>} : memref<128x64xf32, #tpu.memory_space<vmem>>, vector<128x8xf32>,
    %37 = vector.extract_strided_slice %12 {offsets = [0, 1], sizes = [128, 1], strides = [1, 1]} : vector<128x8xf32> to vector<128x1xf32>
    %38 = vector.extract_strided_slice %11 {offsets = [1, 0], sizes = [1, 128], strides = [1, 1]} : vector<8x128xf32> to vector<1x128xf32>
    %39 = vector.broadcast %37 : vector<128x1xf32> to vector<128x128xf32>
    %40 = vector.broadcast %38 : vector<1x128xf32> to vector<128x128xf32>
    %41 = arith.addf %39, %40 : vector<128x128xf32>
    %cst_15 = arith.constant 0.000000e+00 : f32
    %42 = vector.broadcast %cst_15 : f32 to vector<128x128xf32>
    %43 = arith.cmpf oge, %41, %42 : vector<128x128xf32>
    %cst_16 = arith.constant 2.000000e-01 : f32
    %44 = vector.broadcast %cst_16 : f32 to vector<128x128xf32>
    %45 = arith.mulf %44, %41 : vector<128x128xf32>
    %46 = arith.select %43, %41, %45 : vector<128x128xi1>, vector<128x128xf32>
    %47 = arith.addf %46, %1 : vector<128x128xf32>
    %cst_17 = arith.constant dense<0xFF800000> : vector<128xf32>
    %48 = vector.multi_reduction <maximumf>, %47, %cst_17 [1] : vector<128x128xf32> to vector<128xf32>
    %49 = vector.shape_cast %48 : vector<128xf32> to vector<128x1xf32>
    %50 = vector.broadcast %49 : vector<128x1xf32> to vector<128x128xf32>
    %51 = arith.subf %47, %50 : vector<128x128xf32>
    %52 = math.exp %51 : vector<128x128xf32>
    %cst_18 = arith.constant dense<0.000000e+00> : vector<128xf32>
    %53 = vector.multi_reduction <add>, %52, %cst_18 [1] : vector<128x128xf32> to vector<128xf32>
    %54 = vector.shape_cast %53 : vector<128xf32> to vector<128x1xf32>
    %55 = vector.broadcast %54 : vector<128x1xf32> to vector<128x128xf32>
    %56 = arith.divf %52, %55 : vector<128x128xf32>
    %57 = arith.truncf %56 : vector<128x128xf32> to vector<128x128xbf16>
    %58 = vector.extract_strided_slice %6 {offsets = [0, 8], sizes = [128, 8], strides = [1, 1]} : vector<128x64xbf16> to vector<128x8xbf16>
    %cst_19 = arith.constant dense<0.000000e+00> : vector<128x8xf32>
    %59 = tpu.matmul %57, %58, %cst_19 {dimension_numbers = #tpu.dot_dimension_numbers<[1], [0], [0], [1], [0, 0, 1, 1], [], []>} : vector<128x128xbf16>, vector<128x8xbf16>, vector<128x8xf32> -> vector<128x8xf32>
    %c0_20 = arith.constant 0 : index
    %c8 = arith.constant 8 : index
    %60 = vector.load %arg10[%c0_20, %c8] : memref<128x64xf32, #tpu.memory_space<vmem>>, vector<128x8xf32>
    tpu.vector_store %arg10[%c0_20, %c8], %59 {strides = array<i32>} : memref<128x64xf32, #tpu.memory_space<vmem>>, vector<128x8xf32>,
    %61 = vector.extract_strided_slice %12 {offsets = [0, 2], sizes = [128, 1], strides = [1, 1]} : vector<128x8xf32> to vector<128x1xf32>
    %62 = vector.extract_strided_slice %11 {offsets = [2, 0], sizes = [1, 128], strides = [1, 1]} : vector<8x128xf32> to vector<1x128xf32>
    %63 = vector.broadcast %61 : vector<128x1xf32> to vector<128x128xf32>
    %64 = vector.broadcast %62 : vector<1x128xf32> to vector<128x128xf32>
    %65 = arith.addf %63, %64 : vector<128x128xf32>
    %cst_21 = arith.constant 0.000000e+00 : f32
    %66 = vector.broadcast %cst_21 : f32 to vector<128x128xf32>
    %67 = arith.cmpf oge, %65, %66 : vector<128x128xf32>
    %cst_22 = arith.constant 2.000000e-01 : f32
    %68 = vector.broadcast %cst_22 : f32 to vector<128x128xf32>
    %69 = arith.mulf %68, %65 : vector<128x128xf32>
    %70 = arith.select %67, %65, %69 : vector<128x128xi1>, vector<128x128xf32>
    %71 = arith.addf %70, %1 : vector<128x128xf32>
    %cst_23 = arith.constant dense<0xFF800000> : vector<128xf32>
    %72 = vector.multi_reduction <maximumf>, %71, %cst_23 [1] : vector<128x128xf32> to vector<128xf32>
    %73 = vector.shape_cast %72 : vector<128xf32> to vector<128x1xf32>
    %74 = vector.broadcast %73 : vector<128x1xf32> to vector<128x128xf32>
    %75 = arith.subf %71, %74 : vector<128x128xf32>
    %76 = math.exp %75 : vector<128x128xf32>
    %cst_24 = arith.constant dense<0.000000e+00> : vector<128xf32>
    %77 = vector.multi_reduction <add>, %76, %cst_24 [1] : vector<128x128xf32> to vector<128xf32>
    %78 = vector.shape_cast %77 : vector<128xf32> to vector<128x1xf32>
    %79 = vector.broadcast %78 : vector<128x1xf32> to vector<128x128xf32>
    %80 = arith.divf %76, %79 : vector<128x128xf32>
    %81 = arith.truncf %80 : vector<128x128xf32> to vector<128x128xbf16>
    %82 = vector.extract_strided_slice %6 {offsets = [0, 16], sizes = [128, 8], strides = [1, 1]} : vector<128x64xbf16> to vector<128x8xbf16>
    %cst_25 = arith.constant dense<0.000000e+00> : vector<128x8xf32>
    %83 = tpu.matmul %81, %82, %cst_25 {dimension_numbers = #tpu.dot_dimension_numbers<[1], [0], [0], [1], [0, 0, 1, 1], [], []>} : vector<128x128xbf16>, vector<128x8xbf16>, vector<128x8xf32> -> vector<128x8xf32>
    %c0_26 = arith.constant 0 : index
    %c16 = arith.constant 16 : index
    %84 = vector.load %arg10[%c0_26, %c16] : memref<128x64xf32, #tpu.memory_space<vmem>>, vector<128x8xf32>
    tpu.vector_store %arg10[%c0_26, %c16], %83 {strides = array<i32>} : memref<128x64xf32, #tpu.memory_space<vmem>>, vector<128x8xf32>,
    %85 = vector.extract_strided_slice %12 {offsets = [0, 3], sizes = [128, 1], strides = [1, 1]} : vector<128x8xf32> to vector<128x1xf32>
    %86 = vector.extract_strided_slice %11 {offsets = [3, 0], sizes = [1, 128], strides = [1, 1]} : vector<8x128xf32> to vector<1x128xf32>
    %87 = vector.broadcast %85 : vector<128x1xf32> to vector<128x128xf32>
    %88 = vector.broadcast %86 : vector<1x128xf32> to vector<128x128xf32>
    %89 = arith.addf %87, %88 : vector<128x128xf32>
    %cst_27 = arith.constant 0.000000e+00 : f32
    %90 = vector.broadcast %cst_27 : f32 to vector<128x128xf32>
    %91 = arith.cmpf oge, %89, %90 : vector<128x128xf32>
    %cst_28 = arith.constant 2.000000e-01 : f32
    %92 = vector.broadcast %cst_28 : f32 to vector<128x128xf32>
    %93 = arith.mulf %92, %89 : vector<128x128xf32>
    %94 = arith.select %91, %89, %93 : vector<128x128xi1>, vector<128x128xf32>
    %95 = arith.addf %94, %1 : vector<128x128xf32>
    %cst_29 = arith.constant dense<0xFF800000> : vector<128xf32>
    %96 = vector.multi_reduction <maximumf>, %95, %cst_29 [1] : vector<128x128xf32> to vector<128xf32>
    %97 = vector.shape_cast %96 : vector<128xf32> to vector<128x1xf32>
    %98 = vector.broadcast %97 : vector<128x1xf32> to vector<128x128xf32>
    %99 = arith.subf %95, %98 : vector<128x128xf32>
    %100 = math.exp %99 : vector<128x128xf32>
    %cst_30 = arith.constant dense<0.000000e+00> : vector<128xf32>
    %101 = vector.multi_reduction <add>, %100, %cst_30 [1] : vector<128x128xf32> to vector<128xf32>
    %102 = vector.shape_cast %101 : vector<128xf32> to vector<128x1xf32>
    %103 = vector.broadcast %102 : vector<128x1xf32> to vector<128x128xf32>
    %104 = arith.divf %100, %103 : vector<128x128xf32>
    %105 = arith.truncf %104 : vector<128x128xf32> to vector<128x128xbf16>
    %106 = vector.extract_strided_slice %6 {offsets = [0, 24], sizes = [128, 8], strides = [1, 1]} : vector<128x64xbf16> to vector<128x8xbf16>
    %cst_31 = arith.constant dense<0.000000e+00> : vector<128x8xf32>
    %107 = tpu.matmul %105, %106, %cst_31 {dimension_numbers = #tpu.dot_dimension_numbers<[1], [0], [0], [1], [0, 0, 1, 1], [], []>} : vector<128x128xbf16>, vector<128x8xbf16>, vector<128x8xf32> -> vector<128x8xf32>
    %c0_32 = arith.constant 0 : index
    %c24 = arith.constant 24 : index
    %108 = vector.load %arg10[%c0_32, %c24] : memref<128x64xf32, #tpu.memory_space<vmem>>, vector<128x8xf32>
    tpu.vector_store %arg10[%c0_32, %c24], %107 {strides = array<i32>} : memref<128x64xf32, #tpu.memory_space<vmem>>, vector<128x8xf32>,
    %109 = vector.extract_strided_slice %12 {offsets = [0, 4], sizes = [128, 1], strides = [1, 1]} : vector<128x8xf32> to vector<128x1xf32>
    %110 = vector.extract_strided_slice %11 {offsets = [4, 0], sizes = [1, 128], strides = [1, 1]} : vector<8x128xf32> to vector<1x128xf32>
    %111 = vector.broadcast %109 : vector<128x1xf32> to vector<128x128xf32>
    %112 = vector.broadcast %110 : vector<1x128xf32> to vector<128x128xf32>
    %113 = arith.addf %111, %112 : vector<128x128xf32>
    %cst_33 = arith.constant 0.000000e+00 : f32
    %114 = vector.broadcast %cst_33 : f32 to vector<128x128xf32>
    %115 = arith.cmpf oge, %113, %114 : vector<128x128xf32>
    %cst_34 = arith.constant 2.000000e-01 : f32
    %116 = vector.broadcast %cst_34 : f32 to vector<128x128xf32>
    %117 = arith.mulf %116, %113 : vector<128x128xf32>
    %118 = arith.select %115, %113, %117 : vector<128x128xi1>, vector<128x128xf32>
    %119 = arith.addf %118, %1 : vector<128x128xf32>
    %cst_35 = arith.constant dense<0xFF800000> : vector<128xf32>
    %120 = vector.multi_reduction <maximumf>, %119, %cst_35 [1] : vector<128x128xf32> to vector<128xf32>
    %121 = vector.shape_cast %120 : vector<128xf32> to vector<128x1xf32>
    %122 = vector.broadcast %121 : vector<128x1xf32> to vector<128x128xf32>
    %123 = arith.subf %119, %122 : vector<128x128xf32>
    %124 = math.exp %123 : vector<128x128xf32>
    %cst_36 = arith.constant dense<0.000000e+00> : vector<128xf32>
    %125 = vector.multi_reduction <add>, %124, %cst_36 [1] : vector<128x128xf32> to vector<128xf32>
    %126 = vector.shape_cast %125 : vector<128xf32> to vector<128x1xf32>
    %127 = vector.broadcast %126 : vector<128x1xf32> to vector<128x128xf32>
    %128 = arith.divf %124, %127 : vector<128x128xf32>
    %129 = arith.truncf %128 : vector<128x128xf32> to vector<128x128xbf16>
    %130 = vector.extract_strided_slice %6 {offsets = [0, 32], sizes = [128, 8], strides = [1, 1]} : vector<128x64xbf16> to vector<128x8xbf16>
    %cst_37 = arith.constant dense<0.000000e+00> : vector<128x8xf32>
    %131 = tpu.matmul %129, %130, %cst_37 {dimension_numbers = #tpu.dot_dimension_numbers<[1], [0], [0], [1], [0, 0, 1, 1], [], []>} : vector<128x128xbf16>, vector<128x8xbf16>, vector<128x8xf32> -> vector<128x8xf32>
    %c0_38 = arith.constant 0 : index
    %c32 = arith.constant 32 : index
    %132 = vector.load %arg10[%c0_38, %c32] : memref<128x64xf32, #tpu.memory_space<vmem>>, vector<128x8xf32>
    tpu.vector_store %arg10[%c0_38, %c32], %131 {strides = array<i32>} : memref<128x64xf32, #tpu.memory_space<vmem>>, vector<128x8xf32>,
    %133 = vector.extract_strided_slice %12 {offsets = [0, 5], sizes = [128, 1], strides = [1, 1]} : vector<128x8xf32> to vector<128x1xf32>
    %134 = vector.extract_strided_slice %11 {offsets = [5, 0], sizes = [1, 128], strides = [1, 1]} : vector<8x128xf32> to vector<1x128xf32>
    %135 = vector.broadcast %133 : vector<128x1xf32> to vector<128x128xf32>
    %136 = vector.broadcast %134 : vector<1x128xf32> to vector<128x128xf32>
    %137 = arith.addf %135, %136 : vector<128x128xf32>
    %cst_39 = arith.constant 0.000000e+00 : f32
    %138 = vector.broadcast %cst_39 : f32 to vector<128x128xf32>
    %139 = arith.cmpf oge, %137, %138 : vector<128x128xf32>
    %cst_40 = arith.constant 2.000000e-01 : f32
    %140 = vector.broadcast %cst_40 : f32 to vector<128x128xf32>
    %141 = arith.mulf %140, %137 : vector<128x128xf32>
    %142 = arith.select %139, %137, %141 : vector<128x128xi1>, vector<128x128xf32>
    %143 = arith.addf %142, %1 : vector<128x128xf32>
    %cst_41 = arith.constant dense<0xFF800000> : vector<128xf32>
    %144 = vector.multi_reduction <maximumf>, %143, %cst_41 [1] : vector<128x128xf32> to vector<128xf32>
    %145 = vector.shape_cast %144 : vector<128xf32> to vector<128x1xf32>
    %146 = vector.broadcast %145 : vector<128x1xf32> to vector<128x128xf32>
    %147 = arith.subf %143, %146 : vector<128x128xf32>
    %148 = math.exp %147 : vector<128x128xf32>
    %cst_42 = arith.constant dense<0.000000e+00> : vector<128xf32>
    %149 = vector.multi_reduction <add>, %148, %cst_42 [1] : vector<128x128xf32> to vector<128xf32>
    %150 = vector.shape_cast %149 : vector<128xf32> to vector<128x1xf32>
    %151 = vector.broadcast %150 : vector<128x1xf32> to vector<128x128xf32>
    %152 = arith.divf %148, %151 : vector<128x128xf32>
    %153 = arith.truncf %152 : vector<128x128xf32> to vector<128x128xbf16>
    %154 = vector.extract_strided_slice %6 {offsets = [0, 40], sizes = [128, 8], strides = [1, 1]} : vector<128x64xbf16> to vector<128x8xbf16>
    %cst_43 = arith.constant dense<0.000000e+00> : vector<128x8xf32>
    %155 = tpu.matmul %153, %154, %cst_43 {dimension_numbers = #tpu.dot_dimension_numbers<[1], [0], [0], [1], [0, 0, 1, 1], [], []>} : vector<128x128xbf16>, vector<128x8xbf16>, vector<128x8xf32> -> vector<128x8xf32>
    %c0_44 = arith.constant 0 : index
    %c40 = arith.constant 40 : index
    %156 = vector.load %arg10[%c0_44, %c40] : memref<128x64xf32, #tpu.memory_space<vmem>>, vector<128x8xf32>
    tpu.vector_store %arg10[%c0_44, %c40], %155 {strides = array<i32>} : memref<128x64xf32, #tpu.memory_space<vmem>>, vector<128x8xf32>,
    %157 = vector.extract_strided_slice %12 {offsets = [0, 6], sizes = [128, 1], strides = [1, 1]} : vector<128x8xf32> to vector<128x1xf32>
    %158 = vector.extract_strided_slice %11 {offsets = [6, 0], sizes = [1, 128], strides = [1, 1]} : vector<8x128xf32> to vector<1x128xf32>
    %159 = vector.broadcast %157 : vector<128x1xf32> to vector<128x128xf32>
    %160 = vector.broadcast %158 : vector<1x128xf32> to vector<128x128xf32>
    %161 = arith.addf %159, %160 : vector<128x128xf32>
    %cst_45 = arith.constant 0.000000e+00 : f32
    %162 = vector.broadcast %cst_45 : f32 to vector<128x128xf32>
    %163 = arith.cmpf oge, %161, %162 : vector<128x128xf32>
    %cst_46 = arith.constant 2.000000e-01 : f32
    %164 = vector.broadcast %cst_46 : f32 to vector<128x128xf32>
    %165 = arith.mulf %164, %161 : vector<128x128xf32>
    %166 = arith.select %163, %161, %165 : vector<128x128xi1>, vector<128x128xf32>
    %167 = arith.addf %166, %1 : vector<128x128xf32>
    %cst_47 = arith.constant dense<0xFF800000> : vector<128xf32>
    %168 = vector.multi_reduction <maximumf>, %167, %cst_47 [1] : vector<128x128xf32> to vector<128xf32>
    %169 = vector.shape_cast %168 : vector<128xf32> to vector<128x1xf32>
    %170 = vector.broadcast %169 : vector<128x1xf32> to vector<128x128xf32>
    %171 = arith.subf %167, %170 : vector<128x128xf32>
    %172 = math.exp %171 : vector<128x128xf32>
    %cst_48 = arith.constant dense<0.000000e+00> : vector<128xf32>
    %173 = vector.multi_reduction <add>, %172, %cst_48 [1] : vector<128x128xf32> to vector<128xf32>
    %174 = vector.shape_cast %173 : vector<128xf32> to vector<128x1xf32>
    %175 = vector.broadcast %174 : vector<128x1xf32> to vector<128x128xf32>
    %176 = arith.divf %172, %175 : vector<128x128xf32>
    %177 = arith.truncf %176 : vector<128x128xf32> to vector<128x128xbf16>
    %178 = vector.extract_strided_slice %6 {offsets = [0, 48], sizes = [128, 8], strides = [1, 1]} : vector<128x64xbf16> to vector<128x8xbf16>
    %cst_49 = arith.constant dense<0.000000e+00> : vector<128x8xf32>
    %179 = tpu.matmul %177, %178, %cst_49 {dimension_numbers = #tpu.dot_dimension_numbers<[1], [0], [0], [1], [0, 0, 1, 1], [], []>} : vector<128x128xbf16>, vector<128x8xbf16>, vector<128x8xf32> -> vector<128x8xf32>
    %c0_50 = arith.constant 0 : index
    %c48 = arith.constant 48 : index
    %180 = vector.load %arg10[%c0_50, %c48] : memref<128x64xf32, #tpu.memory_space<vmem>>, vector<128x8xf32>
    tpu.vector_store %arg10[%c0_50, %c48], %179 {strides = array<i32>} : memref<128x64xf32, #tpu.memory_space<vmem>>, vector<128x8xf32>,
    %181 = vector.extract_strided_slice %12 {offsets = [0, 7], sizes = [128, 1], strides = [1, 1]} : vector<128x8xf32> to vector<128x1xf32>
    %182 = vector.extract_strided_slice %11 {offsets = [7, 0], sizes = [1, 128], strides = [1, 1]} : vector<8x128xf32> to vector<1x128xf32>
    %183 = vector.broadcast %181 : vector<128x1xf32> to vector<128x128xf32>
    %184 = vector.broadcast %182 : vector<1x128xf32> to vector<128x128xf32>
    %185 = arith.addf %183, %184 : vector<128x128xf32>
    %cst_51 = arith.constant 0.000000e+00 : f32
    %186 = vector.broadcast %cst_51 : f32 to vector<128x128xf32>
    %187 = arith.cmpf oge, %185, %186 : vector<128x128xf32>
    %cst_52 = arith.constant 2.000000e-01 : f32
    %188 = vector.broadcast %cst_52 : f32 to vector<128x128xf32>
    %189 = arith.mulf %188, %185 : vector<128x128xf32>
    %190 = arith.select %187, %185, %189 : vector<128x128xi1>, vector<128x128xf32>
    %191 = arith.addf %190, %1 : vector<128x128xf32>
    %cst_53 = arith.constant dense<0xFF800000> : vector<128xf32>
    %192 = vector.multi_reduction <maximumf>, %191, %cst_53 [1] : vector<128x128xf32> to vector<128xf32>
    %193 = vector.shape_cast %192 : vector<128xf32> to vector<128x1xf32>
    %194 = vector.broadcast %193 : vector<128x1xf32> to vector<128x128xf32>
    %195 = arith.subf %191, %194 : vector<128x128xf32>
    %196 = math.exp %195 : vector<128x128xf32>
    %cst_54 = arith.constant dense<0.000000e+00> : vector<128xf32>
    %197 = vector.multi_reduction <add>, %196, %cst_54 [1] : vector<128x128xf32> to vector<128xf32>
    %198 = vector.shape_cast %197 : vector<128xf32> to vector<128x1xf32>
    %199 = vector.broadcast %198 : vector<128x1xf32> to vector<128x128xf32>
    %200 = arith.divf %196, %199 : vector<128x128xf32>
    %201 = arith.truncf %200 : vector<128x128xf32> to vector<128x128xbf16>
    %202 = vector.extract_strided_slice %6 {offsets = [0, 56], sizes = [128, 8], strides = [1, 1]} : vector<128x64xbf16> to vector<128x8xbf16>
    %cst_55 = arith.constant dense<0.000000e+00> : vector<128x8xf32>
    %203 = tpu.matmul %201, %202, %cst_55 {dimension_numbers = #tpu.dot_dimension_numbers<[1], [0], [0], [1], [0, 0, 1, 1], [], []>} : vector<128x128xbf16>, vector<128x8xbf16>, vector<128x8xf32> -> vector<128x8xf32>
    %c0_56 = arith.constant 0 : index
    %c56 = arith.constant 56 : index
    %204 = vector.load %arg10[%c0_56, %c56] : memref<128x64xf32, #tpu.memory_space<vmem>>, vector<128x8xf32>
    tpu.vector_store %arg10[%c0_56, %c56], %203 {strides = array<i32>} : memref<128x64xf32, #tpu.memory_space<vmem>>, vector<128x8xf32>,
    %c0_57 = arith.constant 0 : index
    %c0_58 = arith.constant 0 : index
    %205 = vector.load %arg10[%c0_57, %c0_58] : memref<128x64xf32, #tpu.memory_space<vmem>>, vector<128x64xf32>
    %c0_59 = arith.constant 0 : index
    %c0_60 = arith.constant 0 : index
    %206 = vector.load %arg5[%c0_59, %c0_60] : memref<1x64xf32, #tpu.memory_space<vmem>>, vector<1x64xf32>
    %207 = vector.broadcast %206 : vector<1x64xf32> to vector<128x64xf32>
    %208 = arith.addf %205, %207 : vector<128x64xf32>
    %cst_61 = arith.constant 0.000000e+00 : f32
    %209 = vector.broadcast %cst_61 : f32 to vector<128x64xf32>
    %210 = arith.cmpf ogt, %208, %209 : vector<128x64xf32>
    %211 = math.exp %208 : vector<128x64xf32>
    %cst_62 = arith.constant 1.000000e+00 : f32
    %212 = vector.broadcast %cst_62 : f32 to vector<128x64xf32>
    %213 = arith.subf %211, %212 : vector<128x64xf32>
    %214 = arith.select %210, %208, %213 : vector<128x64xi1>, vector<128x64xf32>
    %215 = arith.truncf %214 : vector<128x64xf32> to vector<128x64xbf16>
    %c0_63 = arith.constant 0 : index
    %c0_64 = arith.constant 0 : index
    %216 = vector.load %arg6[%c0_63, %c0_64] : memref<64x4xf32, #tpu.memory_space<vmem>>, vector<64x4xf32>
    %217 = arith.truncf %216 : vector<64x4xf32> to vector<64x4xbf16>
    %cst_65 = arith.constant dense<0.000000e+00> : vector<128x4xf32>
    %218 = tpu.matmul %215, %217, %cst_65 {dimension_numbers = #tpu.dot_dimension_numbers<[1], [0], [0], [1], [0, 0, 1, 1], [], []>} : vector<128x64xbf16>, vector<64x4xbf16>, vector<128x4xf32> -> vector<128x4xf32>
    %219 = arith.truncf %218 : vector<128x4xf32> to vector<128x4xbf16>
    %c0_66 = arith.constant 0 : index
    %c0_67 = arith.constant 0 : index
    %220 = vector.load %arg7[%c0_66, %c0_67] : memref<4x2xf32, #tpu.memory_space<vmem>>, vector<4x2xf32>
    %221 = arith.truncf %220 : vector<4x2xf32> to vector<4x2xbf16>
    %cst_68 = arith.constant dense<0.000000e+00> : vector<128x2xf32>
    %222 = tpu.matmul %219, %221, %cst_68 {dimension_numbers = #tpu.dot_dimension_numbers<[1], [0], [0], [1], [0, 0, 1, 1], [], []>} : vector<128x4xbf16>, vector<4x2xbf16>, vector<128x2xf32> -> vector<128x2xf32>
    %223 = vector.extract_strided_slice %222 {offsets = [0, 1], sizes = [128, 1], strides = [1, 1]} : vector<128x2xf32> to vector<128x1xf32>
    %224 = vector.extract_strided_slice %222 {offsets = [0, 0], sizes = [128, 1], strides = [1, 1]} : vector<128x2xf32> to vector<128x1xf32>
    %225 = tpu.transpose %224, [1, 0] : vector<128x1xf32> -> vector<1x128xf32>
    %226 = vector.broadcast %223 : vector<128x1xf32> to vector<128x128xf32>
    %227 = vector.broadcast %225 : vector<1x128xf32> to vector<128x128xf32>
    %228 = arith.addf %226, %227 : vector<128x128xf32>
    %cst_69 = arith.constant 0.000000e+00 : f32
    %229 = vector.broadcast %cst_69 : f32 to vector<128x128xf32>
    %230 = arith.cmpf oge, %228, %229 : vector<128x128xf32>
    %cst_70 = arith.constant 2.000000e-01 : f32
    %231 = vector.broadcast %cst_70 : f32 to vector<128x128xf32>
    %232 = arith.mulf %231, %228 : vector<128x128xf32>
    %233 = arith.select %230, %228, %232 : vector<128x128xi1>, vector<128x128xf32>
    %234 = arith.addf %233, %1 : vector<128x128xf32>
    %cst_71 = arith.constant dense<0xFF800000> : vector<128xf32>
    %235 = vector.multi_reduction <maximumf>, %234, %cst_71 [1] : vector<128x128xf32> to vector<128xf32>
    %236 = vector.shape_cast %235 : vector<128xf32> to vector<128x1xf32>
    %237 = vector.broadcast %236 : vector<128x1xf32> to vector<128x128xf32>
    %238 = arith.subf %234, %237 : vector<128x128xf32>
    %239 = math.exp %238 : vector<128x128xf32>
    %cst_72 = arith.constant dense<0.000000e+00> : vector<128xf32>
    %240 = vector.multi_reduction <add>, %239, %cst_72 [1] : vector<128x128xf32> to vector<128xf32>
    %241 = vector.shape_cast %240 : vector<128xf32> to vector<128x1xf32>
    %242 = vector.broadcast %241 : vector<128x1xf32> to vector<128x128xf32>
    %243 = arith.divf %239, %242 : vector<128x128xf32>
    %244 = arith.truncf %243 : vector<128x128xf32> to vector<128x128xbf16>
    %cst_73 = arith.constant dense<0.000000e+00> : vector<128x4xf32>
    %245 = tpu.matmul %244, %219, %cst_73 {dimension_numbers = #tpu.dot_dimension_numbers<[1], [0], [0], [1], [0, 0, 1, 1], [], []>} : vector<128x128xbf16>, vector<128x4xbf16>, vector<128x4xf32> -> vector<128x4xf32>
    %c0_74 = arith.constant 0 : index
    %c0_75 = arith.constant 0 : index
    %246 = vector.load %arg8[%c0_74, %c0_75] : memref<1x4xf32, #tpu.memory_space<vmem>>, vector<1x4xf32>
    %247 = vector.broadcast %246 : vector<1x4xf32> to vector<128x4xf32>
    %248 = arith.addf %245, %247 : vector<128x4xf32>
    %cst_76 = arith.constant dense<0xFF800000> : vector<128xf32>
    %249 = vector.multi_reduction <maximumf>, %248, %cst_76 [1] : vector<128x4xf32> to vector<128xf32>
    %250 = vector.shape_cast %249 : vector<128xf32> to vector<128x1xf32>
    %251 = vector.broadcast %250 : vector<128x1xf32> to vector<128x4xf32>
    %252 = arith.subf %248, %251 : vector<128x4xf32>
    %253 = math.exp %252 : vector<128x4xf32>
    %cst_77 = arith.constant dense<0.000000e+00> : vector<128xf32>
    %254 = vector.multi_reduction <add>, %253, %cst_77 [1] : vector<128x4xf32> to vector<128xf32>
    %255 = vector.shape_cast %254 : vector<128xf32> to vector<128x1xf32>
    %256 = math.log %255 : vector<128x1xf32>
    %257 = arith.addf %256, %250 : vector<128x1xf32>
    %258 = vector.broadcast %257 : vector<128x1xf32> to vector<128x4xf32>
    %259 = arith.subf %248, %258 : vector<128x4xf32>
    %260 = tpu.transpose %259, [1, 0] : vector<128x4xf32> -> vector<4x128xf32>
    %c0_78 = arith.constant 0 : index
    %c0_79 = arith.constant 0 : index
    %261 = vector.load %arg9[%c0_78, %c0_79] : memref<4x128xf32, #tpu.memory_space<vmem>>, vector<4x128xf32>
    tpu.vector_store %arg9[%c0_78, %c0_79], %260 {strides = array<i32>} : memref<4x128xf32, #tpu.memory_space<vmem>>, vector<4x128xf32>,
    return
  }
  func.func @transform_0(%arg0: i32) -> (i32, i32) {
    %c0_i32 = arith.constant 0 : i32
    %c0_i32_0 = arith.constant 0 : i32
    return %arg0, %c0_i32 : i32, i32
  }
  func.func @transform_1(%arg0: i32) -> (i32, i32) {
    %c0_i32 = arith.constant 0 : i32
    %c0_i32_0 = arith.constant 0 : i32
    %c0_i32_1 = arith.constant 0 : i32
    return %c0_i32, %c0_i32_0 : i32, i32
  }
  func.func @transform_2(%arg0: i32) -> (i32, i32) {
    %c0_i32 = arith.constant 0 : i32
    %c0_i32_0 = arith.constant 0 : i32
    %c0_i32_1 = arith.constant 0 : i32
    return %c0_i32, %c0_i32_0 : i32, i32
  }
  func.func @transform_3(%arg0: i32) -> (i32, i32) {
    %c0_i32 = arith.constant 0 : i32
    %c0_i32_0 = arith.constant 0 : i32
    %c0_i32_1 = arith.constant 0 : i32
    return %c0_i32, %c0_i32_0 : i32, i32
  }
  func.func @transform_4(%arg0: i32) -> (i32, i32) {
    %c0_i32 = arith.constant 0 : i32
    %c0_i32_0 = arith.constant 0 : i32
    %c0_i32_1 = arith.constant 0 : i32
    return %c0_i32, %c0_i32_0 : i32, i32
  }
  func.func @transform_5(%arg0: i32) -> (i32, i32) {
    %c0_i32 = arith.constant 0 : i32
    %c0_i32_0 = arith.constant 0 : i32
    %c0_i32_1 = arith.constant 0 : i32
    return %c0_i32, %c0_i32_0 : i32, i32
  }
  func.func @transform_6(%arg0: i32) -> (i32, i32) {
    %c0_i32 = arith.constant 0 : i32
    %c0_i32_0 = arith.constant 0 : i32
    %c0_i32_1 = arith.constant 0 : i32
    return %c0_i32, %c0_i32_0 : i32, i32
  }
  func.func @transform_7(%arg0: i32) -> (i32, i32) {
    %c0_i32 = arith.constant 0 : i32
    %c0_i32_0 = arith.constant 0 : i32
    %c0_i32_1 = arith.constant 0 : i32
    return %c0_i32, %c0_i32_0 : i32, i32
  }
  func.func @transform_8(%arg0: i32) -> (i32, i32) {
    %c0_i32 = arith.constant 0 : i32
    %c0_i32_0 = arith.constant 0 : i32
    return %c0_i32, %arg0 : i32, i32
  }
}

</mosaic_0001>

<llo_original>
// kernel: tpu_custom_call.1
$region0: #{tpu_custom_call.1}
  #allocation0 [shape = 'u32[]', space=smem, size = 0x4, offset = 0x4, fixed_abs, tag = 'smem constant byte address 0x4 - core index']
  #allocation1 [shape = 'u32[144,128]{1,0:T(1,128)}', space=vmem, size = 0x12000, scoped, tag = 'internal scratch']
  #allocation2 [shape = 'f32[128,64]{1,0:T(8,128)}', space=vmem, size = 0x10000, scoped, tag = 'scratch operand']
  %s0 = inlined_call_operand.vmem [shape: f32[256,4], index: 0, kind: input, shape index: {}]
  %s1 = inlined_call_operand.vmem [shape: f32[128,128], index: 1, kind: input, shape index: {}]
  %s2 = inlined_call_operand.vmem [shape: f32[4,64], index: 2, kind: input, shape index: {}]
  %s3 = inlined_call_operand.vmem [shape: f32[64,16], index: 3, kind: input, shape index: {}]
  %s4 = inlined_call_operand.vmem [shape: f32[1,64], index: 4, kind: input, shape index: {}]
  %s5 = inlined_call_operand.vmem [shape: f32[64,4], index: 5, kind: input, shape index: {}]
  %s6 = inlined_call_operand.vmem [shape: f32[4,2], index: 6, kind: input, shape index: {}]
  %s7 = inlined_call_operand.vmem [shape: f32[1,4], index: 7, kind: input, shape index: {}]
  %s8 = inlined_call_operand.hbm [shape: f32[4,256], index: 8, kind: output, shape index: {}]
  %s9 = sld [smem:[#allocation0]]
  $region65: #{tpu_custom_call.1} parent=0
    _
  %s11 = ssub.s32 1, %s9
  %s12 = scalar_select 0, %s11, %s9
  $region1: #{tpu_custom_call.1} parent=0
    #allocation3 [shape = 'u8[4096]{0}', space=vmem, size = 0x1000, scoped, tag = 'output window, operand 0']
    #allocation4 [shape = 's32[2]{0}', space=sflag, size = 0x8, scoped, tag = 'scoped memory for tpu_custom_call.1']
    %13 = vsyncpa [#allocation4], 0
    %s14 = scalar_lea.sflag [#allocation4], 1
    %15 = vsyncpa %s14, 0
    loop: start=0, step=1, limit=4
    $region2: #{tpu_custom_call.1} parent=1 // loop_pre_header
      _
    $region3: #{tpu_custom_call.1} parent=1 // loop_header
      %s17 = sphi 0, %s21
      %p18 = scmp.ge.s32.totalorder %s17, 4
      %s27 = sphi 0, %s29
      %s30 = sphi 0, %s27
      %s31 = sphi 0, %s30
      %s47 = sphi 0, %s31
      %s51 = sphi 0, %s51
      %s53 = sphi 0, %s51
      %s54 = sphi 0, %s53
      %s68 = sphi 0, %s54
      %s72 = sphi 0, %s72
      %s74 = sphi 0, %s72
      %s75 = sphi 0, %s74
      %s89 = sphi 0, %s75
      %s93 = sphi 0, %s93
      %s95 = sphi 0, %s93
      %s96 = sphi 0, %s95
      %s110 = sphi 0, %s96
      %s114 = sphi 0, %s114
      %s116 = sphi 0, %s114
      %s117 = sphi 0, %s116
      %s131 = sphi 0, %s117
      %s135 = sphi 0, %s135
      %s137 = sphi 0, %s135
      %s138 = sphi 0, %s137
      %s152 = sphi 0, %s138
      %s156 = sphi 0, %s156
      %s158 = sphi 0, %s156
      %s159 = sphi 0, %s158
      %s173 = sphi 0, %s159
      %s177 = sphi 0, %s177
      %s179 = sphi 0, %s177
      %s180 = sphi 0, %s179
      %s194 = sphi 0, %s180
      %s200 = sphi 0, %s202
      %s203 = sphi 0, %s200
      %s204 = sphi 0, %s203
      %s220 = sphi 0, %s204
    $region4: #{tpu_custom_call.1} parent=1 // loop_header_branch
      %20 = sbr.rel (%p18) target = $region8
    $region5: #{tpu_custom_call.1} parent=1 // loop_body
      %s22 = ssub.s32 %s17, 1
      %s23 = ssub.s32 %s17, 2
      %s24 = sadd.s32 %s17, 1
      %s25 = ssub.s32 %s17, %s24
      %p26 = scmp.eq.s32.totalorder %s25, 0
      %s28 = sadd.s32 %s27, 1
      %s29 = scalar_select %p26, %s27, %s28
      %p32 = pneg %p26
      %p33 = scmp.eq.s32.totalorder %s17, 1
      %p34 = por %p32, %p33
      %p35 = scmp.ne.s32.totalorder %s27, %s30
      %p36 = scmp.eq.s32.totalorder %s17, 0
      %p37 = por %p35, %p36
      %p38 = scmp.ne.s32.totalorder %s27, %s30
      %p39 = scmp.eq.s32.totalorder %s22, 1
      %p40 = por %p38, %p39
      %p41 = scmp.ne.s32.totalorder %s30, %s31
      %p42 = scmp.eq.s32.totalorder %s22, 0
      %p43 = por %p41, %p42
      %p44 = scmp.ne.s32.totalorder %s30, %s31
      %p45 = scmp.eq.s32.totalorder %s23, 1
      %p46 = por %p44, %p45
      %p48 = scmp.ne.s32.totalorder %s31, %s47
      %p49 = scmp.eq.s32.totalorder %s23, 0
      %p50 = por %p48, %p49
      %s52 = sadd.s32 %s51, 1
      %p55 = scmp.eq.s32.totalorder %s17, 1
      %p56 = scmp.ne.s32.totalorder %s51, %s53
      %p57 = scmp.eq.s32.totalorder %s17, 0
      %p58 = por %p56, %p57
      %p59 = scmp.ne.s32.totalorder %s51, %s53
      %p60 = scmp.eq.s32.totalorder %s22, 1
      %p61 = por %p59, %p60
      %p62 = scmp.ne.s32.totalorder %s53, %s54
      %p63 = scmp.eq.s32.totalorder %s22, 0
      %p64 = por %p62, %p63
      %p65 = scmp.ne.s32.totalorder %s53, %s54
      %p66 = scmp.eq.s32.totalorder %s23, 1
      %p67 = por %p65, %p66
      %p69 = scmp.ne.s32.totalorder %s54, %s68
      %p70 = scmp.eq.s32.totalorder %s23, 0
      %p71 = por %p69, %p70
      %s73 = sadd.s32 %s72, 1
      %p76 = scmp.eq.s32.totalorder %s17, 1
      %p77 = scmp.ne.s32.totalorder %s72, %s74
      %p78 = scmp.eq.s32.totalorder %s17, 0
      %p79 = por %p77, %p78
      %p80 = scmp.ne.s32.totalorder %s72, %s74
      %p81 = scmp.eq.s32.totalorder %s22, 1
      %p82 = por %p80, %p81
      %p83 = scmp.ne.s32.totalorder %s74, %s75
      %p84 = scmp.eq.s32.totalorder %s22, 0
      %p85 = por %p83, %p84
      %p86 = scmp.ne.s32.totalorder %s74, %s75
      %p87 = scmp.eq.s32.totalorder %s23, 1
      %p88 = por %p86, %p87
      %p90 = scmp.ne.s32.totalorder %s75, %s89
      %p91 = scmp.eq.s32.totalorder %s23, 0
      %p92 = por %p90, %p91
      %s94 = sadd.s32 %s93, 1
      %p97 = scmp.eq.s32.totalorder %s17, 1
      %p98 = scmp.ne.s32.totalorder %s93, %s95
      %p99 = scmp.eq.s32.totalorder %s17, 0
      %p100 = por %p98, %p99
      %p101 = scmp.ne.s32.totalorder %s93, %s95
      %p102 = scmp.eq.s32.totalorder %s22, 1
      %p103 = por %p101, %p102
      %p104 = scmp.ne.s32.totalorder %s95, %s96
      %p105 = scmp.eq.s32.totalorder %s22, 0
      %p106 = por %p104, %p105
      %p107 = scmp.ne.s32.totalorder %s95, %s96
      %p108 = scmp.eq.s32.totalorder %s23, 1
      %p109 = por %p107, %p108
      %p111 = scmp.ne.s32.totalorder %s96, %s110
      %p112 = scmp.eq.s32.totalorder %s23, 0
      %p113 = por %p111, %p112
      %s115 = sadd.s32 %s114, 1
      %p118 = scmp.eq.s32.totalorder %s17, 1
      %p119 = scmp.ne.s32.totalorder %s114, %s116
      %p120 = scmp.eq.s32.totalorder %s17, 0
      %p121 = por %p119, %p120
      %p122 = scmp.ne.s32.totalorder %s114, %s116
      %p123 = scmp.eq.s32.totalorder %s22, 1
      %p124 = por %p122, %p123
      %p125 = scmp.ne.s32.totalorder %s116, %s117
      %p126 = scmp.eq.s32.totalorder %s22, 0
      %p127 = por %p125, %p126
      %p128 = scmp.ne.s32.totalorder %s116, %s117
      %p129 = scmp.eq.s32.totalorder %s23, 1
      %p130 = por %p128, %p129
      %p132 = scmp.ne.s32.totalorder %s117, %s131
      %p133 = scmp.eq.s32.totalorder %s23, 0
      %p134 = por %p132, %p133
      %s136 = sadd.s32 %s135, 1
      %p139 = scmp.eq.s32.totalorder %s17, 1
      %p140 = scmp.ne.s32.totalorder %s135, %s137
      %p141 = scmp.eq.s32.totalorder %s17, 0
      %p142 = por %p140, %p141
      %p143 = scmp.ne.s32.totalorder %s135, %s137
      %p144 = scmp.eq.s32.totalorder %s22, 1
      %p145 = por %p143, %p144
      %p146 = scmp.ne.s32.totalorder %s137, %s138
      %p147 = scmp.eq.s32.totalorder %s22, 0
      %p148 = por %p146, %p147
      %p149 = scmp.ne.s32.totalorder %s137, %s138
      %p150 = scmp.eq.s32.totalorder %s23, 1
      %p151 = por %p149, %p150
      %p153 = scmp.ne.s32.totalorder %s138, %s152
      %p154 = scmp.eq.s32.totalorder %s23, 0
      %p155 = por %p153, %p154
      %s157 = sadd.s32 %s156, 1
      %p160 = scmp.eq.s32.totalorder %s17, 1
      %p161 = scmp.ne.s32.totalorder %s156, %s158
      %p162 = scmp.eq.s32.totalorder %s17, 0
      %p163 = por %p161, %p162
      %p164 = scmp.ne.s32.totalorder %s156, %s158
      %p165 = scmp.eq.s32.totalorder %s22, 1
      %p166 = por %p164, %p165
      %p167 = scmp.ne.s32.totalorder %s158, %s159
      %p168 = scmp.eq.s32.totalorder %s22, 0
      %p169 = por %p167, %p168
      %p170 = scmp.ne.s32.totalorder %s158, %s159
      %p171 = scmp.eq.s32.totalorder %s23, 1
      %p172 = por %p170, %p171
      %p174 = scmp.ne.s32.totalorder %s159, %s173
      %p175 = scmp.eq.s32.totalorder %s23, 0
      %p176 = por %p174, %p175
      %s178 = sadd.s32 %s177, 1
      %p181 = scmp.eq.s32.totalorder %s17, 1
      %p182 = scmp.ne.s32.totalorder %s177, %s179
      %p183 = scmp.eq.s32.totalorder %s17, 0
      %p184 = por %p182, %p183
      %p185 = scmp.ne.s32.totalorder %s177, %s179
      %p186 = scmp.eq.s32.totalorder %s22, 1
      %p187 = por %p185, %p186
      %p188 = scmp.ne.s32.totalorder %s179, %s180
      %p189 = scmp.eq.s32.totalorder %s22, 0
      %p190 = por %p188, %p189
      %p191 = scmp.ne.s32.totalorder %s179, %s180
      %p192 = scmp.eq.s32.totalorder %s23, 1
      %p193 = por %p191, %p192
      %p195 = scmp.ne.s32.totalorder %s180, %s194
      %p196 = scmp.eq.s32.totalorder %s23, 0
      %p197 = por %p195, %p196
      %s198 = ssub.s32 %s17, %s24
      %p199 = scmp.eq.s32.totalorder %s198, 0
      %s201 = sadd.s32 %s200, 1
      %s202 = scalar_select %p199, %s200, %s201
      %p205 = pneg %p199
      %p206 = scmp.eq.s32.totalorder %s17, 1
      %p207 = por %p205, %p206
      %p208 = scmp.ne.s32.totalorder %s200, %s203
      %p209 = scmp.eq.s32.totalorder %s17, 0
      %p210 = por %p208, %p209
      %p211 = scmp.ne.s32.totalorder %s200, %s203
      %p212 = scmp.eq.s32.totalorder %s22, 1
      %p213 = por %p211, %p212
      %p214 = scmp.ne.s32.totalorder %s203, %s204
      %p215 = scmp.eq.s32.totalorder %s22, 0
      %p216 = por %p214, %p215
      %p217 = scmp.ne.s32.totalorder %s203, %s204
      %p218 = scmp.eq.s32.totalorder %s23, 1
      %p219 = por %p217, %p218
      %p221 = scmp.ne.s32.totalorder %s204, %s220
      %p222 = scmp.eq.s32.totalorder %s23, 0
      %p223 = por %p221, %p222
      %p224 = scmp.le.s32.totalorder 1, %s17
      %p225 = scmp.lt.s32.totalorder %s17, 3
      %p226 = pnand %p224, %p225
      %p227 = pneg %p226
      // Predicated region
      $region9: #{tpu_custom_call.1} parent=5 // pred_check
        _
      $region10: #{tpu_custom_call.1} parent=5 // pred_check_branch
        %229 = sbr.rel (%p226) target = $region12
      $region11: #{tpu_custom_call.1} parent=5 // pred_region
        %s230 = ssub.s32 %s17, 1
        // Predicated region
        $region13: #{tpu_custom_call.1} parent=11 // pred_check
          %p231 = pneg %p64
        $region14: #{tpu_custom_call.1} parent=11 // pred_check_branch
          %233 = sbr.rel (%p231) target = $region16
        $region15: #{tpu_custom_call.1} parent=11 // pred_region
          _
        $region16: #{tpu_custom_call.1} parent=11 // pred_fallthru
          _
        // Predicated region
        $region17: #{tpu_custom_call.1} parent=11 // pred_check
          %p234 = pneg %p85
        $region18: #{tpu_custom_call.1} parent=11 // pred_check_branch
          %236 = sbr.rel (%p234) target = $region20
        $region19: #{tpu_custom_call.1} parent=11 // pred_region
          _
        $region20: #{tpu_custom_call.1} parent=11 // pred_fallthru
          _
        // Predicated region
        $region21: #{tpu_custom_call.1} parent=11 // pred_check
          %p237 = pneg %p106
        $region22: #{tpu_custom_call.1} parent=11 // pred_check_branch
          %239 = sbr.rel (%p237) target = $region24
        $region23: #{tpu_custom_call.1} parent=11 // pred_region
          _
        $region24: #{tpu_custom_call.1} parent=11 // pred_fallthru
          _
        // Predicated region
        $region25: #{tpu_custom_call.1} parent=11 // pred_check
          %p240 = pneg %p127
        $region26: #{tpu_custom_call.1} parent=11 // pred_check_branch
          %242 = sbr.rel (%p240) target = $region28
        $region27: #{tpu_custom_call.1} parent=11 // pred_region
          _
        $region28: #{tpu_custom_call.1} parent=11 // pred_fallthru
          _
        // Predicated region
        $region29: #{tpu_custom_call.1} parent=11 // pred_check
          %p243 = pneg %p148
        $region30: #{tpu_custom_call.1} parent=11 // pred_check_branch
          %245 = sbr.rel (%p243) target = $region32
        $region31: #{tpu_custom_call.1} parent=11 // pred_region
          _
        $region32: #{tpu_custom_call.1} parent=11 // pred_fallthru
          _
        // Predicated region
        $region33: #{tpu_custom_call.1} parent=11 // pred_check
          %p246 = pneg %p169
        $region34: #{tpu_custom_call.1} parent=11 // pred_check_branch
          %248 = sbr.rel (%p246) target = $region36
        $region35: #{tpu_custom_call.1} parent=11 // pred_region
          _
        $region36: #{tpu_custom_call.1} parent=11 // pred_fallthru
          _
        // Predicated region
        $region37: #{tpu_custom_call.1} parent=11 // pred_check
          %p249 = pneg %p190
        $region38: #{tpu_custom_call.1} parent=11 // pred_check_branch
          %251 = sbr.rel (%p249) target = $region40
        $region39: #{tpu_custom_call.1} parent=11 // pred_region
          _
        $region40: #{tpu_custom_call.1} parent=11 // pred_fallthru
          _
      $region12: #{tpu_custom_call.1} parent=5 // pred_fallthru
        _
      %p252 = scmp.lt.s32.totalorder %s17, 2
      // Predicated region
      $region41: #{tpu_custom_call.1} parent=5 // pred_check
        %p253 = pneg %p252
      $region42: #{tpu_custom_call.1} parent=5 // pred_check_branch
        %255 = sbr.rel (%p253) target = $region44
      $region43: #{tpu_custom_call.1} parent=5 // pred_region
        // Predicated region
        $region45: #{tpu_custom_call.1} parent=43 // pred_check
          %p256 = pneg %p37
        $region46: #{tpu_custom_call.1} parent=43 // pred_check_branch
          %258 = sbr.rel (%p256) target = $region48
        $region47: #{tpu_custom_call.1} parent=43 // pred_region
          %s259 = smul.u32 16, %s17
          %p260 = scmp.lt.s32.totalorder %s259, 31
          %s261 = scalar_select %p260, %s259, 31
          %s262 = smul.addr %s261, 8
          %s263 = scalar_lea.vmem %s0, %s262
          %s264 = smul.u32 16, %s17
        $region48: #{tpu_custom_call.1} parent=43 // pred_fallthru
          _
      $region44: #{tpu_custom_call.1} parent=5 // pred_fallthru
        _
      %p265 = scmp.le.s32.totalorder 1, %s17
      %p266 = scmp.lt.s32.totalorder %s17, 3
      %p267 = pnand %p265, %p266
      %p268 = pneg %p267
      // Predicated region
      $region49: #{tpu_custom_call.1} parent=5 // pred_check
        _
      $region50: #{tpu_custom_call.1} parent=5 // pred_check_branch
        %270 = sbr.rel (%p267) target = $region52
      $region51: #{tpu_custom_call.1} parent=5 // pred_region
        %s271 = ssub.s32 %s17, 1
        %s272 = smul.u32 16, %s22
        %p273 = scmp.lt.s32.totalorder %s272, 31
        %s274 = scalar_select %p273, %s272, 31
        %s275 = smul.addr %s274, 8
        %s276 = scalar_lea.vmem %s0, %s275
        %p277 = pneg %p43
        %p278 = pneg %p40
        %p279 = pneg %p64
        %p280 = pneg %p61
        %p281 = pneg %p85
        %p282 = pneg %p82
        %p283 = pneg %p106
        %p284 = pneg %p103
        %p285 = pneg %p127
        %p286 = pneg %p124
        %p287 = pneg %p148
        %p288 = pneg %p145
        %p289 = pneg %p169
        %p290 = pneg %p166
        %p291 = pneg %p190
        %p292 = pneg %p187
        %p293 = pneg %p216
        %p294 = pneg %p213
        %s295 = sand.u32 %s203, 1
        %s296 = scalar_lea.sflag [#allocation4], %s295
        %s297 = sand.u32 %s203, 1
        %s298 = smul.addr %s297, 4
        %s299 = scalar_lea.vmem [#allocation3], %s298
        %s300 = smul.u32 16, %s22
        %p301 = scmp.lt.s32.totalorder %s300, 31
        %s302 = scalar_select %p301, %s300, 31
        %s303 = smul.addr %s302, 8
        %s304 = scalar_lea.vmem %s0, %s303
        %s305 = smul.u32 16, %s22
        %v307 = vld [vmem:[%s304] sm:$0xff]
        %v308 = vld [vmem:[%s304 + $0x8] sm:$0xff]
        %v309 = vld [vmem:[%s304 + $0x10] sm:$0xff]
        %v310 = vld [vmem:[%s304 + $0x18] sm:$0xff]
        %v311 = vld [vmem:[%s304 + $0x20] sm:$0xff]
        %v312 = vld [vmem:[%s304 + $0x28] sm:$0xff]
        %v313 = vld [vmem:[%s304 + $0x30] sm:$0xff]
        %v314 = vld [vmem:[%s304 + $0x38] sm:$0xff]
        %v315 = vld [vmem:[%s304 + $0x40] sm:$0xff]
        %v316 = vld [vmem:[%s304 + $0x48] sm:$0xff]
        %v317 = vld [vmem:[%s304 + $0x50] sm:$0xff]
        %v318 = vld [vmem:[%s304 + $0x58] sm:$0xff]
        %v319 = vld [vmem:[%s304 + $0x60] sm:$0xff]
        %v320 = vld [vmem:[%s304 + $0x68] sm:$0xff]
        %v321 = vld [vmem:[%s304 + $0x70] sm:$0xff]
        %v322 = vld [vmem:[%s304 + $0x78] sm:$0xff]
        %v323 = vld [vmem:[%s1] sm:$0xff]
        %v324 = vld [vmem:[%s1 + $0x8] sm:$0xff]
        %v325 = vld [vmem:[%s1 + $0x10] sm:$0xff]
        %v326 = vld [vmem:[%s1 + $0x18] sm:$0xff]
        %v327 = vld [vmem:[%s1 + $0x20] sm:$0xff]
        %v328 = vld [vmem:[%s1 + $0x28] sm:$0xff]
        %v329 = vld [vmem:[%s1 + $0x30] sm:$0xff]
        %v330 = vld [vmem:[%s1 + $0x38] sm:$0xff]
        %v331 = vld [vmem:[%s1 + $0x40] sm:$0xff]
        %v332 = vld [vmem:[%s1 + $0x48] sm:$0xff]
        %v333 = vld [vmem:[%s1 + $0x50] sm:$0xff]
        %v334 = vld [vmem:[%s1 + $0x58] sm:$0xff]
        %v335 = vld [vmem:[%s1 + $0x60] sm:$0xff]
        %v336 = vld [vmem:[%s1 + $0x68] sm:$0xff]
        %v337 = vld [vmem:[%s1 + $0x70] sm:$0xff]
        %v338 = vld [vmem:[%s1 + $0x78] sm:$0xff]
        %v339 = vpack.c.bf16 %v308, %v307
        %v340 = vpack.c.bf16 %v310, %v309
        %v341 = vpack.c.bf16 %v312, %v311
        %v342 = vpack.c.bf16 %v314, %v313
        %v343 = vpack.c.bf16 %v316, %v315
        %v344 = vpack.c.bf16 %v318, %v317
        %v345 = vpack.c.bf16 %v320, %v319
        %v346 = vpack.c.bf16 %v322, %v321
        %v347 = vld [vmem:[%s2] sm:$0xf]
        %v348 = vpack.c.bf16 %v347, %v347
        %vm349 = vcmask 31744
        %v351 = vsel %vm349, %v339, 0
        %v354 = vsel %vm349, %v340, 0
        %v357 = vsel %vm349, %v341, 0
        %v360 = vsel %vm349, %v342, 0
        %v363 = vsel %vm349, %v343, 0
        %v366 = vsel %vm349, %v344, 0
        %v369 = vsel %vm349, %v345, 0
        %v372 = vsel %vm349, %v346, 0
        %vm374 = vcmask 1041408
        %v376 = vsel %vm374, %v348, 0
        %378 = vmatprep.subr.bf16.mxu0 0
        %379 = vmatpush1.bf16.msra.mxu0 0
        %380 = vmatprep.subr.bf16.mxu0 0
        %381 = vmatpush1.bf16.msra.mxu0 0
        %382 = vmatprep.subr.bf16.mxu0 0
        %383 = vmatpush1.bf16.msra.mxu0 0
        %384 = vmatprep.subr.bf16.mxu0 0
        %385 = vmatpush1.bf16.msra.mxu0 0
        %386 = vmatprep.subr.bf16.mxu0 0
        %387 = vmatpush1.bf16.msra.mxu0 0
        %388 = vmatprep.subr.bf16.mxu0 0
        %389 = vmatpush1.bf16.msra.mxu0 0
        %390 = vmatprep.subr.bf16.mxu0 0
        %391 = vmatpush1.bf16.msra.mxu0 0
        %392 = vmatprep.subr.bf16.mxu0 0
        %393 = vmatpush1.bf16.msra.mxu0 %v376
        %394 = vmatprep.subr.bf16.mxu0 0
        %395 = vmatpush2.bf16.msra.mxu0 0
        %396 = vmatprep.subr.bf16.mxu0 0
        %397 = vmatpush2.bf16.msra.mxu0 0
        %398 = vmatprep.subr.bf16.mxu0 0
        %399 = vmatpush2.bf16.msra.mxu0 0
        %400 = vmatprep.subr.bf16.mxu0 0
        %401 = vmatpush2.bf16.msra.mxu0 0
        %402 = vmatprep.subr.bf16.mxu0 0
        %403 = vmatpush2.bf16.msra.mxu0 0
        %404 = vmatprep.subr.bf16.mxu0 0
        %405 = vmatpush2.bf16.msra.mxu0 0
        %406 = vmatprep.subr.bf16.mxu0 0
        %407 = vmatpush2.bf16.msra.mxu0 0
        %408 = vmatprep.subr.bf16.mxu0 0
        %409 = vmatpush2.bf16.msra.mxu0 0
        %410 = vmatprep.mubr.bf16.mxu0 0
        %411 = vmatmul.mubr.bf16.gmra.mxu0 %v351
        %v412 = vpop.f32.mrf.mxu0
        %v413 = vadd.f32 0.0, %v412
        %v414 = vpop.f32.mrf.mxu0
        %v415 = vpop.f32.mrf.mxu0
        %v416 = vadd.f32 0.0, %v415
        %v417 = vpop.f32.mrf.mxu0
        %418 = vmatprep.mubr.bf16.mxu0 0
        %419 = vmatmul.mubr.bf16.gmra.mxu0 %v354
        %v420 = vpop.f32.mrf.mxu0
        %v421 = vadd.f32 0.0, %v420
        %v422 = vpop.f32.mrf.mxu0
        %v423 = vpop.f32.mrf.mxu0
        %v424 = vadd.f32 0.0, %v423
        %v425 = vpop.f32.mrf.mxu0
        %426 = vmatprep.mubr.bf16.mxu0 0
        %427 = vmatmul.mubr.bf16.gmra.mxu0 %v357
        %v428 = vpop.f32.mrf.mxu0
        %v429 = vadd.f32 0.0, %v428
        %v430 = vpop.f32.mrf.mxu0
        %v431 = vpop.f32.mrf.mxu0
        %v432 = vadd.f32 0.0, %v431
        %v433 = vpop.f32.mrf.mxu0
        %434 = vmatprep.mubr.bf16.mxu0 0
        %435 = vmatmul.mubr.bf16.gmra.mxu0 %v360
        %v436 = vpop.f32.mrf.mxu0
        %v437 = vadd.f32 0.0, %v436
        %v438 = vpop.f32.mrf.mxu0
        %v439 = vpop.f32.mrf.mxu0
        %v440 = vadd.f32 0.0, %v439
        %v441 = vpop.f32.mrf.mxu0
        %442 = vmatprep.mubr.bf16.mxu0 0
        %443 = vmatmul.mubr.bf16.gmra.mxu0 %v363
        %v444 = vpop.f32.mrf.mxu0
        %v445 = vadd.f32 0.0, %v444
        %v446 = vpop.f32.mrf.mxu0
        %v447 = vpop.f32.mrf.mxu0
        %v448 = vadd.f32 0.0, %v447
        %v449 = vpop.f32.mrf.mxu0
        %450 = vmatprep.mubr.bf16.mxu0 0
        %451 = vmatmul.mubr.bf16.gmra.mxu0 %v366
        %v452 = vpop.f32.mrf.mxu0
        %v453 = vadd.f32 0.0, %v452
        %v454 = vpop.f32.mrf.mxu0
        %v455 = vpop.f32.mrf.mxu0
        %v456 = vadd.f32 0.0, %v455
        %v457 = vpop.f32.mrf.mxu0
        %458 = vmatprep.mubr.bf16.mxu0 0
        %459 = vmatmul.mubr.bf16.gmra.mxu0 %v369
        %v460 = vpop.f32.mrf.mxu0
        %v461 = vadd.f32 0.0, %v460
        %v462 = vpop.f32.mrf.mxu0
        %v463 = vpop.f32.mrf.mxu0
        %v464 = vadd.f32 0.0, %v463
        %v465 = vpop.f32.mrf.mxu0
        %466 = vmatprep.mubr.bf16.mxu0 0
        %467 = vmatmul.mubr.bf16.gmra.mxu0 %v372
        %v468 = vpop.f32.mrf.mxu0
        %v469 = vadd.f32 0.0, %v468
        %v470 = vpop.f32.mrf.mxu0
        %v471 = vpop.f32.mrf.mxu0
        %v472 = vadd.f32 0.0, %v471
        %v473 = vpop.f32.mrf.mxu0
        %474 = vdwg.mxu0
        %v475 = vpack.c.bf16 %v416, %v413
        %v476 = vpack.c.bf16 %v424, %v421
        %v477 = vpack.c.bf16 %v432, %v429
        %v478 = vpack.c.bf16 %v440, %v437
        %v479 = vpack.c.bf16 %v448, %v445
        %v480 = vpack.c.bf16 %v456, %v453
        %v481 = vpack.c.bf16 %v464, %v461
        %v482 = vpack.c.bf16 %v472, %v469
        %v483 = vld [vmem:[%s3] sm:$0xff]
        %v484 = vld [vmem:[%s3 + $0x8] sm:$0xff]
        %v485 = vld [vmem:[%s3 + $0x10] sm:$0xff]
        %v486 = vld [vmem:[%s3 + $0x18] sm:$0xff]
        %v487 = vld [vmem:[%s3 + $0x20] sm:$0xff]
        %v488 = vld [vmem:[%s3 + $0x28] sm:$0xff]
        %v489 = vld [vmem:[%s3 + $0x30] sm:$0xff]
        %v490 = vld [vmem:[%s3 + $0x38] sm:$0xff]
        %v491 = vpack.c.bf16 %v484, %v483
        %v492 = vpack.c.bf16 %v486, %v485
        %v493 = vpack.c.bf16 %v488, %v487
        %v494 = vpack.c.bf16 %v490, %v489
        %vm495 = vcmask 523264
        %v497 = vsel %vm495, %v475, 0
        %v500 = vsel %vm495, %v476, 0
        %v503 = vsel %vm495, %v477, 0
        %v506 = vsel %vm495, %v478, 0
        %v509 = vsel %vm495, %v479, 0
        %v512 = vsel %vm495, %v480, 0
        %v515 = vsel %vm495, %v481, 0
        %v518 = vsel %vm495, %v482, 0
        %520 = vmatprep.subr.bf16.mxu0 0
        %521 = vmatpush1.bf16.msra.mxu0 0
        %522 = vmatprep.subr.bf16.mxu0 0
        %523 = vmatpush1.bf16.msra.mxu0 0
        %524 = vmatprep.subr.bf16.mxu0 0
        %525 = vmatpush1.bf16.msra.mxu0 0
        %526 = vmatprep.subr.bf16.mxu0 0
        %527 = vmatpush1.bf16.msra.mxu0 0
        %528 = vmatprep.subr.bf16.mxu0 0
        %529 = vmatpush1.bf16.msra.mxu0 %v494
        %530 = vmatprep.subr.bf16.mxu0 0
        %531 = vmatpush1.bf16.msra.mxu0 %v493
        %532 = vmatprep.subr.bf16.mxu0 0
        %533 = vmatpush1.bf16.msra.mxu0 %v492
        %534 = vmatprep.subr.bf16.mxu0 0
        %535 = vmatpush1.bf16.msra.mxu0 %v491
        %536 = vmatprep.subr.bf16.mxu0 0
        %537 = vmatpush2.bf16.msra.mxu0 0
        %538 = vmatprep.subr.bf16.mxu0 0
        %539 = vmatpush2.bf16.msra.mxu0 0
        %540 = vmatprep.subr.bf16.mxu0 0
        %541 = vmatpush2.bf16.msra.mxu0 0
        %542 = vmatprep.subr.bf16.mxu0 0
        %543 = vmatpush2.bf16.msra.mxu0 0
        %544 = vmatprep.subr.bf16.mxu0 0
        %545 = vmatpush2.bf16.msra.mxu0 0
        %546 = vmatprep.subr.bf16.mxu0 0
        %547 = vmatpush2.bf16.msra.mxu0 0
        %548 = vmatprep.subr.bf16.mxu0 0
        %549 = vmatpush2.bf16.msra.mxu0 0
        %550 = vmatprep.subr.bf16.mxu0 0
        %551 = vmatpush2.bf16.msra.mxu0 0
        %552 = vmatprep.mubr.bf16.mxu0 0
        %553 = vmatmul.mubr.bf16.gmra.mxu0 %v497
        %v554 = vpop.f32.mrf.mxu0
        %v555 = vadd.f32 0.0, %v554
        %v556 = vpop.f32.mrf.mxu0
        %v557 = vpop.f32.mrf.mxu0
        %v558 = vadd.f32 0.0, %v557
        %v559 = vpop.f32.mrf.mxu0
        %560 = vmatprep.mubr.bf16.mxu0 0
        %561 = vmatmul.mubr.bf16.gmra.mxu0 %v500
        %v562 = vpop.f32.mrf.mxu0
        %v563 = vadd.f32 0.0, %v562
        %v564 = vpop.f32.mrf.mxu0
        %v565 = vpop.f32.mrf.mxu0
        %v566 = vadd.f32 0.0, %v565
        %v567 = vpop.f32.mrf.mxu0
        %568 = vmatprep.mubr.bf16.mxu0 0
        %569 = vmatmul.mubr.bf16.gmra.mxu0 %v503
        %v570 = vpop.f32.mrf.mxu0
        %v571 = vadd.f32 0.0, %v570
        %v572 = vpop.f32.mrf.mxu0
        %v573 = vpop.f32.mrf.mxu0
        %v574 = vadd.f32 0.0, %v573
        %v575 = vpop.f32.mrf.mxu0
        %576 = vmatprep.mubr.bf16.mxu0 0
        %577 = vmatmul.mubr.bf16.gmra.mxu0 %v506
        %v578 = vpop.f32.mrf.mxu0
        %v579 = vadd.f32 0.0, %v578
        %v580 = vpop.f32.mrf.mxu0
        %v581 = vpop.f32.mrf.mxu0
        %v582 = vadd.f32 0.0, %v581
        %v583 = vpop.f32.mrf.mxu0
        %584 = vmatprep.mubr.bf16.mxu0 0
        %585 = vmatmul.mubr.bf16.gmra.mxu0 %v509
        %v586 = vpop.f32.mrf.mxu0
        %v587 = vadd.f32 0.0, %v586
        %v588 = vpop.f32.mrf.mxu0
        %v589 = vpop.f32.mrf.mxu0
        %v590 = vadd.f32 0.0, %v589
        %v591 = vpop.f32.mrf.mxu0
        %592 = vmatprep.mubr.bf16.mxu0 0
        %593 = vmatmul.mubr.bf16.gmra.mxu0 %v512
        %v594 = vpop.f32.mrf.mxu0
        %v595 = vadd.f32 0.0, %v594
        %v596 = vpop.f32.mrf.mxu0
        %v597 = vpop.f32.mrf.mxu0
        %v598 = vadd.f32 0.0, %v597
        %v599 = vpop.f32.mrf.mxu0
        %600 = vmatprep.mubr.bf16.mxu0 0
        %601 = vmatmul.mubr.bf16.gmra.mxu0 %v515
        %v602 = vpop.f32.mrf.mxu0
        %v603 = vadd.f32 0.0, %v602
        %v604 = vpop.f32.mrf.mxu0
        %v605 = vpop.f32.mrf.mxu0
        %v606 = vadd.f32 0.0, %v605
        %v607 = vpop.f32.mrf.mxu0
        %608 = vmatprep.mubr.bf16.mxu0 0
        %609 = vmatmul.mubr.bf16.gmra.mxu0 %v518
        %v610 = vpop.f32.mrf.mxu0
        %v611 = vadd.f32 0.0, %v610
        %v612 = vpop.f32.mrf.mxu0
        %v613 = vpop.f32.mrf.mxu0
        %v614 = vadd.f32 0.0, %v613
        %v615 = vpop.f32.mrf.mxu0
        %616 = vdwg.mxu0
        %617 = vxpose.xlu0.b32.start [1/16] %v555, 128
        %618 = vxpose.xlu0.b32.cont [2/16] %v558, 128
        %619 = vxpose.xlu0.b32.cont [3/16] %v563, 128
        %620 = vxpose.xlu0.b32.cont [4/16] %v566, 128
        %621 = vxpose.xlu0.b32.cont [5/16] %v571, 128
        %622 = vxpose.xlu0.b32.cont [6/16] %v574, 128
        %623 = vxpose.xlu0.b32.cont [7/16] %v579, 128
        %624 = vxpose.xlu0.b32.cont [8/16] %v582, 128
        %625 = vxpose.xlu0.b32.cont [9/16] %v587, 128
        %626 = vxpose.xlu0.b32.cont [10/16] %v590, 128
        %627 = vxpose.xlu0.b32.cont [11/16] %v595, 128
        %628 = vxpose.xlu0.b32.cont [12/16] %v598, 128
        %629 = vxpose.xlu0.b32.cont [13/16] %v603, 128
        %630 = vxpose.xlu0.b32.cont [14/16] %v606, 128
        %631 = vxpose.xlu0.b32.cont [15/16] %v611, 128
        %632 = vxpose.xlu0.b32.end [16/16] %v614, 128
        %v633 = vpop.trf.xlu0
        %v634 = vpop.trf.xlu0
        %v635 = vpop.trf.xlu0
        %v636 = vpop.trf.xlu0
        %v637 = vpop.trf.xlu0
        %v638 = vpop.trf.xlu0
        %v639 = vpop.trf.xlu0
        %v640 = vpop.trf.xlu0
        %v641 = vpop.trf.xlu0
        %v642 = vpop.trf.xlu0
        %v643 = vpop.trf.xlu0
        %v644 = vpop.trf.xlu0
        %v645 = vpop.trf.xlu0
        %v646 = vpop.trf.xlu0
        %v647 = vpop.trf.xlu0
        %v648 = vpop.trf.xlu0
        %650 = vset.pattern.permute.xlu0 8
        %651 = vperm.xlu0 %650, %v555
        %v652 = vpop.permute.xlu0 %651
        %655 = vset.pattern.permute.xlu0 8
        %656 = vperm.xlu0 %655, %v558
        %v657 = vpop.permute.xlu0 %656
        %660 = vset.pattern.permute.xlu0 8
        %661 = vperm.xlu0 %660, %v563
        %v662 = vpop.permute.xlu0 %661
        %665 = vset.pattern.permute.xlu0 8
        %666 = vperm.xlu0 %665, %v566
        %v667 = vpop.permute.xlu0 %666
        %670 = vset.pattern.permute.xlu0 8
        %671 = vperm.xlu0 %670, %v571
        %v672 = vpop.permute.xlu0 %671
        %675 = vset.pattern.permute.xlu0 8
        %676 = vperm.xlu0 %675, %v574
        %v677 = vpop.permute.xlu0 %676
        %680 = vset.pattern.permute.xlu0 8
        %681 = vperm.xlu0 %680, %v579
        %v682 = vpop.permute.xlu0 %681
        %685 = vset.pattern.permute.xlu0 8
        %686 = vperm.xlu0 %685, %v582
        %v687 = vpop.permute.xlu0 %686
        %690 = vset.pattern.permute.xlu0 8
        %691 = vperm.xlu0 %690, %v587
        %v692 = vpop.permute.xlu0 %691
        %695 = vset.pattern.permute.xlu0 8
        %696 = vperm.xlu0 %695, %v590
        %v697 = vpop.permute.xlu0 %696
        %700 = vset.pattern.permute.xlu0 8
        %701 = vperm.xlu0 %700, %v595
        %v702 = vpop.permute.xlu0 %701
        %705 = vset.pattern.permute.xlu0 8
        %706 = vperm.xlu0 %705, %v598
        %v707 = vpop.permute.xlu0 %706
        %710 = vset.pattern.permute.xlu0 8
        %711 = vperm.xlu0 %710, %v603
        %v712 = vpop.permute.xlu0 %711
        %715 = vset.pattern.permute.xlu0 8
        %716 = vperm.xlu0 %715, %v606
        %v717 = vpop.permute.xlu0 %716
        %720 = vset.pattern.permute.xlu0 8
        %721 = vperm.xlu0 %720, %v611
        %v722 = vpop.permute.xlu0 %721
        %725 = vset.pattern.permute.xlu0 8
        %726 = vperm.xlu0 %725, %v614
        %v727 = vpop.permute.xlu0 %726
        %v729 = vlaneseq
        %v730 = vshrl.u32 %v729, 7
        %v731 = vsub.s32 0, %v730
        %v732 = vrot.slane %v633, %v731
        %v733 = vadd.f32 %v652, %v732
        %v734 = vadd.f32 %v657, %v732
        %v735 = vadd.f32 %v662, %v732
        %v736 = vadd.f32 %v667, %v732
        %v737 = vadd.f32 %v672, %v732
        %v738 = vadd.f32 %v677, %v732
        %v739 = vadd.f32 %v682, %v732
        %v740 = vadd.f32 %v687, %v732
        %v741 = vadd.f32 %v692, %v732
        %v742 = vadd.f32 %v697, %v732
        %v743 = vadd.f32 %v702, %v732
        %v744 = vadd.f32 %v707, %v732
        %v745 = vadd.f32 %v712, %v732
        %v746 = vadd.f32 %v717, %v732
        %v747 = vadd.f32 %v722, %v732
        %v748 = vadd.f32 %v727, %v732
        %vm749 = vcmp.ge.f32.partialorder %v733, 0.0
        %vm750 = vcmp.ge.f32.partialorder %v734, 0.0
        %vm751 = vcmp.ge.f32.partialorder %v735, 0.0
        %vm752 = vcmp.ge.f32.partialorder %v736, 0.0
        %vm753 = vcmp.ge.f32.partialorder %v737, 0.0
        %vm754 = vcmp.ge.f32.partialorder %v738, 0.0
        %vm755 = vcmp.ge.f32.partialorder %v739, 0.0
        %vm756 = vcmp.ge.f32.partialorder %v740, 0.0
        %vm757 = vcmp.ge.f32.partialorder %v741, 0.0
        %vm758 = vcmp.ge.f32.partialorder %v742, 0.0
        %vm759 = vcmp.ge.f32.partialorder %v743, 0.0
        %vm760 = vcmp.ge.f32.partialorder %v744, 0.0
        %vm761 = vcmp.ge.f32.partialorder %v745, 0.0
        %vm762 = vcmp.ge.f32.partialorder %v746, 0.0
        %vm763 = vcmp.ge.f32.partialorder %v747, 0.0
        %vm764 = vcmp.ge.f32.partialorder %v748, 0.0
        %v765 = vmul.f32 %v733, 0.2
        %v766 = vmul.f32 %v734, 0.2
        %v767 = vmul.f32 %v735, 0.2
        %v768 = vmul.f32 %v736, 0.2
        %v769 = vmul.f32 %v737, 0.2
        %v770 = vmul.f32 %v738, 0.2
        %v771 = vmul.f32 %v739, 0.2
        %v772 = vmul.f32 %v740, 0.2
        %v773 = vmul.f32 %v741, 0.2
        %v774 = vmul.f32 %v742, 0.2
        %v775 = vmul.f32 %v743, 0.2
        %v776 = vmul.f32 %v744, 0.2
        %v777 = vmul.f32 %v745, 0.2
        %v778 = vmul.f32 %v746, 0.2
        %v779 = vmul.f32 %v747, 0.2
        %v780 = vmul.f32 %v748, 0.2
        %v781 = vsel %vm749, %v733, %v765
        %v782 = vsel %vm750, %v734, %v766
        %v783 = vsel %vm751, %v735, %v767
        %v784 = vsel %vm752, %v736, %v768
        %v785 = vsel %vm753, %v737, %v769
        %v786 = vsel %vm754, %v738, %v770
        %v787 = vsel %vm755, %v739, %v771
        %v788 = vsel %vm756, %v740, %v772
        %v789 = vsel %vm757, %v741, %v773
        %v790 = vsel %vm758, %v742, %v774
        %v791 = vsel %vm759, %v743, %v775
        %v792 = vsel %vm760, %v744, %v776
        %v793 = vsel %vm761, %v745, %v777
        %v794 = vsel %vm762, %v746, %v778
        %v795 = vsel %vm763, %v747, %v779
        %v796 = vsel %vm764, %v748, %v780
        %v797 = vadd.f32 %v781, %v323
        %v798 = vadd.f32 %v782, %v324
        %v799 = vadd.f32 %v783, %v325
        %v800 = vadd.f32 %v784, %v326
        %v801 = vadd.f32 %v785, %v327
        %v802 = vadd.f32 %v786, %v328
        %v803 = vadd.f32 %v787, %v329
        %v804 = vadd.f32 %v788, %v330
        %v805 = vadd.f32 %v789, %v331
        %v806 = vadd.f32 %v790, %v332
        %v807 = vadd.f32 %v791, %v333
        %v808 = vadd.f32 %v792, %v334
        %v809 = vadd.f32 %v793, %v335
        %v810 = vadd.f32 %v794, %v336
        %v811 = vadd.f32 %v795, %v337
        %v812 = vadd.f32 %v796, %v338
        %813 = vmax.xlane.f32.xlu0 %v797
        %v814 = vpop.xlane.xlu0 %813
        %815 = vmax.xlane.f32.xlu0 %v798
        %v816 = vpop.xlane.xlu0 %815
        %817 = vmax.xlane.f32.xlu0 %v799
        %v818 = vpop.xlane.xlu0 %817
        %819 = vmax.xlane.f32.xlu0 %v800
        %v820 = vpop.xlane.xlu0 %819
        %821 = vmax.xlane.f32.xlu0 %v801
        %v822 = vpop.xlane.xlu0 %821
        %823 = vmax.xlane.f32.xlu0 %v802
        %v824 = vpop.xlane.xlu0 %823
        %825 = vmax.xlane.f32.xlu0 %v803
        %v826 = vpop.xlane.xlu0 %825
        %827 = vmax.xlane.f32.xlu0 %v804
        %v828 = vpop.xlane.xlu0 %827
        %829 = vmax.xlane.f32.xlu0 %v805
        %v830 = vpop.xlane.xlu0 %829
        %831 = vmax.xlane.f32.xlu0 %v806
        %v832 = vpop.xlane.xlu0 %831
        %833 = vmax.xlane.f32.xlu0 %v807
        %v834 = vpop.xlane.xlu0 %833
        %835 = vmax.xlane.f32.xlu0 %v808
        %v836 = vpop.xlane.xlu0 %835
        %837 = vmax.xlane.f32.xlu0 %v809
        %v838 = vpop.xlane.xlu0 %837
        %839 = vmax.xlane.f32.xlu0 %v810
        %v840 = vpop.xlane.xlu0 %839
        %841 = vmax.xlane.f32.xlu0 %v811
        %v842 = vpop.xlane.xlu0 %841
        %843 = vmax.xlane.f32.xlu0 %v812
        %v844 = vpop.xlane.xlu0 %843
        %v845 = vsub.f32 %v797, %v814
        %v846 = vsub.f32 %v798, %v816
        %v847 = vsub.f32 %v799, %v818
        %v848 = vsub.f32 %v800, %v820
        %v849 = vsub.f32 %v801, %v822
        %v850 = vsub.f32 %v802, %v824
        %v851 = vsub.f32 %v803, %v826
        %v852 = vsub.f32 %v804, %v828
        %v853 = vsub.f32 %v805, %v830
        %v854 = vsub.f32 %v806, %v832
        %v855 = vsub.f32 %v807, %v834
        %v856 = vsub.f32 %v808, %v836
        %v857 = vsub.f32 %v809, %v838
        %v858 = vsub.f32 %v810, %v840
        %v859 = vsub.f32 %v811, %v842
        %v860 = vsub.f32 %v812, %v844
        %v861 = vmul.f32 %v845, 1.442695
        %v862 = vpow.pop %v861
        %v863 = vmul.f32 %v846, 1.442695
        %v864 = vpow.pop %v863
        %v865 = vmul.f32 %v847, 1.442695
        %v866 = vpow.pop %v865
        %v867 = vmul.f32 %v848, 1.442695
        %v868 = vpow.pop %v867
        %v869 = vmul.f32 %v849, 1.442695
        %v870 = vpow.pop %v869
        %v871 = vmul.f32 %v850, 1.442695
        %v872 = vpow.pop %v871
        %v873 = vmul.f32 %v851, 1.442695
        %v874 = vpow.pop %v873
        %v875 = vmul.f32 %v852, 1.442695
        %v876 = vpow.pop %v875
        %v877 = vmul.f32 %v853, 1.442695
        %v878 = vpow.pop %v877
        %v879 = vmul.f32 %v854, 1.442695
        %v880 = vpow.pop %v879
        %v881 = vmul.f32 %v855, 1.442695
        %v882 = vpow.pop %v881
        %v883 = vmul.f32 %v856, 1.442695
        %v884 = vpow.pop %v883
        %v885 = vmul.f32 %v857, 1.442695
        %v886 = vpow.pop %v885
        %v887 = vmul.f32 %v858, 1.442695
        %v888 = vpow.pop %v887
        %v889 = vmul.f32 %v859, 1.442695
        %v890 = vpow.pop %v889
        %v891 = vmul.f32 %v860, 1.442695
        %v892 = vpow.pop %v891
        %893 = vadd.xlane.f32.xlu0 %v862
        %v894 = vpop.xlane.xlu0 %893
        %895 = vadd.xlane.f32.xlu0 %v864
        %v896 = vpop.xlane.xlu0 %895
        %897 = vadd.xlane.f32.xlu0 %v866
        %v898 = vpop.xlane.xlu0 %897
        %899 = vadd.xlane.f32.xlu0 %v868
        %v900 = vpop.xlane.xlu0 %899
        %901 = vadd.xlane.f32.xlu0 %v870
        %v902 = vpop.xlane.xlu0 %901
        %903 = vadd.xlane.f32.xlu0 %v872
        %v904 = vpop.xlane.xlu0 %903
        %905 = vadd.xlane.f32.xlu0 %v874
        %v906 = vpop.xlane.xlu0 %905
        %907 = vadd.xlane.f32.xlu0 %v876
        %v908 = vpop.xlane.xlu0 %907
        %909 = vadd.xlane.f32.xlu0 %v878
        %v910 = vpop.xlane.xlu0 %909
        %911 = vadd.xlane.f32.xlu0 %v880
        %v912 = vpop.xlane.xlu0 %911
        %913 = vadd.xlane.f32.xlu0 %v882
        %v914 = vpop.xlane.xlu0 %913
        %915 = vadd.xlane.f32.xlu0 %v884
        %v916 = vpop.xlane.xlu0 %915
        %917 = vadd.xlane.f32.xlu0 %v886
        %v918 = vpop.xlane.xlu0 %917
        %919 = vadd.xlane.f32.xlu0 %v888
        %v920 = vpop.xlane.xlu0 %919
        %921 = vadd.xlane.f32.xlu0 %v890
        %v922 = vpop.xlane.xlu0 %921
        %923 = vadd.xlane.f32.xlu0 %v892
        %v924 = vpop.xlane.xlu0 %923
        %v925 = vrcp.pop %v894
        %v926 = vmul.f32 %v862, %v925
        %v927 = vrcp.pop %v896
        %v928 = vmul.f32 %v864, %v927
        %v929 = vrcp.pop %v898
        %v930 = vmul.f32 %v866, %v929
        %v931 = vrcp.pop %v900
        %v932 = vmul.f32 %v868, %v931
        %v933 = vrcp.pop %v902
        %v934 = vmul.f32 %v870, %v933
        %v935 = vrcp.pop %v904
        %v936 = vmul.f32 %v872, %v935
        %v937 = vrcp.pop %v906
        %v938 = vmul.f32 %v874, %v937
        %v939 = vrcp.pop %v908
        %v940 = vmul.f32 %v876, %v939
        %v941 = vrcp.pop %v910
        %v942 = vmul.f32 %v878, %v941
        %v943 = vrcp.pop %v912
        %v944 = vmul.f32 %v880, %v943
        %v945 = vrcp.pop %v914
        %v946 = vmul.f32 %v882, %v945
        %v947 = vrcp.pop %v916
        %v948 = vmul.f32 %v884, %v947
        %v949 = vrcp.pop %v918
        %v950 = vmul.f32 %v886, %v949
        %v951 = vrcp.pop %v920
        %v952 = vmul.f32 %v888, %v951
        %v953 = vrcp.pop %v922
        %v954 = vmul.f32 %v890, %v953
        %v955 = vrcp.pop %v924
        %v956 = vmul.f32 %v892, %v955
        %v957 = vpack.c.bf16 %v928, %v926
        %v958 = vpack.c.bf16 %v932, %v930
        %v959 = vpack.c.bf16 %v936, %v934
        %v960 = vpack.c.bf16 %v940, %v938
        %v961 = vpack.c.bf16 %v944, %v942
        %v962 = vpack.c.bf16 %v948, %v946
        %v963 = vpack.c.bf16 %v952, %v950
        %v964 = vpack.c.bf16 %v956, %v954
        %965 = vmatprep.subr.bf16.mxu0 0
        %966 = vmatpush1.bf16.msra.mxu0 %v482
        %967 = vmatprep.subr.bf16.mxu0 0
        %968 = vmatpush1.bf16.msra.mxu0 %v481
        %969 = vmatprep.subr.bf16.mxu0 0
        %970 = vmatpush1.bf16.msra.mxu0 %v480
        %971 = vmatprep.subr.bf16.mxu0 0
        %972 = vmatpush1.bf16.msra.mxu0 %v479
        %973 = vmatprep.subr.bf16.mxu0 0
        %974 = vmatpush1.bf16.msra.mxu0 %v478
        %975 = vmatprep.subr.bf16.mxu0 0
        %976 = vmatpush1.bf16.msra.mxu0 %v477
        %977 = vmatprep.subr.bf16.mxu0 0
        %978 = vmatpush1.bf16.msra.mxu0 %v476
        %979 = vmatprep.subr.bf16.mxu0 0
        %980 = vmatpush1.bf16.msra.mxu0 %v475
        %981 = vmatprep.subr.bf16.mxu0 0
        %982 = vmatpush2.bf16.msra.mxu0 0
        %983 = vmatprep.subr.bf16.mxu0 0
        %984 = vmatpush2.bf16.msra.mxu0 0
        %985 = vmatprep.subr.bf16.mxu0 0
        %986 = vmatpush2.bf16.msra.mxu0 0
        %987 = vmatprep.subr.bf16.mxu0 0
        %988 = vmatpush2.bf16.msra.mxu0 0
        %989 = vmatprep.subr.bf16.mxu0 0
        %990 = vmatpush2.bf16.msra.mxu0 0
        %991 = vmatprep.subr.bf16.mxu0 0
        %992 = vmatpush2.bf16.msra.mxu0 0
        %993 = vmatprep.subr.bf16.mxu0 0
        %994 = vmatpush2.bf16.msra.mxu0 0
        %995 = vmatprep.subr.bf16.mxu0 0
        %996 = vmatpush2.bf16.msra.mxu0 0
        %997 = vmatprep.mubr.bf16.mxu0 0
        %998 = vmatmul.mubr.bf16.gmra.mxu0 %v957
        %v999 = vpop.f32.mrf.mxu0
        %v1000 = vadd.f32 0.0, %v999
        %v1001 = vpop.f32.mrf.mxu0
        %v1002 = vpop.f32.mrf.mxu0
        %v1003 = vadd.f32 0.0, %v1002
        %v1004 = vpop.f32.mrf.mxu0
        %1005 = vmatprep.mubr.bf16.mxu0 0
        %1006 = vmatmul.mubr.bf16.gmra.mxu0 %v958
        %v1007 = vpop.f32.mrf.mxu0
        %v1008 = vadd.f32 0.0, %v1007
        %v1009 = vpop.f32.mrf.mxu0
        %v1010 = vpop.f32.mrf.mxu0
        %v1011 = vadd.f32 0.0, %v1010
        %v1012 = vpop.f32.mrf.mxu0
        %1013 = vmatprep.mubr.bf16.mxu0 0
        %1014 = vmatmul.mubr.bf16.gmra.mxu0 %v959
        %v1015 = vpop.f32.mrf.mxu0
        %v1016 = vadd.f32 0.0, %v1015
        %v1017 = vpop.f32.mrf.mxu0
        %v1018 = vpop.f32.mrf.mxu0
        %v1019 = vadd.f32 0.0, %v1018
        %v1020 = vpop.f32.mrf.mxu0
        %1021 = vmatprep.mubr.bf16.mxu0 0
        %1022 = vmatmul.mubr.bf16.gmra.mxu0 %v960
        %v1023 = vpop.f32.mrf.mxu0
        %v1024 = vadd.f32 0.0, %v1023
        %v1025 = vpop.f32.mrf.mxu0
        %v1026 = vpop.f32.mrf.mxu0
        %v1027 = vadd.f32 0.0, %v1026
        %v1028 = vpop.f32.mrf.mxu0
        %1029 = vmatprep.mubr.bf16.mxu0 0
        %1030 = vmatmul.mubr.bf16.gmra.mxu0 %v961
        %v1031 = vpop.f32.mrf.mxu0
        %v1032 = vadd.f32 0.0, %v1031
        %v1033 = vpop.f32.mrf.mxu0
        %v1034 = vpop.f32.mrf.mxu0
        %v1035 = vadd.f32 0.0, %v1034
        %v1036 = vpop.f32.mrf.mxu0
        %1037 = vmatprep.mubr.bf16.mxu0 0
        %1038 = vmatmul.mubr.bf16.gmra.mxu0 %v962
        %v1039 = vpop.f32.mrf.mxu0
        %v1040 = vadd.f32 0.0, %v1039
        %v1041 = vpop.f32.mrf.mxu0
        %v1042 = vpop.f32.mrf.mxu0
        %v1043 = vadd.f32 0.0, %v1042
        %v1044 = vpop.f32.mrf.mxu0
        %1045 = vmatprep.mubr.bf16.mxu0 0
        %1046 = vmatmul.mubr.bf16.gmra.mxu0 %v963
        %v1047 = vpop.f32.mrf.mxu0
        %v1048 = vadd.f32 0.0, %v1047
        %v1049 = vpop.f32.mrf.mxu0
        %v1050 = vpop.f32.mrf.mxu0
        %v1051 = vadd.f32 0.0, %v1050
        %v1052 = vpop.f32.mrf.mxu0
        %1053 = vmatprep.mubr.bf16.mxu0 0
        %1054 = vmatmul.mubr.bf16.gmra.mxu0 %v964
        %v1055 = vpop.f32.mrf.mxu0
        %v1056 = vadd.f32 0.0, %v1055
        %v1057 = vpop.f32.mrf.mxu0
        %v1058 = vpop.f32.mrf.mxu0
        %v1059 = vadd.f32 0.0, %v1058
        %v1060 = vpop.f32.mrf.mxu0
        %1061 = vdwg.mxu0
        %vm1062 = vcmask 64512
        %1063 = vst.msk [vmem:[#allocation2] sm:$0xff] %vm1062, %v1000
        %1064 = vst.msk [vmem:[#allocation2 + $0x8] sm:$0xff] %vm1062, %v1003
        %1065 = vst.msk [vmem:[#allocation2 + $0x10] sm:$0xff] %vm1062, %v1008
        %1066 = vst.msk [vmem:[#allocation2 + $0x18] sm:$0xff] %vm1062, %v1011
        %1067 = vst.msk [vmem:[#allocation2 + $0x20] sm:$0xff] %vm1062, %v1016
        %1068 = vst.msk [vmem:[#allocation2 + $0x28] sm:$0xff] %vm1062, %v1019
        %1069 = vst.msk [vmem:[#allocation2 + $0x30] sm:$0xff] %vm1062, %v1024
        %1070 = vst.msk [vmem:[#allocation2 + $0x38] sm:$0xff] %vm1062, %v1027
        %1071 = vst.msk [vmem:[#allocation2 + $0x40] sm:$0xff] %vm1062, %v1032
        %1072 = vst.msk [vmem:[#allocation2 + $0x48] sm:$0xff] %vm1062, %v1035
        %1073 = vst.msk [vmem:[#allocation2 + $0x50] sm:$0xff] %vm1062, %v1040
        %1074 = vst.msk [vmem:[#allocation2 + $0x58] sm:$0xff] %vm1062, %v1043
        %1075 = vst.msk [vmem:[#allocation2 + $0x60] sm:$0xff] %vm1062, %v1048
        %1076 = vst.msk [vmem:[#allocation2 + $0x68] sm:$0xff] %vm1062, %v1051
        %1077 = vst.msk [vmem:[#allocation2 + $0x70] sm:$0xff] %vm1062, %v1056
        %1078 = vst.msk [vmem:[#allocation2 + $0x78] sm:$0xff] %vm1062, %v1059
        %1079 = vset.pattern.permute.xlu0 9
        %1080 = vperm.xlu0 %1079, %v555
        %v1081 = vpop.permute.xlu0 %1080
        %1083 = vset.pattern.permute.xlu0 9
        %1084 = vperm.xlu0 %1083, %v558
        %v1085 = vpop.permute.xlu0 %1084
        %1087 = vset.pattern.permute.xlu0 9
        %1088 = vperm.xlu0 %1087, %v563
        %v1089 = vpop.permute.xlu0 %1088
        %1091 = vset.pattern.permute.xlu0 9
        %1092 = vperm.xlu0 %1091, %v566
        %v1093 = vpop.permute.xlu0 %1092
        %1095 = vset.pattern.permute.xlu0 9
        %1096 = vperm.xlu0 %1095, %v571
        %v1097 = vpop.permute.xlu0 %1096
        %1099 = vset.pattern.permute.xlu0 9
        %1100 = vperm.xlu0 %1099, %v574
        %v1101 = vpop.permute.xlu0 %1100
        %1103 = vset.pattern.permute.xlu0 9
        %1104 = vperm.xlu0 %1103, %v579
        %v1105 = vpop.permute.xlu0 %1104
        %1107 = vset.pattern.permute.xlu0 9
        %1108 = vperm.xlu0 %1107, %v582
        %v1109 = vpop.permute.xlu0 %1108
        %1111 = vset.pattern.permute.xlu0 9
        %1112 = vperm.xlu0 %1111, %v587
        %v1113 = vpop.permute.xlu0 %1112
        %1115 = vset.pattern.permute.xlu0 9
        %1116 = vperm.xlu0 %1115, %v590
        %v1117 = vpop.permute.xlu0 %1116
        %1119 = vset.pattern.permute.xlu0 9
        %1120 = vperm.xlu0 %1119, %v595
        %v1121 = vpop.permute.xlu0 %1120
        %1123 = vset.pattern.permute.xlu0 9
        %1124 = vperm.xlu0 %1123, %v598
        %v1125 = vpop.permute.xlu0 %1124
        %1127 = vset.pattern.permute.xlu0 9
        %1128 = vperm.xlu0 %1127, %v603
        %v1129 = vpop.permute.xlu0 %1128
        %1131 = vset.pattern.permute.xlu0 9
        %1132 = vperm.xlu0 %1131, %v606
        %v1133 = vpop.permute.xlu0 %1132
        %1135 = vset.pattern.permute.xlu0 9
        %1136 = vperm.xlu0 %1135, %v611
        %v1137 = vpop.permute.xlu0 %1136
        %1139 = vset.pattern.permute.xlu0 9
        %1140 = vperm.xlu0 %1139, %v614
        %v1141 = vpop.permute.xlu0 %1140
        %v1143 = vlaneseq
        %v1144 = vshrl.u32 %v1143, 7
        %v1145 = vsub.s32 1, %v1144
        %v1146 = vrot.slane %v633, %v1145
        %v1147 = vadd.f32 %v1081, %v1146
        %v1148 = vadd.f32 %v1085, %v1146
        %v1149 = vadd.f32 %v1089, %v1146
        %v1150 = vadd.f32 %v1093, %v1146
        %v1151 = vadd.f32 %v1097, %v1146
        %v1152 = vadd.f32 %v1101, %v1146
        %v1153 = vadd.f32 %v1105, %v1146
        %v1154 = vadd.f32 %v1109, %v1146
        %v1155 = vadd.f32 %v1113, %v1146
        %v1156 = vadd.f32 %v1117, %v1146
        %v1157 = vadd.f32 %v1121, %v1146
        %v1158 = vadd.f32 %v1125, %v1146
        %v1159 = vadd.f32 %v1129, %v1146
        %v1160 = vadd.f32 %v1133, %v1146
        %v1161 = vadd.f32 %v1137, %v1146
        %v1162 = vadd.f32 %v1141, %v1146
        %vm1163 = vcmp.ge.f32.partialorder %v1147, 0.0
        %vm1164 = vcmp.ge.f32.partialorder %v1148, 0.0
        %vm1165 = vcmp.ge.f32.partialorder %v1149, 0.0
        %vm1166 = vcmp.ge.f32.partialorder %v1150, 0.0
        %vm1167 = vcmp.ge.f32.partialorder %v1151, 0.0
        %vm1168 = vcmp.ge.f32.partialorder %v1152, 0.0
        %vm1169 = vcmp.ge.f32.partialorder %v1153, 0.0
        %vm1170 = vcmp.ge.f32.partialorder %v1154, 0.0
        %vm1171 = vcmp.ge.f32.partialorder %v1155, 0.0
        %vm1172 = vcmp.ge.f32.partialorder %v1156, 0.0
        %vm1173 = vcmp.ge.f32.partialorder %v1157, 0.0
        %vm1174 = vcmp.ge.f32.partialorder %v1158, 0.0
        %vm1175 = vcmp.ge.f32.partialorder %v1159, 0.0
        %vm1176 = vcmp.ge.f32.partialorder %v1160, 0.0
        %vm1177 = vcmp.ge.f32.partialorder %v1161, 0.0
        %vm1178 = vcmp.ge.f32.partialorder %v1162, 0.0
        %v1179 = vmul.f32 %v1147, 0.2
        %v1180 = vmul.f32 %v1148, 0.2
        %v1181 = vmul.f32 %v1149, 0.2
        %v1182 = vmul.f32 %v1150, 0.2
        %v1183 = vmul.f32 %v1151, 0.2
        %v1184 = vmul.f32 %v1152, 0.2
        %v1185 = vmul.f32 %v1153, 0.2
        %v1186 = vmul.f32 %v1154, 0.2
        %v1187 = vmul.f32 %v1155, 0.2
        %v1188 = vmul.f32 %v1156, 0.2
        %v1189 = vmul.f32 %v1157, 0.2
        %v1190 = vmul.f32 %v1158, 0.2
        %v1191 = vmul.f32 %v1159, 0.2
        %v1192 = vmul.f32 %v1160, 0.2
        %v1193 = vmul.f32 %v1161, 0.2
        %v1194 = vmul.f32 %v1162, 0.2
        %v1195 = vsel %vm1163, %v1147, %v1179
        %v1196 = vsel %vm1164, %v1148, %v1180
        %v1197 = vsel %vm1165, %v1149, %v1181
        %v1198 = vsel %vm1166, %v1150, %v1182
        %v1199 = vsel %vm1167, %v1151, %v1183
        %v1200 = vsel %vm1168, %v1152, %v1184
        %v1201 = vsel %vm1169, %v1153, %v1185
        %v1202 = vsel %vm1170, %v1154, %v1186
        %v1203 = vsel %vm1171, %v1155, %v1187
        %v1204 = vsel %vm1172, %v1156, %v1188
        %v1205 = vsel %vm1173, %v1157, %v1189
        %v1206 = vsel %vm1174, %v1158, %v1190
        %v1207 = vsel %vm1175, %v1159, %v1191
        %v1208 = vsel %vm1176, %v1160, %v1192
        %v1209 = vsel %vm1177, %v1161, %v1193
        %v1210 = vsel %vm1178, %v1162, %v1194
        %v1211 = vadd.f32 %v1195, %v323
        %v1212 = vadd.f32 %v1196, %v324
        %v1213 = vadd.f32 %v1197, %v325
        %v1214 = vadd.f32 %v1198, %v326
        %v1215 = vadd.f32 %v1199, %v327
        %v1216 = vadd.f32 %v1200, %v328
        %v1217 = vadd.f32 %v1201, %v329
        %v1218 = vadd.f32 %v1202, %v330
        %v1219 = vadd.f32 %v1203, %v331
        %v1220 = vadd.f32 %v1204, %v332
        %v1221 = vadd.f32 %v1205, %v333
        %v1222 = vadd.f32 %v1206, %v334
        %v1223 = vadd.f32 %v1207, %v335
        %v1224 = vadd.f32 %v1208, %v336
        %v1225 = vadd.f32 %v1209, %v337
        %v1226 = vadd.f32 %v1210, %v338
        %1227 = vmax.xlane.f32.xlu0 %v1211
        %v1228 = vpop.xlane.xlu0 %1227
        %1229 = vmax.xlane.f32.xlu0 %v1212
        %v1230 = vpop.xlane.xlu0 %1229
        %1231 = vmax.xlane.f32.xlu0 %v1213
        %v1232 = vpop.xlane.xlu0 %1231
        %1233 = vmax.xlane.f32.xlu0 %v1214
        %v1234 = vpop.xlane.xlu0 %1233
        %1235 = vmax.xlane.f32.xlu0 %v1215
        %v1236 = vpop.xlane.xlu0 %1235
        %1237 = vmax.xlane.f32.xlu0 %v1216
        %v1238 = vpop.xlane.xlu0 %1237
        %1239 = vmax.xlane.f32.xlu0 %v1217
        %v1240 = vpop.xlane.xlu0 %1239
        %1241 = vmax.xlane.f32.xlu0 %v1218
        %v1242 = vpop.xlane.xlu0 %1241
        %1243 = vmax.xlane.f32.xlu0 %v1219
        %v1244 = vpop.xlane.xlu0 %1243
        %1245 = vmax.xlane.f32.xlu0 %v1220
        %v1246 = vpop.xlane.xlu0 %1245
        %1247 = vmax.xlane.f32.xlu0 %v1221
        %v1248 = vpop.xlane.xlu0 %1247
        %1249 = vmax.xlane.f32.xlu0 %v1222
        %v1250 = vpop.xlane.xlu0 %1249
        %1251 = vmax.xlane.f32.xlu0 %v1223
        %v1252 = vpop.xlane.xlu0 %1251
        %1253 = vmax.xlane.f32.xlu0 %v1224
        %v1254 = vpop.xlane.xlu0 %1253
        %1255 = vmax.xlane.f32.xlu0 %v1225
        %v1256 = vpop.xlane.xlu0 %1255
        %1257 = vmax.xlane.f32.xlu0 %v1226
        %v1258 = vpop.xlane.xlu0 %1257
        %v1259 = vsub.f32 %v1211, %v1228
        %v1260 = vsub.f32 %v1212, %v1230
        %v1261 = vsub.f32 %v1213, %v1232
        %v1262 = vsub.f32 %v1214, %v1234
        %v1263 = vsub.f32 %v1215, %v1236
        %v1264 = vsub.f32 %v1216, %v1238
        %v1265 = vsub.f32 %v1217, %v1240
        %v1266 = vsub.f32 %v1218, %v1242
        %v1267 = vsub.f32 %v1219, %v1244
        %v1268 = vsub.f32 %v1220, %v1246
        %v1269 = vsub.f32 %v1221, %v1248
        %v1270 = vsub.f32 %v1222, %v1250
        %v1271 = vsub.f32 %v1223, %v1252
        %v1272 = vsub.f32 %v1224, %v1254
        %v1273 = vsub.f32 %v1225, %v1256
        %v1274 = vsub.f32 %v1226, %v1258
        %v1275 = vmul.f32 %v1259, 1.442695
        %v1276 = vpow.pop %v1275
        %v1277 = vmul.f32 %v1260, 1.442695
        %v1278 = vpow.pop %v1277
        %v1279 = vmul.f32 %v1261, 1.442695
        %v1280 = vpow.pop %v1279
        %v1281 = vmul.f32 %v1262, 1.442695
        %v1282 = vpow.pop %v1281
        %v1283 = vmul.f32 %v1263, 1.442695
        %v1284 = vpow.pop %v1283
        %v1285 = vmul.f32 %v1264, 1.442695
        %v1286 = vpow.pop %v1285
        %v1287 = vmul.f32 %v1265, 1.442695
        %v1288 = vpow.pop %v1287
        %v1289 = vmul.f32 %v1266, 1.442695
        %v1290 = vpow.pop %v1289
        %v1291 = vmul.f32 %v1267, 1.442695
        %v1292 = vpow.pop %v1291
        %v1293 = vmul.f32 %v1268, 1.442695
        %v1294 = vpow.pop %v1293
        %v1295 = vmul.f32 %v1269, 1.442695
        %v1296 = vpow.pop %v1295
        %v1297 = vmul.f32 %v1270, 1.442695
        %v1298 = vpow.pop %v1297
        %v1299 = vmul.f32 %v1271, 1.442695
        %v1300 = vpow.pop %v1299
        %v1301 = vmul.f32 %v1272, 1.442695
        %v1302 = vpow.pop %v1301
        %v1303 = vmul.f32 %v1273, 1.442695
        %v1304 = vpow.pop %v1303
        %v1305 = vmul.f32 %v1274, 1.442695
        %v1306 = vpow.pop %v1305
        %1307 = vadd.xlane.f32.xlu0 %v1276
        %v1308 = vpop.xlane.xlu0 %1307
        %1309 = vadd.xlane.f32.xlu0 %v1278
        %v1310 = vpop.xlane.xlu0 %1309
        %1311 = vadd.xlane.f32.xlu0 %v1280
        %v1312 = vpop.xlane.xlu0 %1311
        %1313 = vadd.xlane.f32.xlu0 %v1282
        %v1314 = vpop.xlane.xlu0 %1313
        %1315 = vadd.xlane.f32.xlu0 %v1284
        %v1316 = vpop.xlane.xlu0 %1315
        %1317 = vadd.xlane.f32.xlu0 %v1286
        %v1318 = vpop.xlane.xlu0 %1317
        %1319 = vadd.xlane.f32.xlu0 %v1288
        %v1320 = vpop.xlane.xlu0 %1319
        %1321 = vadd.xlane.f32.xlu0 %v1290
        %v1322 = vpop.xlane.xlu0 %1321
        %1323 = vadd.xlane.f32.xlu0 %v1292
        %v1324 = vpop.xlane.xlu0 %1323
        %1325 = vadd.xlane.f32.xlu0 %v1294
        %v1326 = vpop.xlane.xlu0 %1325
        %1327 = vadd.xlane.f32.xlu0 %v1296
        %v1328 = vpop.xlane.xlu0 %1327
        %1329 = vadd.xlane.f32.xlu0 %v1298
        %v1330 = vpop.xlane.xlu0 %1329
        %1331 = vadd.xlane.f32.xlu0 %v1300
        %v1332 = vpop.xlane.xlu0 %1331
        %1333 = vadd.xlane.f32.xlu0 %v1302
        %v1334 = vpop.xlane.xlu0 %1333
        %1335 = vadd.xlane.f32.xlu0 %v1304
        %v1336 = vpop.xlane.xlu0 %1335
        %1337 = vadd.xlane.f32.xlu0 %v1306
        %v1338 = vpop.xlane.xlu0 %1337
        %v1339 = vrcp.pop %v1308
        %v1340 = vmul.f32 %v1276, %v1339
        %v1341 = vrcp.pop %v1310
        %v1342 = vmul.f32 %v1278, %v1341
        %v1343 = vrcp.pop %v1312
        %v1344 = vmul.f32 %v1280, %v1343
        %v1345 = vrcp.pop %v1314
        %v1346 = vmul.f32 %v1282, %v1345
        %v1347 = vrcp.pop %v1316
        %v1348 = vmul.f32 %v1284, %v1347
        %v1349 = vrcp.pop %v1318
        %v1350 = vmul.f32 %v1286, %v1349
        %v1351 = vrcp.pop %v1320
        %v1352 = vmul.f32 %v1288, %v1351
        %v1353 = vrcp.pop %v1322
        %v1354 = vmul.f32 %v1290, %v1353
        %v1355 = vrcp.pop %v1324
        %v1356 = vmul.f32 %v1292, %v1355
        %v1357 = vrcp.pop %v1326
        %v1358 = vmul.f32 %v1294, %v1357
        %v1359 = vrcp.pop %v1328
        %v1360 = vmul.f32 %v1296, %v1359
        %v1361 = vrcp.pop %v1330
        %v1362 = vmul.f32 %v1298, %v1361
        %v1363 = vrcp.pop %v1332
        %v1364 = vmul.f32 %v1300, %v1363
        %v1365 = vrcp.pop %v1334
        %v1366 = vmul.f32 %v1302, %v1365
        %v1367 = vrcp.pop %v1336
        %v1368 = vmul.f32 %v1304, %v1367
        %v1369 = vrcp.pop %v1338
        %v1370 = vmul.f32 %v1306, %v1369
        %v1371 = vpack.c.bf16 %v1342, %v1340
        %v1372 = vpack.c.bf16 %v1346, %v1344
        %v1373 = vpack.c.bf16 %v1350, %v1348
        %v1374 = vpack.c.bf16 %v1354, %v1352
        %v1375 = vpack.c.bf16 %v1358, %v1356
        %v1376 = vpack.c.bf16 %v1362, %v1360
        %v1377 = vpack.c.bf16 %v1366, %v1364
        %v1378 = vpack.c.bf16 %v1370, %v1368
        %1387 = vrot.lane.b32.xlu0 %v475, 120
        %v1388 = vpop.permute.xlu0 %1387
        %1389 = vrot.lane.b32.xlu0 %v476, 120
        %v1390 = vpop.permute.xlu0 %1389
        %1391 = vrot.lane.b32.xlu0 %v477, 120
        %v1392 = vpop.permute.xlu0 %1391
        %1393 = vrot.lane.b32.xlu0 %v478, 120
        %v1394 = vpop.permute.xlu0 %1393
        %1395 = vrot.lane.b32.xlu0 %v479, 120
        %v1396 = vpop.permute.xlu0 %1395
        %1397 = vrot.lane.b32.xlu0 %v480, 120
        %v1398 = vpop.permute.xlu0 %1397
        %1399 = vrot.lane.b32.xlu0 %v481, 120
        %v1400 = vpop.permute.xlu0 %1399
        %1401 = vrot.lane.b32.xlu0 %v482, 120
        %v1402 = vpop.permute.xlu0 %1401
        %1411 = vmatprep.subr.bf16.mxu0 0
        %1412 = vmatpush1.bf16.msra.mxu0 %v1402
        %1413 = vmatprep.subr.bf16.mxu0 0
        %1414 = vmatpush1.bf16.msra.mxu0 %v1400
        %1415 = vmatprep.subr.bf16.mxu0 0
        %1416 = vmatpush1.bf16.msra.mxu0 %v1398
        %1417 = vmatprep.subr.bf16.mxu0 0
        %1418 = vmatpush1.bf16.msra.mxu0 %v1396
        %1419 = vmatprep.subr.bf16.mxu0 0
        %1420 = vmatpush1.bf16.msra.mxu0 %v1394
        %1421 = vmatprep.subr.bf16.mxu0 0
        %1422 = vmatpush1.bf16.msra.mxu0 %v1392
        %1423 = vmatprep.subr.bf16.mxu0 0
        %1424 = vmatpush1.bf16.msra.mxu0 %v1390
        %1425 = vmatprep.subr.bf16.mxu0 0
        %1426 = vmatpush1.bf16.msra.mxu0 %v1388
        %1427 = vmatprep.subr.bf16.mxu0 0
        %1428 = vmatpush2.bf16.msra.mxu0 0
        %1429 = vmatprep.subr.bf16.mxu0 0
        %1430 = vmatpush2.bf16.msra.mxu0 0
        %1431 = vmatprep.subr.bf16.mxu0 0
        %1432 = vmatpush2.bf16.msra.mxu0 0
        %1433 = vmatprep.subr.bf16.mxu0 0
        %1434 = vmatpush2.bf16.msra.mxu0 0
        %1435 = vmatprep.subr.bf16.mxu0 0
        %1436 = vmatpush2.bf16.msra.mxu0 0
        %1437 = vmatprep.subr.bf16.mxu0 0
        %1438 = vmatpush2.bf16.msra.mxu0 0
        %1439 = vmatprep.subr.bf16.mxu0 0
        %1440 = vmatpush2.bf16.msra.mxu0 0
        %1441 = vmatprep.subr.bf16.mxu0 0
        %1442 = vmatpush2.bf16.msra.mxu0 0
        %1443 = vmatprep.mubr.bf16.mxu0 0
        %1444 = vmatmul.mubr.bf16.gmra.mxu0 %v1371
        %v1445 = vpop.f32.mrf.mxu0
        %v1446 = vadd.f32 0.0, %v1445
        %v1447 = vpop.f32.mrf.mxu0
        %v1448 = vpop.f32.mrf.mxu0
        %v1449 = vadd.f32 0.0, %v1448
        %v1450 = vpop.f32.mrf.mxu0
        %1451 = vmatprep.mubr.bf16.mxu0 0
        %1452 = vmatmul.mubr.bf16.gmra.mxu0 %v1372
        %v1453 = vpop.f32.mrf.mxu0
        %v1454 = vadd.f32 0.0, %v1453
        %v1455 = vpop.f32.mrf.mxu0
        %v1456 = vpop.f32.mrf.mxu0
        %v1457 = vadd.f32 0.0, %v1456
        %v1458 = vpop.f32.mrf.mxu0
        %1459 = vmatprep.mubr.bf16.mxu0 0
        %1460 = vmatmul.mubr.bf16.gmra.mxu0 %v1373
        %v1461 = vpop.f32.mrf.mxu0
        %v1462 = vadd.f32 0.0, %v1461
        %v1463 = vpop.f32.mrf.mxu0
        %v1464 = vpop.f32.mrf.mxu0
        %v1465 = vadd.f32 0.0, %v1464
        %v1466 = vpop.f32.mrf.mxu0
        %1467 = vmatprep.mubr.bf16.mxu0 0
        %1468 = vmatmul.mubr.bf16.gmra.mxu0 %v1374
        %v1469 = vpop.f32.mrf.mxu0
        %v1470 = vadd.f32 0.0, %v1469
        %v1471 = vpop.f32.mrf.mxu0
        %v1472 = vpop.f32.mrf.mxu0
        %v1473 = vadd.f32 0.0, %v1472
        %v1474 = vpop.f32.mrf.mxu0
        %1475 = vmatprep.mubr.bf16.mxu0 0
        %1476 = vmatmul.mubr.bf16.gmra.mxu0 %v1375
        %v1477 = vpop.f32.mrf.mxu0
        %v1478 = vadd.f32 0.0, %v1477
        %v1479 = vpop.f32.mrf.mxu0
        %v1480 = vpop.f32.mrf.mxu0
        %v1481 = vadd.f32 0.0, %v1480
        %v1482 = vpop.f32.mrf.mxu0
        %1483 = vmatprep.mubr.bf16.mxu0 0
        %1484 = vmatmul.mubr.bf16.gmra.mxu0 %v1376
        %v1485 = vpop.f32.mrf.mxu0
        %v1486 = vadd.f32 0.0, %v1485
        %v1487 = vpop.f32.mrf.mxu0
        %v1488 = vpop.f32.mrf.mxu0
        %v1489 = vadd.f32 0.0, %v1488
        %v1490 = vpop.f32.mrf.mxu0
        %1491 = vmatprep.mubr.bf16.mxu0 0
        %1492 = vmatmul.mubr.bf16.gmra.mxu0 %v1377
        %v1493 = vpop.f32.mrf.mxu0
        %v1494 = vadd.f32 0.0, %v1493
        %v1495 = vpop.f32.mrf.mxu0
        %v1496 = vpop.f32.mrf.mxu0
        %v1497 = vadd.f32 0.0, %v1496
        %v1498 = vpop.f32.mrf.mxu0
        %1499 = vmatprep.mubr.bf16.mxu0 0
        %1500 = vmatmul.mubr.bf16.gmra.mxu0 %v1378
        %v1501 = vpop.f32.mrf.mxu0
        %v1502 = vadd.f32 0.0, %v1501
        %v1503 = vpop.f32.mrf.mxu0
        %v1504 = vpop.f32.mrf.mxu0
        %v1505 = vadd.f32 0.0, %v1504
        %v1506 = vpop.f32.mrf.mxu0
        %1507 = vdwg.mxu0
        %1524 = vrot.lane.b32.xlu0 %v1446, 8
        %v1525 = vpop.permute.xlu0 %1524
        %1526 = vrot.lane.b32.xlu0 %v1449, 8
        %v1527 = vpop.permute.xlu0 %1526
        %1528 = vrot.lane.b32.xlu0 %v1454, 8
        %v1529 = vpop.permute.xlu0 %1528
        %1530 = vrot.lane.b32.xlu0 %v1457, 8
        %v1531 = vpop.permute.xlu0 %1530
        %1532 = vrot.lane.b32.xlu0 %v1462, 8
        %v1533 = vpop.permute.xlu0 %1532
        %1534 = vrot.lane.b32.xlu0 %v1465, 8
        %v1535 = vpop.permute.xlu0 %1534
        %1536 = vrot.lane.b32.xlu0 %v1470, 8
        %v1537 = vpop.permute.xlu0 %1536
        %1538 = vrot.lane.b32.xlu0 %v1473, 8
        %v1539 = vpop.permute.xlu0 %1538
        %1540 = vrot.lane.b32.xlu0 %v1478, 8
        %v1541 = vpop.permute.xlu0 %1540
        %1542 = vrot.lane.b32.xlu0 %v1481, 8
        %v1543 = vpop.permute.xlu0 %1542
        %1544 = vrot.lane.b32.xlu0 %v1486, 8
        %v1545 = vpop.permute.xlu0 %1544
        %1546 = vrot.lane.b32.xlu0 %v1489, 8
        %v1547 = vpop.permute.xlu0 %1546
        %1548 = vrot.lane.b32.xlu0 %v1494, 8
        %v1549 = vpop.permute.xlu0 %1548
        %1550 = vrot.lane.b32.xlu0 %v1497, 8
        %v1551 = vpop.permute.xlu0 %1550
        %1552 = vrot.lane.b32.xlu0 %v1502, 8
        %v1553 = vpop.permute.xlu0 %1552
        %1554 = vrot.lane.b32.xlu0 %v1505, 8
        %v1555 = vpop.permute.xlu0 %1554
        %vm1572 = vcmask 130112
        %1573 = vst.msk [vmem:[#allocation2] sm:$0xff] %vm1572, %v1525
        %1574 = vst.msk [vmem:[#allocation2 + $0x8] sm:$0xff] %vm1572, %v1527
        %1575 = vst.msk [vmem:[#allocation2 + $0x10] sm:$0xff] %vm1572, %v1529
        %1576 = vst.msk [vmem:[#allocation2 + $0x18] sm:$0xff] %vm1572, %v1531
        %1577 = vst.msk [vmem:[#allocation2 + $0x20] sm:$0xff] %vm1572, %v1533
        %1578 = vst.msk [vmem:[#allocation2 + $0x28] sm:$0xff] %vm1572, %v1535
        %1579 = vst.msk [vmem:[#allocation2 + $0x30] sm:$0xff] %vm1572, %v1537
        %1580 = vst.msk [vmem:[#allocation2 + $0x38] sm:$0xff] %vm1572, %v1539
        %1581 = vst.msk [vmem:[#allocation2 + $0x40] sm:$0xff] %vm1572, %v1541
        %1582 = vst.msk [vmem:[#allocation2 + $0x48] sm:$0xff] %vm1572, %v1543
        %1583 = vst.msk [vmem:[#allocation2 + $0x50] sm:$0xff] %vm1572, %v1545
        %1584 = vst.msk [vmem:[#allocation2 + $0x58] sm:$0xff] %vm1572, %v1547
        %1585 = vst.msk [vmem:[#allocation2 + $0x60] sm:$0xff] %vm1572, %v1549
        %1586 = vst.msk [vmem:[#allocation2 + $0x68] sm:$0xff] %vm1572, %v1551
        %1587 = vst.msk [vmem:[#allocation2 + $0x70] sm:$0xff] %vm1572, %v1553
        %1588 = vst.msk [vmem:[#allocation2 + $0x78] sm:$0xff] %vm1572, %v1555
        %1589 = vset.pattern.permute.xlu0 10
        %1590 = vperm.xlu0 %1589, %v555
        %v1591 = vpop.permute.xlu0 %1590
        %1593 = vset.pattern.permute.xlu0 10
        %1594 = vperm.xlu0 %1593, %v558
        %v1595 = vpop.permute.xlu0 %1594
        %1597 = vset.pattern.permute.xlu0 10
        %1598 = vperm.xlu0 %1597, %v563
        %v1599 = vpop.permute.xlu0 %1598
        %1601 = vset.pattern.permute.xlu0 10
        %1602 = vperm.xlu0 %1601, %v566
        %v1603 = vpop.permute.xlu0 %1602
        %1605 = vset.pattern.permute.xlu0 10
        %1606 = vperm.xlu0 %1605, %v571
        %v1607 = vpop.permute.xlu0 %1606
        %1609 = vset.pattern.permute.xlu0 10
        %1610 = vperm.xlu0 %1609, %v574
        %v1611 = vpop.permute.xlu0 %1610
        %1613 = vset.pattern.permute.xlu0 10
        %1614 = vperm.xlu0 %1613, %v579
        %v1615 = vpop.permute.xlu0 %1614
        %1617 = vset.pattern.permute.xlu0 10
        %1618 = vperm.xlu0 %1617, %v582
        %v1619 = vpop.permute.xlu0 %1618
        %1621 = vset.pattern.permute.xlu0 10
        %1622 = vperm.xlu0 %1621, %v587
        %v1623 = vpop.permute.xlu0 %1622
        %1625 = vset.pattern.permute.xlu0 10
        %1626 = vperm.xlu0 %1625, %v590
        %v1627 = vpop.permute.xlu0 %1626
        %1629 = vset.pattern.permute.xlu0 10
        %1630 = vperm.xlu0 %1629, %v595
        %v1631 = vpop.permute.xlu0 %1630
        %1633 = vset.pattern.permute.xlu0 10
        %1634 = vperm.xlu0 %1633, %v598
        %v1635 = vpop.permute.xlu0 %1634
        %1637 = vset.pattern.permute.xlu0 10
        %1638 = vperm.xlu0 %1637, %v603
        %v1639 = vpop.permute.xlu0 %1638
        %1641 = vset.pattern.permute.xlu0 10
        %1642 = vperm.xlu0 %1641, %v606
        %v1643 = vpop.permute.xlu0 %1642
        %1645 = vset.pattern.permute.xlu0 10
        %1646 = vperm.xlu0 %1645, %v611
        %v1647 = vpop.permute.xlu0 %1646
        %1649 = vset.pattern.permute.xlu0 10
        %1650 = vperm.xlu0 %1649, %v614
        %v1651 = vpop.permute.xlu0 %1650
        %v1653 = vlaneseq
        %v1654 = vshrl.u32 %v1653, 7
        %v1655 = vsub.s32 2, %v1654
        %v1656 = vrot.slane %v633, %v1655
        %v1657 = vadd.f32 %v1591, %v1656
        %v1658 = vadd.f32 %v1595, %v1656
        %v1659 = vadd.f32 %v1599, %v1656
        %v1660 = vadd.f32 %v1603, %v1656
        %v1661 = vadd.f32 %v1607, %v1656
        %v1662 = vadd.f32 %v1611, %v1656
        %v1663 = vadd.f32 %v1615, %v1656
        %v1664 = vadd.f32 %v1619, %v1656
        %v1665 = vadd.f32 %v1623, %v1656
        %v1666 = vadd.f32 %v1627, %v1656
        %v1667 = vadd.f32 %v1631, %v1656
        %v1668 = vadd.f32 %v1635, %v1656
        %v1669 = vadd.f32 %v1639, %v1656
        %v1670 = vadd.f32 %v1643, %v1656
        %v1671 = vadd.f32 %v1647, %v1656
        %v1672 = vadd.f32 %v1651, %v1656
        %vm1673 = vcmp.ge.f32.partialorder %v1657, 0.0
        %vm1674 = vcmp.ge.f32.partialorder %v1658, 0.0
        %vm1675 = vcmp.ge.f32.partialorder %v1659, 0.0
        %vm1676 = vcmp.ge.f32.partialorder %v1660, 0.0
        %vm1677 = vcmp.ge.f32.partialorder %v1661, 0.0
        %vm1678 = vcmp.ge.f32.partialorder %v1662, 0.0
        %vm1679 = vcmp.ge.f32.partialorder %v1663, 0.0
        %vm1680 = vcmp.ge.f32.partialorder %v1664, 0.0
        %vm1681 = vcmp.ge.f32.partialorder %v1665, 0.0
        %vm1682 = vcmp.ge.f32.partialorder %v1666, 0.0
        %vm1683 = vcmp.ge.f32.partialorder %v1667, 0.0
        %vm1684 = vcmp.ge.f32.partialorder %v1668, 0.0
        %vm1685 = vcmp.ge.f32.partialorder %v1669, 0.0
        %vm1686 = vcmp.ge.f32.partialorder %v1670, 0.0
        %vm1687 = vcmp.ge.f32.partialorder %v1671, 0.0
        %vm1688 = vcmp.ge.f32.partialorder %v1672, 0.0
        %v1689 = vmul.f32 %v1657, 0.2
        %v1690 = vmul.f32 %v1658, 0.2
        %v1691 = vmul.f32 %v1659, 0.2
        %v1692 = vmul.f32 %v1660, 0.2
        %v1693 = vmul.f32 %v1661, 0.2
        %v1694 = vmul.f32 %v1662, 0.2
        %v1695 = vmul.f32 %v1663, 0.2
        %v1696 = vmul.f32 %v1664, 0.2
        %v1697 = vmul.f32 %v1665, 0.2
        %v1698 = vmul.f32 %v1666, 0.2
        %v1699 = vmul.f32 %v1667, 0.2
        %v1700 = vmul.f32 %v1668, 0.2
        %v1701 = vmul.f32 %v1669, 0.2
        %v1702 = vmul.f32 %v1670, 0.2
        %v1703 = vmul.f32 %v1671, 0.2
        %v1704 = vmul.f32 %v1672, 0.2
        %v1705 = vsel %vm1673, %v1657, %v1689
        %v1706 = vsel %vm1674, %v1658, %v1690
        %v1707 = vsel %vm1675, %v1659, %v1691
        %v1708 = vsel %vm1676, %v1660, %v1692
        %v1709 = vsel %vm1677, %v1661, %v1693
        %v1710 = vsel %vm1678, %v1662, %v1694
        %v1711 = vsel %vm1679, %v1663, %v1695
        %v1712 = vsel %vm1680, %v1664, %v1696
        %v1713 = vsel %vm1681, %v1665, %v1697
        %v1714 = vsel %vm1682, %v1666, %v1698
        %v1715 = vsel %vm1683, %v1667, %v1699
        %v1716 = vsel %vm1684, %v1668, %v1700
        %v1717 = vsel %vm1685, %v1669, %v1701
        %v1718 = vsel %vm1686, %v1670, %v1702
        %v1719 = vsel %vm1687, %v1671, %v1703
        %v1720 = vsel %vm1688, %v1672, %v1704
        %v1721 = vadd.f32 %v1705, %v323
        %v1722 = vadd.f32 %v1706, %v324
        %v1723 = vadd.f32 %v1707, %v325
        %v1724 = vadd.f32 %v1708, %v326
        %v1725 = vadd.f32 %v1709, %v327
        %v1726 = vadd.f32 %v1710, %v328
        %v1727 = vadd.f32 %v1711, %v329
        %v1728 = vadd.f32 %v1712, %v330
        %v1729 = vadd.f32 %v1713, %v331
        %v1730 = vadd.f32 %v1714, %v332
        %v1731 = vadd.f32 %v1715, %v333
        %v1732 = vadd.f32 %v1716, %v334
        %v1733 = vadd.f32 %v1717, %v335
        %v1734 = vadd.f32 %v1718, %v336
        %v1735 = vadd.f32 %v1719, %v337
        %v1736 = vadd.f32 %v1720, %v338
        %1737 = vmax.xlane.f32.xlu0 %v1721
        %v1738 = vpop.xlane.xlu0 %1737
        %1739 = vmax.xlane.f32.xlu0 %v1722
        %v1740 = vpop.xlane.xlu0 %1739
        %1741 = vmax.xlane.f32.xlu0 %v1723
        %v1742 = vpop.xlane.xlu0 %1741
        %1743 = vmax.xlane.f32.xlu0 %v1724
        %v1744 = vpop.xlane.xlu0 %1743
        %1745 = vmax.xlane.f32.xlu0 %v1725
        %v1746 = vpop.xlane.xlu0 %1745
        %1747 = vmax.xlane.f32.xlu0 %v1726
        %v1748 = vpop.xlane.xlu0 %1747
        %1749 = vmax.xlane.f32.xlu0 %v1727
        %v1750 = vpop.xlane.xlu0 %1749
        %1751 = vmax.xlane.f32.xlu0 %v1728
        %v1752 = vpop.xlane.xlu0 %1751
        %1753 = vmax.xlane.f32.xlu0 %v1729
        %v1754 = vpop.xlane.xlu0 %1753
        %1755 = vmax.xlane.f32.xlu0 %v1730
        %v1756 = vpop.xlane.xlu0 %1755
        %1757 = vmax.xlane.f32.xlu0 %v1731
        %v1758 = vpop.xlane.xlu0 %1757
        %1759 = vmax.xlane.f32.xlu0 %v1732
        %v1760 = vpop.xlane.xlu0 %1759
        %1761 = vmax.xlane.f32.xlu0 %v1733
        %v1762 = vpop.xlane.xlu0 %1761
        %1763 = vmax.xlane.f32.xlu0 %v1734
        %v1764 = vpop.xlane.xlu0 %1763
        %1765 = vmax.xlane.f32.xlu0 %v1735
        %v1766 = vpop.xlane.xlu0 %1765
        %1767 = vmax.xlane.f32.xlu0 %v1736
        %v1768 = vpop.xlane.xlu0 %1767
        %v1769 = vsub.f32 %v1721, %v1738
        %v1770 = vsub.f32 %v1722, %v1740
        %v1771 = vsub.f32 %v1723, %v1742
        %v1772 = vsub.f32 %v1724, %v1744
        %v1773 = vsub.f32 %v1725, %v1746
        %v1774 = vsub.f32 %v1726, %v1748
        %v1775 = vsub.f32 %v1727, %v1750
        %v1776 = vsub.f32 %v1728, %v1752
        %v1777 = vsub.f32 %v1729, %v1754
        %v1778 = vsub.f32 %v1730, %v1756
        %v1779 = vsub.f32 %v1731, %v1758
        %v1780 = vsub.f32 %v1732, %v1760
        %v1781 = vsub.f32 %v1733, %v1762
        %v1782 = vsub.f32 %v1734, %v1764
        %v1783 = vsub.f32 %v1735, %v1766
        %v1784 = vsub.f32 %v1736, %v1768
        %v1785 = vmul.f32 %v1769, 1.442695
        %v1786 = vpow.pop %v1785
        %v1787 = vmul.f32 %v1770, 1.442695
        %v1788 = vpow.pop %v1787
        %v1789 = vmul.f32 %v1771, 1.442695
        %v1790 = vpow.pop %v1789
        %v1791 = vmul.f32 %v1772, 1.442695
        %v1792 = vpow.pop %v1791
        %v1793 = vmul.f32 %v1773, 1.442695
        %v1794 = vpow.pop %v1793
        %v1795 = vmul.f32 %v1774, 1.442695
        %v1796 = vpow.pop %v1795
        %v1797 = vmul.f32 %v1775, 1.442695
        %v1798 = vpow.pop %v1797
        %v1799 = vmul.f32 %v1776, 1.442695
        %v1800 = vpow.pop %v1799
        %v1801 = vmul.f32 %v1777, 1.442695
        %v1802 = vpow.pop %v1801
        %v1803 = vmul.f32 %v1778, 1.442695
        %v1804 = vpow.pop %v1803
        %v1805 = vmul.f32 %v1779, 1.442695
        %v1806 = vpow.pop %v1805
        %v1807 = vmul.f32 %v1780, 1.442695
        %v1808 = vpow.pop %v1807
        %v1809 = vmul.f32 %v1781, 1.442695
        %v1810 = vpow.pop %v1809
        %v1811 = vmul.f32 %v1782, 1.442695
        %v1812 = vpow.pop %v1811
        %v1813 = vmul.f32 %v1783, 1.442695
        %v1814 = vpow.pop %v1813
        %v1815 = vmul.f32 %v1784, 1.442695
        %v1816 = vpow.pop %v1815
        %1817 = vadd.xlane.f32.xlu0 %v1786
        %v1818 = vpop.xlane.xlu0 %1817
        %1819 = vadd.xlane.f32.xlu0 %v1788
        %v1820 = vpop.xlane.xlu0 %1819
        %1821 = vadd.xlane.f32.xlu0 %v1790
        %v1822 = vpop.xlane.xlu0 %1821
        %1823 = vadd.xlane.f32.xlu0 %v1792
        %v1824 = vpop.xlane.xlu0 %1823
        %1825 = vadd.xlane.f32.xlu0 %v1794
        %v1826 = vpop.xlane.xlu0 %1825
        %1827 = vadd.xlane.f32.xlu0 %v1796
        %v1828 = vpop.xlane.xlu0 %1827
        %1829 = vadd.xlane.f32.xlu0 %v1798
        %v1830 = vpop.xlane.xlu0 %1829
        %1831 = vadd.xlane.f32.xlu0 %v1800
        %v1832 = vpop.xlane.xlu0 %1831
        %1833 = vadd.xlane.f32.xlu0 %v1802
        %v1834 = vpop.xlane.xlu0 %1833
        %1835 = vadd.xlane.f32.xlu0 %v1804
        %v1836 = vpop.xlane.xlu0 %1835
        %1837 = vadd.xlane.f32.xlu0 %v1806
        %v1838 = vpop.xlane.xlu0 %1837
        %1839 = vadd.xlane.f32.xlu0 %v1808
        %v1840 = vpop.xlane.xlu0 %1839
        %1841 = vadd.xlane.f32.xlu0 %v1810
        %v1842 = vpop.xlane.xlu0 %1841
        %1843 = vadd.xlane.f32.xlu0 %v1812
        %v1844 = vpop.xlane.xlu0 %1843
        %1845 = vadd.xlane.f32.xlu0 %v1814
        %v1846 = vpop.xlane.xlu0 %1845
        %1847 = vadd.xlane.f32.xlu0 %v1816
        %v1848 = vpop.xlane.xlu0 %1847
        %v1849 = vrcp.pop %v1818
        %v1850 = vmul.f32 %v1786, %v1849
        %v1851 = vrcp.pop %v1820
        %v1852 = vmul.f32 %v1788, %v1851
        %v1853 = vrcp.pop %v1822
        %v1854 = vmul.f32 %v1790, %v1853
        %v1855 = vrcp.pop %v1824
        %v1856 = vmul.f32 %v1792, %v1855
        %v1857 = vrcp.pop %v1826
        %v1858 = vmul.f32 %v1794, %v1857
        %v1859 = vrcp.pop %v1828
        %v1860 = vmul.f32 %v1796, %v1859
        %v1861 = vrcp.pop %v1830
        %v1862 = vmul.f32 %v1798, %v1861
        %v1863 = vrcp.pop %v1832
        %v1864 = vmul.f32 %v1800, %v1863
        %v1865 = vrcp.pop %v1834
        %v1866 = vmul.f32 %v1802, %v1865
        %v1867 = vrcp.pop %v1836
        %v1868 = vmul.f32 %v1804, %v1867
        %v1869 = vrcp.pop %v1838
        %v1870 = vmul.f32 %v1806, %v1869
        %v1871 = vrcp.pop %v1840
        %v1872 = vmul.f32 %v1808, %v1871
        %v1873 = vrcp.pop %v1842
        %v1874 = vmul.f32 %v1810, %v1873
        %v1875 = vrcp.pop %v1844
        %v1876 = vmul.f32 %v1812, %v1875
        %v1877 = vrcp.pop %v1846
        %v1878 = vmul.f32 %v1814, %v1877
        %v1879 = vrcp.pop %v1848
        %v1880 = vmul.f32 %v1816, %v1879
        %v1881 = vpack.c.bf16 %v1852, %v1850
        %v1882 = vpack.c.bf16 %v1856, %v1854
        %v1883 = vpack.c.bf16 %v1860, %v1858
        %v1884 = vpack.c.bf16 %v1864, %v1862
        %v1885 = vpack.c.bf16 %v1868, %v1866
        %v1886 = vpack.c.bf16 %v1872, %v1870
        %v1887 = vpack.c.bf16 %v1876, %v1874
        %v1888 = vpack.c.bf16 %v1880, %v1878
        %1889 = vrot.lane.b32.xlu0 %v475, 112
        %v1890 = vpop.permute.xlu0 %1889
        %1891 = vrot.lane.b32.xlu0 %v476, 112
        %v1892 = vpop.permute.xlu0 %1891
        %1893 = vrot.lane.b32.xlu0 %v477, 112
        %v1894 = vpop.permute.xlu0 %1893
        %1895 = vrot.lane.b32.xlu0 %v478, 112
        %v1896 = vpop.permute.xlu0 %1895
        %1897 = vrot.lane.b32.xlu0 %v479, 112
        %v1898 = vpop.permute.xlu0 %1897
        %1899 = vrot.lane.b32.xlu0 %v480, 112
        %v1900 = vpop.permute.xlu0 %1899
        %1901 = vrot.lane.b32.xlu0 %v481, 112
        %v1902 = vpop.permute.xlu0 %1901
        %1903 = vrot.lane.b32.xlu0 %v482, 112
        %v1904 = vpop.permute.xlu0 %1903
        %1913 = vmatprep.subr.bf16.mxu0 0
        %1914 = vmatpush1.bf16.msra.mxu0 %v1904
        %1915 = vmatprep.subr.bf16.mxu0 0
        %1916 = vmatpush1.bf16.msra.mxu0 %v1902
        %1917 = vmatprep.subr.bf16.mxu0 0
        %1918 = vmatpush1.bf16.msra.mxu0 %v1900
        %1919 = vmatprep.subr.bf16.mxu0 0
        %1920 = vmatpush1.bf16.msra.mxu0 %v1898
        %1921 = vmatprep.subr.bf16.mxu0 0
        %1922 = vmatpush1.bf16.msra.mxu0 %v1896
        %1923 = vmatprep.subr.bf16.mxu0 0
        %1924 = vmatpush1.bf16.msra.mxu0 %v1894
        %1925 = vmatprep.subr.bf16.mxu0 0
        %1926 = vmatpush1.bf16.msra.mxu0 %v1892
        %1927 = vmatprep.subr.bf16.mxu0 0
        %1928 = vmatpush1.bf16.msra.mxu0 %v1890
        %1929 = vmatprep.subr.bf16.mxu0 0
        %1930 = vmatpush2.bf16.msra.mxu0 0
        %1931 = vmatprep.subr.bf16.mxu0 0
        %1932 = vmatpush2.bf16.msra.mxu0 0
        %1933 = vmatprep.subr.bf16.mxu0 0
        %1934 = vmatpush2.bf16.msra.mxu0 0
        %1935 = vmatprep.subr.bf16.mxu0 0
        %1936 = vmatpush2.bf16.msra.mxu0 0
        %1937 = vmatprep.subr.bf16.mxu0 0
        %1938 = vmatpush2.bf16.msra.mxu0 0
        %1939 = vmatprep.subr.bf16.mxu0 0
        %1940 = vmatpush2.bf16.msra.mxu0 0
        %1941 = vmatprep.subr.bf16.mxu0 0
        %1942 = vmatpush2.bf16.msra.mxu0 0
        %1943 = vmatprep.subr.bf16.mxu0 0
        %1944 = vmatpush2.bf16.msra.mxu0 0
        %1945 = vmatprep.mubr.bf16.mxu0 0
        %1946 = vmatmul.mubr.bf16.gmra.mxu0 %v1881
        %v1947 = vpop.f32.mrf.mxu0
        %v1948 = vadd.f32 0.0, %v1947
        %v1949 = vpop.f32.mrf.mxu0
        %v1950 = vpop.f32.mrf.mxu0
        %v1951 = vadd.f32 0.0, %v1950
        %v1952 = vpop.f32.mrf.mxu0
        %1953 = vmatprep.mubr.bf16.mxu0 0
        %1954 = vmatmul.mubr.bf16.gmra.mxu0 %v1882
        %v1955 = vpop.f32.mrf.mxu0
        %v1956 = vadd.f32 0.0, %v1955
        %v1957 = vpop.f32.mrf.mxu0
        %v1958 = vpop.f32.mrf.mxu0
        %v1959 = vadd.f32 0.0, %v1958
        %v1960 = vpop.f32.mrf.mxu0
        %1961 = vmatprep.mubr.bf16.mxu0 0
        %1962 = vmatmul.mubr.bf16.gmra.mxu0 %v1883
        %v1963 = vpop.f32.mrf.mxu0
        %v1964 = vadd.f32 0.0, %v1963
        %v1965 = vpop.f32.mrf.mxu0
        %v1966 = vpop.f32.mrf.mxu0
        %v1967 = vadd.f32 0.0, %v1966
        %v1968 = vpop.f32.mrf.mxu0
        %1969 = vmatprep.mubr.bf16.mxu0 0
        %1970 = vmatmul.mubr.bf16.gmra.mxu0 %v1884
        %v1971 = vpop.f32.mrf.mxu0
        %v1972 = vadd.f32 0.0, %v1971
        %v1973 = vpop.f32.mrf.mxu0
        %v1974 = vpop.f32.mrf.mxu0
        %v1975 = vadd.f32 0.0, %v1974
        %v1976 = vpop.f32.mrf.mxu0
        %1977 = vmatprep.mubr.bf16.mxu0 0
        %1978 = vmatmul.mubr.bf16.gmra.mxu0 %v1885
        %v1979 = vpop.f32.mrf.mxu0
        %v1980 = vadd.f32 0.0, %v1979
        %v1981 = vpop.f32.mrf.mxu0
        %v1982 = vpop.f32.mrf.mxu0
        %v1983 = vadd.f32 0.0, %v1982
        %v1984 = vpop.f32.mrf.mxu0
        %1985 = vmatprep.mubr.bf16.mxu0 0
        %1986 = vmatmul.mubr.bf16.gmra.mxu0 %v1886
        %v1987 = vpop.f32.mrf.mxu0
        %v1988 = vadd.f32 0.0, %v1987
        %v1989 = vpop.f32.mrf.mxu0
        %v1990 = vpop.f32.mrf.mxu0
        %v1991 = vadd.f32 0.0, %v1990
        %v1992 = vpop.f32.mrf.mxu0
        %1993 = vmatprep.mubr.bf16.mxu0 0
        %1994 = vmatmul.mubr.bf16.gmra.mxu0 %v1887
        %v1995 = vpop.f32.mrf.mxu0
        %v1996 = vadd.f32 0.0, %v1995
        %v1997 = vpop.f32.mrf.mxu0
        %v1998 = vpop.f32.mrf.mxu0
        %v1999 = vadd.f32 0.0, %v1998
        %v2000 = vpop.f32.mrf.mxu0
        %2001 = vmatprep.mubr.bf16.mxu0 0
        %2002 = vmatmul.mubr.bf16.gmra.mxu0 %v1888
        %v2003 = vpop.f32.mrf.mxu0
        %v2004 = vadd.f32 0.0, %v2003
        %v2005 = vpop.f32.mrf.mxu0
        %v2006 = vpop.f32.mrf.mxu0
        %v2007 = vadd.f32 0.0, %v2006
        %v2008 = vpop.f32.mrf.mxu0
        %2009 = vdwg.mxu0
        %2026 = vrot.lane.b32.xlu0 %v1948, 16
        %v2027 = vpop.permute.xlu0 %2026
        %2028 = vrot.lane.b32.xlu0 %v1951, 16
        %v2029 = vpop.permute.xlu0 %2028
        %2030 = vrot.lane.b32.xlu0 %v1956, 16
        %v2031 = vpop.permute.xlu0 %2030
        %2032 = vrot.lane.b32.xlu0 %v1959, 16
        %v2033 = vpop.permute.xlu0 %2032
        %2034 = vrot.lane.b32.xlu0 %v1964, 16
        %v2035 = vpop.permute.xlu0 %2034
        %2036 = vrot.lane.b32.xlu0 %v1967, 16
        %v2037 = vpop.permute.xlu0 %2036
        %2038 = vrot.lane.b32.xlu0 %v1972, 16
        %v2039 = vpop.permute.xlu0 %2038
        %2040 = vrot.lane.b32.xlu0 %v1975, 16
        %v2041 = vpop.permute.xlu0 %2040
        %2042 = vrot.lane.b32.xlu0 %v1980, 16
        %v2043 = vpop.permute.xlu0 %2042
        %2044 = vrot.lane.b32.xlu0 %v1983, 16
        %v2045 = vpop.permute.xlu0 %2044
        %2046 = vrot.lane.b32.xlu0 %v1988, 16
        %v2047 = vpop.permute.xlu0 %2046
        %2048 = vrot.lane.b32.xlu0 %v1991, 16
        %v2049 = vpop.permute.xlu0 %2048
        %2050 = vrot.lane.b32.xlu0 %v1996, 16
        %v2051 = vpop.permute.xlu0 %2050
        %2052 = vrot.lane.b32.xlu0 %v1999, 16
        %v2053 = vpop.permute.xlu0 %2052
        %2054 = vrot.lane.b32.xlu0 %v2004, 16
        %v2055 = vpop.permute.xlu0 %2054
        %2056 = vrot.lane.b32.xlu0 %v2007, 16
        %v2057 = vpop.permute.xlu0 %2056
        %vm2074 = vcmask 195712
        %2075 = vst.msk [vmem:[#allocation2] sm:$0xff] %vm2074, %v2027
        %2076 = vst.msk [vmem:[#allocation2 + $0x8] sm:$0xff] %vm2074, %v2029
        %2077 = vst.msk [vmem:[#allocation2 + $0x10] sm:$0xff] %vm2074, %v2031
        %2078 = vst.msk [vmem:[#allocation2 + $0x18] sm:$0xff] %vm2074, %v2033
        %2079 = vst.msk [vmem:[#allocation2 + $0x20] sm:$0xff] %vm2074, %v2035
        %2080 = vst.msk [vmem:[#allocation2 + $0x28] sm:$0xff] %vm2074, %v2037
        %2081 = vst.msk [vmem:[#allocation2 + $0x30] sm:$0xff] %vm2074, %v2039
        %2082 = vst.msk [vmem:[#allocation2 + $0x38] sm:$0xff] %vm2074, %v2041
        %2083 = vst.msk [vmem:[#allocation2 + $0x40] sm:$0xff] %vm2074, %v2043
        %2084 = vst.msk [vmem:[#allocation2 + $0x48] sm:$0xff] %vm2074, %v2045
        %2085 = vst.msk [vmem:[#allocation2 + $0x50] sm:$0xff] %vm2074, %v2047
        %2086 = vst.msk [vmem:[#allocation2 + $0x58] sm:$0xff] %vm2074, %v2049
        %2087 = vst.msk [vmem:[#allocation2 + $0x60] sm:$0xff] %vm2074, %v2051
        %2088 = vst.msk [vmem:[#allocation2 + $0x68] sm:$0xff] %vm2074, %v2053
        %2089 = vst.msk [vmem:[#allocation2 + $0x70] sm:$0xff] %vm2074, %v2055
        %2090 = vst.msk [vmem:[#allocation2 + $0x78] sm:$0xff] %vm2074, %v2057
        %2091 = vset.pattern.permute.xlu0 11
        %2092 = vperm.xlu0 %2091, %v555
        %v2093 = vpop.permute.xlu0 %2092
        %2095 = vset.pattern.permute.xlu0 11
        %2096 = vperm.xlu0 %2095, %v558
        %v2097 = vpop.permute.xlu0 %2096
        %2099 = vset.pattern.permute.xlu0 11
        %2100 = vperm.xlu0 %2099, %v563
        %v2101 = vpop.permute.xlu0 %2100
        %2103 = vset.pattern.permute.xlu0 11
        %2104 = vperm.xlu0 %2103, %v566
        %v2105 = vpop.permute.xlu0 %2104
        %2107 = vset.pattern.permute.xlu0 11
        %2108 = vperm.xlu0 %2107, %v571
        %v2109 = vpop.permute.xlu0 %2108
        %2111 = vset.pattern.permute.xlu0 11
        %2112 = vperm.xlu0 %2111, %v574
        %v2113 = vpop.permute.xlu0 %2112
        %2115 = vset.pattern.permute.xlu0 11
        %2116 = vperm.xlu0 %2115, %v579
        %v2117 = vpop.permute.xlu0 %2116
        %2119 = vset.pattern.permute.xlu0 11
        %2120 = vperm.xlu0 %2119, %v582
        %v2121 = vpop.permute.xlu0 %2120
        %2123 = vset.pattern.permute.xlu0 11
        %2124 = vperm.xlu0 %2123, %v587
        %v2125 = vpop.permute.xlu0 %2124
        %2127 = vset.pattern.permute.xlu0 11
        %2128 = vperm.xlu0 %2127, %v590
        %v2129 = vpop.permute.xlu0 %2128
        %2131 = vset.pattern.permute.xlu0 11
        %2132 = vperm.xlu0 %2131, %v595
        %v2133 = vpop.permute.xlu0 %2132
        %2135 = vset.pattern.permute.xlu0 11
        %2136 = vperm.xlu0 %2135, %v598
        %v2137 = vpop.permute.xlu0 %2136
        %2139 = vset.pattern.permute.xlu0 11
        %2140 = vperm.xlu0 %2139, %v603
        %v2141 = vpop.permute.xlu0 %2140
        %2143 = vset.pattern.permute.xlu0 11
        %2144 = vperm.xlu0 %2143, %v606
        %v2145 = vpop.permute.xlu0 %2144
        %2147 = vset.pattern.permute.xlu0 11
        %2148 = vperm.xlu0 %2147, %v611
        %v2149 = vpop.permute.xlu0 %2148
        %2151 = vset.pattern.permute.xlu0 11
        %2152 = vperm.xlu0 %2151, %v614
        %v2153 = vpop.permute.xlu0 %2152
        %v2155 = vlaneseq
        %v2156 = vshrl.u32 %v2155, 7
        %v2157 = vsub.s32 3, %v2156
        %v2158 = vrot.slane %v633, %v2157
        %v2159 = vadd.f32 %v2093, %v2158
        %v2160 = vadd.f32 %v2097, %v2158
        %v2161 = vadd.f32 %v2101, %v2158
        %v2162 = vadd.f32 %v2105, %v2158
        %v2163 = vadd.f32 %v2109, %v2158
        %v2164 = vadd.f32 %v2113, %v2158
        %v2165 = vadd.f32 %v2117, %v2158
        %v2166 = vadd.f32 %v2121, %v2158
        %v2167 = vadd.f32 %v2125, %v2158
        %v2168 = vadd.f32 %v2129, %v2158
        %v2169 = vadd.f32 %v2133, %v2158
        %v2170 = vadd.f32 %v2137, %v2158
        %v2171 = vadd.f32 %v2141, %v2158
        %v2172 = vadd.f32 %v2145, %v2158
        %v2173 = vadd.f32 %v2149, %v2158
        %v2174 = vadd.f32 %v2153, %v2158
        %vm2175 = vcmp.ge.f32.partialorder %v2159, 0.0
        %vm2176 = vcmp.ge.f32.partialorder %v2160, 0.0
        %vm2177 = vcmp.ge.f32.partialorder %v2161, 0.0
        %vm2178 = vcmp.ge.f32.partialorder %v2162, 0.0
        %vm2179 = vcmp.ge.f32.partialorder %v2163, 0.0
        %vm2180 = vcmp.ge.f32.partialorder %v2164, 0.0
        %vm2181 = vcmp.ge.f32.partialorder %v2165, 0.0
        %vm2182 = vcmp.ge.f32.partialorder %v2166, 0.0
        %vm2183 = vcmp.ge.f32.partialorder %v2167, 0.0
        %vm2184 = vcmp.ge.f32.partialorder %v2168, 0.0
        %vm2185 = vcmp.ge.f32.partialorder %v2169, 0.0
        %vm2186 = vcmp.ge.f32.partialorder %v2170, 0.0
        %vm2187 = vcmp.ge.f32.partialorder %v2171, 0.0
        %vm2188 = vcmp.ge.f32.partialorder %v2172, 0.0
        %vm2189 = vcmp.ge.f32.partialorder %v2173, 0.0
        %vm2190 = vcmp.ge.f32.partialorder %v2174, 0.0
        %v2191 = vmul.f32 %v2159, 0.2
        %v2192 = vmul.f32 %v2160, 0.2
        %v2193 = vmul.f32 %v2161, 0.2
        %v2194 = vmul.f32 %v2162, 0.2
        %v2195 = vmul.f32 %v2163, 0.2
        %v2196 = vmul.f32 %v2164, 0.2
        %v2197 = vmul.f32 %v2165, 0.2
        %v2198 = vmul.f32 %v2166, 0.2
        %v2199 = vmul.f32 %v2167, 0.2
        %v2200 = vmul.f32 %v2168, 0.2
        %v2201 = vmul.f32 %v2169, 0.2
        %v2202 = vmul.f32 %v2170, 0.2
        %v2203 = vmul.f32 %v2171, 0.2
        %v2204 = vmul.f32 %v2172, 0.2
        %v2205 = vmul.f32 %v2173, 0.2
        %v2206 = vmul.f32 %v2174, 0.2
        %v2207 = vsel %vm2175, %v2159, %v2191
        %v2208 = vsel %vm2176, %v2160, %v2192
        %v2209 = vsel %vm2177, %v2161, %v2193
        %v2210 = vsel %vm2178, %v2162, %v2194
        %v2211 = vsel %vm2179, %v2163, %v2195
        %v2212 = vsel %vm2180, %v2164, %v2196
        %v2213 = vsel %vm2181, %v2165, %v2197
        %v2214 = vsel %vm2182, %v2166, %v2198
        %v2215 = vsel %vm2183, %v2167, %v2199
        %v2216 = vsel %vm2184, %v2168, %v2200
        %v2217 = vsel %vm2185, %v2169, %v2201
        %v2218 = vsel %vm2186, %v2170, %v2202
        %v2219 = vsel %vm2187, %v2171, %v2203
        %v2220 = vsel %vm2188, %v2172, %v2204
        %v2221 = vsel %vm2189, %v2173, %v2205
        %v2222 = vsel %vm2190, %v2174, %v2206
        %v2223 = vadd.f32 %v2207, %v323
        %v2224 = vadd.f32 %v2208, %v324
        %v2225 = vadd.f32 %v2209, %v325
        %v2226 = vadd.f32 %v2210, %v326
        %v2227 = vadd.f32 %v2211, %v327
        %v2228 = vadd.f32 %v2212, %v328
        %v2229 = vadd.f32 %v2213, %v329
        %v2230 = vadd.f32 %v2214, %v330
        %v2231 = vadd.f32 %v2215, %v331
        %v2232 = vadd.f32 %v2216, %v332
        %v2233 = vadd.f32 %v2217, %v333
        %v2234 = vadd.f32 %v2218, %v334
        %v2235 = vadd.f32 %v2219, %v335
        %v2236 = vadd.f32 %v2220, %v336
        %v2237 = vadd.f32 %v2221, %v337
        %v2238 = vadd.f32 %v2222, %v338
        %2239 = vmax.xlane.f32.xlu0 %v2223
        %v2240 = vpop.xlane.xlu0 %2239
        %2241 = vmax.xlane.f32.xlu0 %v2224
        %v2242 = vpop.xlane.xlu0 %2241
        %2243 = vmax.xlane.f32.xlu0 %v2225
        %v2244 = vpop.xlane.xlu0 %2243
        %2245 = vmax.xlane.f32.xlu0 %v2226
        %v2246 = vpop.xlane.xlu0 %2245
        %2247 = vmax.xlane.f32.xlu0 %v2227
        %v2248 = vpop.xlane.xlu0 %2247
        %2249 = vmax.xlane.f32.xlu0 %v2228
        %v2250 = vpop.xlane.xlu0 %2249
        %2251 = vmax.xlane.f32.xlu0 %v2229
        %v2252 = vpop.xlane.xlu0 %2251
        %2253 = vmax.xlane.f32.xlu0 %v2230
        %v2254 = vpop.xlane.xlu0 %2253
        %2255 = vmax.xlane.f32.xlu0 %v2231
        %v2256 = vpop.xlane.xlu0 %2255
        %2257 = vmax.xlane.f32.xlu0 %v2232
        %v2258 = vpop.xlane.xlu0 %2257
        %2259 = vmax.xlane.f32.xlu0 %v2233
        %v2260 = vpop.xlane.xlu0 %2259
        %2261 = vmax.xlane.f32.xlu0 %v2234
        %v2262 = vpop.xlane.xlu0 %2261
        %2263 = vmax.xlane.f32.xlu0 %v2235
        %v2264 = vpop.xlane.xlu0 %2263
        %2265 = vmax.xlane.f32.xlu0 %v2236
        %v2266 = vpop.xlane.xlu0 %2265
        %2267 = vmax.xlane.f32.xlu0 %v2237
        %v2268 = vpop.xlane.xlu0 %2267
        %2269 = vmax.xlane.f32.xlu0 %v2238
        %v2270 = vpop.xlane.xlu0 %2269
        %v2271 = vsub.f32 %v2223, %v2240
        %v2272 = vsub.f32 %v2224, %v2242
        %v2273 = vsub.f32 %v2225, %v2244
        %v2274 = vsub.f32 %v2226, %v2246
        %v2275 = vsub.f32 %v2227, %v2248
        %v2276 = vsub.f32 %v2228, %v2250
        %v2277 = vsub.f32 %v2229, %v2252
        %v2278 = vsub.f32 %v2230, %v2254
        %v2279 = vsub.f32 %v2231, %v2256
        %v2280 = vsub.f32 %v2232, %v2258
        %v2281 = vsub.f32 %v2233, %v2260
        %v2282 = vsub.f32 %v2234, %v2262
        %v2283 = vsub.f32 %v2235, %v2264
        %v2284 = vsub.f32 %v2236, %v2266
        %v2285 = vsub.f32 %v2237, %v2268
        %v2286 = vsub.f32 %v2238, %v2270
        %v2287 = vmul.f32 %v2271, 1.442695
        %v2288 = vpow.pop %v2287
        %v2289 = vmul.f32 %v2272, 1.442695
        %v2290 = vpow.pop %v2289
        %v2291 = vmul.f32 %v2273, 1.442695
        %v2292 = vpow.pop %v2291
        %v2293 = vmul.f32 %v2274, 1.442695
        %v2294 = vpow.pop %v2293
        %v2295 = vmul.f32 %v2275, 1.442695
        %v2296 = vpow.pop %v2295
        %v2297 = vmul.f32 %v2276, 1.442695
        %v2298 = vpow.pop %v2297
        %v2299 = vmul.f32 %v2277, 1.442695
        %v2300 = vpow.pop %v2299
        %v2301 = vmul.f32 %v2278, 1.442695
        %v2302 = vpow.pop %v2301
        %v2303 = vmul.f32 %v2279, 1.442695
        %v2304 = vpow.pop %v2303
        %v2305 = vmul.f32 %v2280, 1.442695
        %v2306 = vpow.pop %v2305
        %v2307 = vmul.f32 %v2281, 1.442695
        %v2308 = vpow.pop %v2307
        %v2309 = vmul.f32 %v2282, 1.442695
        %v2310 = vpow.pop %v2309
        %v2311 = vmul.f32 %v2283, 1.442695
        %v2312 = vpow.pop %v2311
        %v2313 = vmul.f32 %v2284, 1.442695
        %v2314 = vpow.pop %v2313
        %v2315 = vmul.f32 %v2285, 1.442695
        %v2316 = vpow.pop %v2315
        %v2317 = vmul.f32 %v2286, 1.442695
        %v2318 = vpow.pop %v2317
        %2319 = vadd.xlane.f32.xlu0 %v2288
        %v2320 = vpop.xlane.xlu0 %2319
        %2321 = vadd.xlane.f32.xlu0 %v2290
        %v2322 = vpop.xlane.xlu0 %2321
        %2323 = vadd.xlane.f32.xlu0 %v2292
        %v2324 = vpop.xlane.xlu0 %2323
        %2325 = vadd.xlane.f32.xlu0 %v2294
        %v2326 = vpop.xlane.xlu0 %2325
        %2327 = vadd.xlane.f32.xlu0 %v2296
        %v2328 = vpop.xlane.xlu0 %2327
        %2329 = vadd.xlane.f32.xlu0 %v2298
        %v2330 = vpop.xlane.xlu0 %2329
        %2331 = vadd.xlane.f32.xlu0 %v2300
        %v2332 = vpop.xlane.xlu0 %2331
        %2333 = vadd.xlane.f32.xlu0 %v2302
        %v2334 = vpop.xlane.xlu0 %2333
        %2335 = vadd.xlane.f32.xlu0 %v2304
        %v2336 = vpop.xlane.xlu0 %2335
        %2337 = vadd.xlane.f32.xlu0 %v2306
        %v2338 = vpop.xlane.xlu0 %2337
        %2339 = vadd.xlane.f32.xlu0 %v2308
        %v2340 = vpop.xlane.xlu0 %2339
        %2341 = vadd.xlane.f32.xlu0 %v2310
        %v2342 = vpop.xlane.xlu0 %2341
        %2343 = vadd.xlane.f32.xlu0 %v2312
        %v2344 = vpop.xlane.xlu0 %2343
        %2345 = vadd.xlane.f32.xlu0 %v2314
        %v2346 = vpop.xlane.xlu0 %2345
        %2347 = vadd.xlane.f32.xlu0 %v2316
        %v2348 = vpop.xlane.xlu0 %2347
        %2349 = vadd.xlane.f32.xlu0 %v2318
        %v2350 = vpop.xlane.xlu0 %2349
        %v2351 = vrcp.pop %v2320
        %v2352 = vmul.f32 %v2288, %v2351
        %v2353 = vrcp.pop %v2322
        %v2354 = vmul.f32 %v2290, %v2353
        %v2355 = vrcp.pop %v2324
        %v2356 = vmul.f32 %v2292, %v2355
        %v2357 = vrcp.pop %v2326
        %v2358 = vmul.f32 %v2294, %v2357
        %v2359 = vrcp.pop %v2328
        %v2360 = vmul.f32 %v2296, %v2359
        %v2361 = vrcp.pop %v2330
        %v2362 = vmul.f32 %v2298, %v2361
        %v2363 = vrcp.pop %v2332
        %v2364 = vmul.f32 %v2300, %v2363
        %v2365 = vrcp.pop %v2334
        %v2366 = vmul.f32 %v2302, %v2365
        %v2367 = vrcp.pop %v2336
        %v2368 = vmul.f32 %v2304, %v2367
        %v2369 = vrcp.pop %v2338
        %v2370 = vmul.f32 %v2306, %v2369
        %v2371 = vrcp.pop %v2340
        %v2372 = vmul.f32 %v2308, %v2371
        %v2373 = vrcp.pop %v2342
        %v2374 = vmul.f32 %v2310, %v2373
        %v2375 = vrcp.pop %v2344
        %v2376 = vmul.f32 %v2312, %v2375
        %v2377 = vrcp.pop %v2346
        %v2378 = vmul.f32 %v2314, %v2377
        %v2379 = vrcp.pop %v2348
        %v2380 = vmul.f32 %v2316, %v2379
        %v2381 = vrcp.pop %v2350
        %v2382 = vmul.f32 %v2318, %v2381
        %v2383 = vpack.c.bf16 %v2354, %v2352
        %v2384 = vpack.c.bf16 %v2358, %v2356
        %v2385 = vpack.c.bf16 %v2362, %v2360
        %v2386 = vpack.c.bf16 %v2366, %v2364
        %v2387 = vpack.c.bf16 %v2370, %v2368
        %v2388 = vpack.c.bf16 %v2374, %v2372
        %v2389 = vpack.c.bf16 %v2378, %v2376
        %v2390 = vpack.c.bf16 %v2382, %v2380
        %2391 = vrot.lane.b32.xlu0 %v475, 104
        %v2392 = vpop.permute.xlu0 %2391
        %2393 = vrot.lane.b32.xlu0 %v476, 104
        %v2394 = vpop.permute.xlu0 %2393
        %2395 = vrot.lane.b32.xlu0 %v477, 104
        %v2396 = vpop.permute.xlu0 %2395
        %2397 = vrot.lane.b32.xlu0 %v478, 104
        %v2398 = vpop.permute.xlu0 %2397
        %2399 = vrot.lane.b32.xlu0 %v479, 104
        %v2400 = vpop.permute.xlu0 %2399
        %2401 = vrot.lane.b32.xlu0 %v480, 104
        %v2402 = vpop.permute.xlu0 %2401
        %2403 = vrot.lane.b32.xlu0 %v481, 104
        %v2404 = vpop.permute.xlu0 %2403
        %2405 = vrot.lane.b32.xlu0 %v482, 104
        %v2406 = vpop.permute.xlu0 %2405
        %2415 = vmatprep.subr.bf16.mxu0 0
        %2416 = vmatpush1.bf16.msra.mxu0 %v2406
        %2417 = vmatprep.subr.bf16.mxu0 0
        %2418 = vmatpush1.bf16.msra.mxu0 %v2404
        %2419 = vmatprep.subr.bf16.mxu0 0
        %2420 = vmatpush1.bf16.msra.mxu0 %v2402
        %2421 = vmatprep.subr.bf16.mxu0 0
        %2422 = vmatpush1.bf16.msra.mxu0 %v2400
        %2423 = vmatprep.subr.bf16.mxu0 0
        %2424 = vmatpush1.bf16.msra.mxu0 %v2398
        %2425 = vmatprep.subr.bf16.mxu0 0
        %2426 = vmatpush1.bf16.msra.mxu0 %v2396
        %2427 = vmatprep.subr.bf16.mxu0 0
        %2428 = vmatpush1.bf16.msra.mxu0 %v2394
        %2429 = vmatprep.subr.bf16.mxu0 0
        %2430 = vmatpush1.bf16.msra.mxu0 %v2392
        %2431 = vmatprep.subr.bf16.mxu0 0
        %2432 = vmatpush2.bf16.msra.mxu0 0
        %2433 = vmatprep.subr.bf16.mxu0 0
        %2434 = vmatpush2.bf16.msra.mxu0 0
        %2435 = vmatprep.subr.bf16.mxu0 0
        %2436 = vmatpush2.bf16.msra.mxu0 0
        %2437 = vmatprep.subr.bf16.mxu0 0
        %2438 = vmatpush2.bf16.msra.mxu0 0
        %2439 = vmatprep.subr.bf16.mxu0 0
        %2440 = vmatpush2.bf16.msra.mxu0 0
        %2441 = vmatprep.subr.bf16.mxu0 0
        %2442 = vmatpush2.bf16.msra.mxu0 0
        %2443 = vmatprep.subr.bf16.mxu0 0
        %2444 = vmatpush2.bf16.msra.mxu0 0
        %2445 = vmatprep.subr.bf16.mxu0 0
        %2446 = vmatpush2.bf16.msra.mxu0 0
        %2447 = vmatprep.mubr.bf16.mxu0 0
        %2448 = vmatmul.mubr.bf16.gmra.mxu0 %v2383
        %v2449 = vpop.f32.mrf.mxu0
        %v2450 = vadd.f32 0.0, %v2449
        %v2451 = vpop.f32.mrf.mxu0
        %v2452 = vpop.f32.mrf.mxu0
        %v2453 = vadd.f32 0.0, %v2452
        %v2454 = vpop.f32.mrf.mxu0
        %2455 = vmatprep.mubr.bf16.mxu0 0
        %2456 = vmatmul.mubr.bf16.gmra.mxu0 %v2384
        %v2457 = vpop.f32.mrf.mxu0
        %v2458 = vadd.f32 0.0, %v2457
        %v2459 = vpop.f32.mrf.mxu0
        %v2460 = vpop.f32.mrf.mxu0
        %v2461 = vadd.f32 0.0, %v2460
        %v2462 = vpop.f32.mrf.mxu0
        %2463 = vmatprep.mubr.bf16.mxu0 0
        %2464 = vmatmul.mubr.bf16.gmra.mxu0 %v2385
        %v2465 = vpop.f32.mrf.mxu0
        %v2466 = vadd.f32 0.0, %v2465
        %v2467 = vpop.f32.mrf.mxu0
        %v2468 = vpop.f32.mrf.mxu0
        %v2469 = vadd.f32 0.0, %v2468
        %v2470 = vpop.f32.mrf.mxu0
        %2471 = vmatprep.mubr.bf16.mxu0 0
        %2472 = vmatmul.mubr.bf16.gmra.mxu0 %v2386
        %v2473 = vpop.f32.mrf.mxu0
        %v2474 = vadd.f32 0.0, %v2473
        %v2475 = vpop.f32.mrf.mxu0
        %v2476 = vpop.f32.mrf.mxu0
        %v2477 = vadd.f32 0.0, %v2476
        %v2478 = vpop.f32.mrf.mxu0
        %2479 = vmatprep.mubr.bf16.mxu0 0
        %2480 = vmatmul.mubr.bf16.gmra.mxu0 %v2387
        %v2481 = vpop.f32.mrf.mxu0
        %v2482 = vadd.f32 0.0, %v2481
        %v2483 = vpop.f32.mrf.mxu0
        %v2484 = vpop.f32.mrf.mxu0
        %v2485 = vadd.f32 0.0, %v2484
        %v2486 = vpop.f32.mrf.mxu0
        %2487 = vmatprep.mubr.bf16.mxu0 0
        %2488 = vmatmul.mubr.bf16.gmra.mxu0 %v2388
        %v2489 = vpop.f32.mrf.mxu0
        %v2490 = vadd.f32 0.0, %v2489
        %v2491 = vpop.f32.mrf.mxu0
        %v2492 = vpop.f32.mrf.mxu0
        %v2493 = vadd.f32 0.0, %v2492
        %v2494 = vpop.f32.mrf.mxu0
        %2495 = vmatprep.mubr.bf16.mxu0 0
        %2496 = vmatmul.mubr.bf16.gmra.mxu0 %v2389
        %v2497 = vpop.f32.mrf.mxu0
        %v2498 = vadd.f32 0.0, %v2497
        %v2499 = vpop.f32.mrf.mxu0
        %v2500 = vpop.f32.mrf.mxu0
        %v2501 = vadd.f32 0.0, %v2500
        %v2502 = vpop.f32.mrf.mxu0
        %2503 = vmatprep.mubr.bf16.mxu0 0
        %2504 = vmatmul.mubr.bf16.gmra.mxu0 %v2390
        %v2505 = vpop.f32.mrf.mxu0
        %v2506 = vadd.f32 0.0, %v2505
        %v2507 = vpop.f32.mrf.mxu0
        %v2508 = vpop.f32.mrf.mxu0
        %v2509 = vadd.f32 0.0, %v2508
        %v2510 = vpop.f32.mrf.mxu0
        %2511 = vdwg.mxu0
        %2528 = vrot.lane.b32.xlu0 %v2450, 24
        %v2529 = vpop.permute.xlu0 %2528
        %2530 = vrot.lane.b32.xlu0 %v2453, 24
        %v2531 = vpop.permute.xlu0 %2530
        %2532 = vrot.lane.b32.xlu0 %v2458, 24
        %v2533 = vpop.permute.xlu0 %2532
        %2534 = vrot.lane.b32.xlu0 %v2461, 24
        %v2535 = vpop.permute.xlu0 %2534
        %2536 = vrot.lane.b32.xlu0 %v2466, 24
        %v2537 = vpop.permute.xlu0 %2536
        %2538 = vrot.lane.b32.xlu0 %v2469, 24
        %v2539 = vpop.permute.xlu0 %2538
        %2540 = vrot.lane.b32.xlu0 %v2474, 24
        %v2541 = vpop.permute.xlu0 %2540
        %2542 = vrot.lane.b32.xlu0 %v2477, 24
        %v2543 = vpop.permute.xlu0 %2542
        %2544 = vrot.lane.b32.xlu0 %v2482, 24
        %v2545 = vpop.permute.xlu0 %2544
        %2546 = vrot.lane.b32.xlu0 %v2485, 24
        %v2547 = vpop.permute.xlu0 %2546
        %2548 = vrot.lane.b32.xlu0 %v2490, 24
        %v2549 = vpop.permute.xlu0 %2548
        %2550 = vrot.lane.b32.xlu0 %v2493, 24
        %v2551 = vpop.permute.xlu0 %2550
        %2552 = vrot.lane.b32.xlu0 %v2498, 24
        %v2553 = vpop.permute.xlu0 %2552
        %2554 = vrot.lane.b32.xlu0 %v2501, 24
        %v2555 = vpop.permute.xlu0 %2554
        %2556 = vrot.lane.b32.xlu0 %v2506, 24
        %v2557 = vpop.permute.xlu0 %2556
        %2558 = vrot.lane.b32.xlu0 %v2509, 24
        %v2559 = vpop.permute.xlu0 %2558
        %vm2576 = vcmask 261312
        %2577 = vst.msk [vmem:[#allocation2] sm:$0xff] %vm2576, %v2529
        %2578 = vst.msk [vmem:[#allocation2 + $0x8] sm:$0xff] %vm2576, %v2531
        %2579 = vst.msk [vmem:[#allocation2 + $0x10] sm:$0xff] %vm2576, %v2533
        %2580 = vst.msk [vmem:[#allocation2 + $0x18] sm:$0xff] %vm2576, %v2535
        %2581 = vst.msk [vmem:[#allocation2 + $0x20] sm:$0xff] %vm2576, %v2537
        %2582 = vst.msk [vmem:[#allocation2 + $0x28] sm:$0xff] %vm2576, %v2539
        %2583 = vst.msk [vmem:[#allocation2 + $0x30] sm:$0xff] %vm2576, %v2541
        %2584 = vst.msk [vmem:[#allocation2 + $0x38] sm:$0xff] %vm2576, %v2543
        %2585 = vst.msk [vmem:[#allocation2 + $0x40] sm:$0xff] %vm2576, %v2545
        %2586 = vst.msk [vmem:[#allocation2 + $0x48] sm:$0xff] %vm2576, %v2547
        %2587 = vst.msk [vmem:[#allocation2 + $0x50] sm:$0xff] %vm2576, %v2549
        %2588 = vst.msk [vmem:[#allocation2 + $0x58] sm:$0xff] %vm2576, %v2551
        %2589 = vst.msk [vmem:[#allocation2 + $0x60] sm:$0xff] %vm2576, %v2553
        %2590 = vst.msk [vmem:[#allocation2 + $0x68] sm:$0xff] %vm2576, %v2555
        %2591 = vst.msk [vmem:[#allocation2 + $0x70] sm:$0xff] %vm2576, %v2557
        %2592 = vst.msk [vmem:[#allocation2 + $0x78] sm:$0xff] %vm2576, %v2559
        %2593 = vset.pattern.permute.xlu0 12
        %2594 = vperm.xlu0 %2593, %v555
        %v2595 = vpop.permute.xlu0 %2594
        %2597 = vset.pattern.permute.xlu0 12
        %2598 = vperm.xlu0 %2597, %v558
        %v2599 = vpop.permute.xlu0 %2598
        %2601 = vset.pattern.permute.xlu0 12
        %2602 = vperm.xlu0 %2601, %v563
        %v2603 = vpop.permute.xlu0 %2602
        %2605 = vset.pattern.permute.xlu0 12
        %2606 = vperm.xlu0 %2605, %v566
        %v2607 = vpop.permute.xlu0 %2606
        %2609 = vset.pattern.permute.xlu0 12
        %2610 = vperm.xlu0 %2609, %v571
        %v2611 = vpop.permute.xlu0 %2610
        %2613 = vset.pattern.permute.xlu0 12
        %2614 = vperm.xlu0 %2613, %v574
        %v2615 = vpop.permute.xlu0 %2614
        %2617 = vset.pattern.permute.xlu0 12
        %2618 = vperm.xlu0 %2617, %v579
        %v2619 = vpop.permute.xlu0 %2618
        %2621 = vset.pattern.permute.xlu0 12
        %2622 = vperm.xlu0 %2621, %v582
        %v2623 = vpop.permute.xlu0 %2622
        %2625 = vset.pattern.permute.xlu0 12
        %2626 = vperm.xlu0 %2625, %v587
        %v2627 = vpop.permute.xlu0 %2626
        %2629 = vset.pattern.permute.xlu0 12
        %2630 = vperm.xlu0 %2629, %v590
        %v2631 = vpop.permute.xlu0 %2630
        %2633 = vset.pattern.permute.xlu0 12
        %2634 = vperm.xlu0 %2633, %v595
        %v2635 = vpop.permute.xlu0 %2634
        %2637 = vset.pattern.permute.xlu0 12
        %2638 = vperm.xlu0 %2637, %v598
        %v2639 = vpop.permute.xlu0 %2638
        %2641 = vset.pattern.permute.xlu0 12
        %2642 = vperm.xlu0 %2641, %v603
        %v2643 = vpop.permute.xlu0 %2642
        %2645 = vset.pattern.permute.xlu0 12
        %2646 = vperm.xlu0 %2645, %v606
        %v2647 = vpop.permute.xlu0 %2646
        %2649 = vset.pattern.permute.xlu0 12
        %2650 = vperm.xlu0 %2649, %v611
        %v2651 = vpop.permute.xlu0 %2650
        %2653 = vset.pattern.permute.xlu0 12
        %2654 = vperm.xlu0 %2653, %v614
        %v2655 = vpop.permute.xlu0 %2654
        %v2657 = vlaneseq
        %v2658 = vshrl.u32 %v2657, 7
        %v2659 = vsub.s32 4, %v2658
        %v2660 = vrot.slane %v633, %v2659
        %v2661 = vadd.f32 %v2595, %v2660
        %v2662 = vadd.f32 %v2599, %v2660
        %v2663 = vadd.f32 %v2603, %v2660
        %v2664 = vadd.f32 %v2607, %v2660
        %v2665 = vadd.f32 %v2611, %v2660
        %v2666 = vadd.f32 %v2615, %v2660
        %v2667 = vadd.f32 %v2619, %v2660
        %v2668 = vadd.f32 %v2623, %v2660
        %v2669 = vadd.f32 %v2627, %v2660
        %v2670 = vadd.f32 %v2631, %v2660
        %v2671 = vadd.f32 %v2635, %v2660
        %v2672 = vadd.f32 %v2639, %v2660
        %v2673 = vadd.f32 %v2643, %v2660
        %v2674 = vadd.f32 %v2647, %v2660
        %v2675 = vadd.f32 %v2651, %v2660
        %v2676 = vadd.f32 %v2655, %v2660
        %vm2677 = vcmp.ge.f32.partialorder %v2661, 0.0
        %vm2678 = vcmp.ge.f32.partialorder %v2662, 0.0
        %vm2679 = vcmp.ge.f32.partialorder %v2663, 0.0
        %vm2680 = vcmp.ge.f32.partialorder %v2664, 0.0
        %vm2681 = vcmp.ge.f32.partialorder %v2665, 0.0
        %vm2682 = vcmp.ge.f32.partialorder %v2666, 0.0
        %vm2683 = vcmp.ge.f32.partialorder %v2667, 0.0
        %vm2684 = vcmp.ge.f32.partialorder %v2668, 0.0
        %vm2685 = vcmp.ge.f32.partialorder %v2669, 0.0
        %vm2686 = vcmp.ge.f32.partialorder %v2670, 0.0
        %vm2687 = vcmp.ge.f32.partialorder %v2671, 0.0
        %vm2688 = vcmp.ge.f32.partialorder %v2672, 0.0
        %vm2689 = vcmp.ge.f32.partialorder %v2673, 0.0
        %vm2690 = vcmp.ge.f32.partialorder %v2674, 0.0
        %vm2691 = vcmp.ge.f32.partialorder %v2675, 0.0
        %vm2692 = vcmp.ge.f32.partialorder %v2676, 0.0
        %v2693 = vmul.f32 %v2661, 0.2
        %v2694 = vmul.f32 %v2662, 0.2
        %v2695 = vmul.f32 %v2663, 0.2
        %v2696 = vmul.f32 %v2664, 0.2
        %v2697 = vmul.f32 %v2665, 0.2
        %v2698 = vmul.f32 %v2666, 0.2
        %v2699 = vmul.f32 %v2667, 0.2
        %v2700 = vmul.f32 %v2668, 0.2
        %v2701 = vmul.f32 %v2669, 0.2
        %v2702 = vmul.f32 %v2670, 0.2
        %v2703 = vmul.f32 %v2671, 0.2
        %v2704 = vmul.f32 %v2672, 0.2
        %v2705 = vmul.f32 %v2673, 0.2
        %v2706 = vmul.f32 %v2674, 0.2
        %v2707 = vmul.f32 %v2675, 0.2
        %v2708 = vmul.f32 %v2676, 0.2
        %v2709 = vsel %vm2677, %v2661, %v2693
        %v2710 = vsel %vm2678, %v2662, %v2694
        %v2711 = vsel %vm2679, %v2663, %v2695
        %v2712 = vsel %vm2680, %v2664, %v2696
        %v2713 = vsel %vm2681, %v2665, %v2697
        %v2714 = vsel %vm2682, %v2666, %v2698
        %v2715 = vsel %vm2683, %v2667, %v2699
        %v2716 = vsel %vm2684, %v2668, %v2700
        %v2717 = vsel %vm2685, %v2669, %v2701
        %v2718 = vsel %vm2686, %v2670, %v2702
        %v2719 = vsel %vm2687, %v2671, %v2703
        %v2720 = vsel %vm2688, %v2672, %v2704
        %v2721 = vsel %vm2689, %v2673, %v2705
        %v2722 = vsel %vm2690, %v2674, %v2706
        %v2723 = vsel %vm2691, %v2675, %v2707
        %v2724 = vsel %vm2692, %v2676, %v2708
        %v2725 = vadd.f32 %v2709, %v323
        %v2726 = vadd.f32 %v2710, %v324
        %v2727 = vadd.f32 %v2711, %v325
        %v2728 = vadd.f32 %v2712, %v326
        %v2729 = vadd.f32 %v2713, %v327
        %v2730 = vadd.f32 %v2714, %v328
        %v2731 = vadd.f32 %v2715, %v329
        %v2732 = vadd.f32 %v2716, %v330
        %v2733 = vadd.f32 %v2717, %v331
        %v2734 = vadd.f32 %v2718, %v332
        %v2735 = vadd.f32 %v2719, %v333
        %v2736 = vadd.f32 %v2720, %v334
        %v2737 = vadd.f32 %v2721, %v335
        %v2738 = vadd.f32 %v2722, %v336
        %v2739 = vadd.f32 %v2723, %v337
        %v2740 = vadd.f32 %v2724, %v338
        %2741 = vmax.xlane.f32.xlu0 %v2725
        %v2742 = vpop.xlane.xlu0 %2741
        %2743 = vmax.xlane.f32.xlu0 %v2726
        %v2744 = vpop.xlane.xlu0 %2743
        %2745 = vmax.xlane.f32.xlu0 %v2727
        %v2746 = vpop.xlane.xlu0 %2745
        %2747 = vmax.xlane.f32.xlu0 %v2728
        %v2748 = vpop.xlane.xlu0 %2747
        %2749 = vmax.xlane.f32.xlu0 %v2729
        %v2750 = vpop.xlane.xlu0 %2749
        %2751 = vmax.xlane.f32.xlu0 %v2730
        %v2752 = vpop.xlane.xlu0 %2751
        %2753 = vmax.xlane.f32.xlu0 %v2731
        %v2754 = vpop.xlane.xlu0 %2753
        %2755 = vmax.xlane.f32.xlu0 %v2732
        %v2756 = vpop.xlane.xlu0 %2755
        %2757 = vmax.xlane.f32.xlu0 %v2733
        %v2758 = vpop.xlane.xlu0 %2757
        %2759 = vmax.xlane.f32.xlu0 %v2734
        %v2760 = vpop.xlane.xlu0 %2759
        %2761 = vmax.xlane.f32.xlu0 %v2735
        %v2762 = vpop.xlane.xlu0 %2761
        %2763 = vmax.xlane.f32.xlu0 %v2736
        %v2764 = vpop.xlane.xlu0 %2763
        %2765 = vmax.xlane.f32.xlu0 %v2737
        %v2766 = vpop.xlane.xlu0 %2765
        %2767 = vmax.xlane.f32.xlu0 %v2738
        %v2768 = vpop.xlane.xlu0 %2767
        %2769 = vmax.xlane.f32.xlu0 %v2739
        %v2770 = vpop.xlane.xlu0 %2769
        %2771 = vmax.xlane.f32.xlu0 %v2740
        %v2772 = vpop.xlane.xlu0 %2771
        %v2773 = vsub.f32 %v2725, %v2742
        %v2774 = vsub.f32 %v2726, %v2744
        %v2775 = vsub.f32 %v2727, %v2746
        %v2776 = vsub.f32 %v2728, %v2748
        %v2777 = vsub.f32 %v2729, %v2750
        %v2778 = vsub.f32 %v2730, %v2752
        %v2779 = vsub.f32 %v2731, %v2754
        %v2780 = vsub.f32 %v2732, %v2756
        %v2781 = vsub.f32 %v2733, %v2758
        %v2782 = vsub.f32 %v2734, %v2760
        %v2783 = vsub.f32 %v2735, %v2762
        %v2784 = vsub.f32 %v2736, %v2764
        %v2785 = vsub.f32 %v2737, %v2766
        %v2786 = vsub.f32 %v2738, %v2768
        %v2787 = vsub.f32 %v2739, %v2770
        %v2788 = vsub.f32 %v2740, %v2772
        %v2789 = vmul.f32 %v2773, 1.442695
        %v2790 = vpow.pop %v2789
        %v2791 = vmul.f32 %v2774, 1.442695
        %v2792 = vpow.pop %v2791
        %v2793 = vmul.f32 %v2775, 1.442695
        %v2794 = vpow.pop %v2793
        %v2795 = vmul.f32 %v2776, 1.442695
        %v2796 = vpow.pop %v2795
        %v2797 = vmul.f32 %v2777, 1.442695
        %v2798 = vpow.pop %v2797
        %v2799 = vmul.f32 %v2778, 1.442695
        %v2800 = vpow.pop %v2799
        %v2801 = vmul.f32 %v2779, 1.442695
        %v2802 = vpow.pop %v2801
        %v2803 = vmul.f32 %v2780, 1.442695
        %v2804 = vpow.pop %v2803
        %v2805 = vmul.f32 %v2781, 1.442695
        %v2806 = vpow.pop %v2805
        %v2807 = vmul.f32 %v2782, 1.442695
        %v2808 = vpow.pop %v2807
        %v2809 = vmul.f32 %v2783, 1.442695
        %v2810 = vpow.pop %v2809
        %v2811 = vmul.f32 %v2784, 1.442695
        %v2812 = vpow.pop %v2811
        %v2813 = vmul.f32 %v2785, 1.442695
        %v2814 = vpow.pop %v2813
        %v2815 = vmul.f32 %v2786, 1.442695
        %v2816 = vpow.pop %v2815
        %v2817 = vmul.f32 %v2787, 1.442695
        %v2818 = vpow.pop %v2817
        %v2819 = vmul.f32 %v2788, 1.442695
        %v2820 = vpow.pop %v2819
        %2821 = vadd.xlane.f32.xlu0 %v2790
        %v2822 = vpop.xlane.xlu0 %2821
        %2823 = vadd.xlane.f32.xlu0 %v2792
        %v2824 = vpop.xlane.xlu0 %2823
        %2825 = vadd.xlane.f32.xlu0 %v2794
        %v2826 = vpop.xlane.xlu0 %2825
        %2827 = vadd.xlane.f32.xlu0 %v2796
        %v2828 = vpop.xlane.xlu0 %2827
        %2829 = vadd.xlane.f32.xlu0 %v2798
        %v2830 = vpop.xlane.xlu0 %2829
        %2831 = vadd.xlane.f32.xlu0 %v2800
        %v2832 = vpop.xlane.xlu0 %2831
        %2833 = vadd.xlane.f32.xlu0 %v2802
        %v2834 = vpop.xlane.xlu0 %2833
        %2835 = vadd.xlane.f32.xlu0 %v2804
        %v2836 = vpop.xlane.xlu0 %2835
        %2837 = vadd.xlane.f32.xlu0 %v2806
        %v2838 = vpop.xlane.xlu0 %2837
        %2839 = vadd.xlane.f32.xlu0 %v2808
        %v2840 = vpop.xlane.xlu0 %2839
        %2841 = vadd.xlane.f32.xlu0 %v2810
        %v2842 = vpop.xlane.xlu0 %2841
        %2843 = vadd.xlane.f32.xlu0 %v2812
        %v2844 = vpop.xlane.xlu0 %2843
        %2845 = vadd.xlane.f32.xlu0 %v2814
        %v2846 = vpop.xlane.xlu0 %2845
        %2847 = vadd.xlane.f32.xlu0 %v2816
        %v2848 = vpop.xlane.xlu0 %2847
        %2849 = vadd.xlane.f32.xlu0 %v2818
        %v2850 = vpop.xlane.xlu0 %2849
        %2851 = vadd.xlane.f32.xlu0 %v2820
        %v2852 = vpop.xlane.xlu0 %2851
        %v2853 = vrcp.pop %v2822
        %v2854 = vmul.f32 %v2790, %v2853
        %v2855 = vrcp.pop %v2824
        %v2856 = vmul.f32 %v2792, %v2855
        %v2857 = vrcp.pop %v2826
        %v2858 = vmul.f32 %v2794, %v2857
        %v2859 = vrcp.pop %v2828
        %v2860 = vmul.f32 %v2796, %v2859
        %v2861 = vrcp.pop %v2830
        %v2862 = vmul.f32 %v2798, %v2861
        %v2863 = vrcp.pop %v2832
        %v2864 = vmul.f32 %v2800, %v2863
        %v2865 = vrcp.pop %v2834
        %v2866 = vmul.f32 %v2802, %v2865
        %v2867 = vrcp.pop %v2836
        %v2868 = vmul.f32 %v2804, %v2867
        %v2869 = vrcp.pop %v2838
        %v2870 = vmul.f32 %v2806, %v2869
        %v2871 = vrcp.pop %v2840
        %v2872 = vmul.f32 %v2808, %v2871
        %v2873 = vrcp.pop %v2842
        %v2874 = vmul.f32 %v2810, %v2873
        %v2875 = vrcp.pop %v2844
        %v2876 = vmul.f32 %v2812, %v2875
        %v2877 = vrcp.pop %v2846
        %v2878 = vmul.f32 %v2814, %v2877
        %v2879 = vrcp.pop %v2848
        %v2880 = vmul.f32 %v2816, %v2879
        %v2881 = vrcp.pop %v2850
        %v2882 = vmul.f32 %v2818, %v2881
        %v2883 = vrcp.pop %v2852
        %v2884 = vmul.f32 %v2820, %v2883
        %v2885 = vpack.c.bf16 %v2856, %v2854
        %v2886 = vpack.c.bf16 %v2860, %v2858
        %v2887 = vpack.c.bf16 %v2864, %v2862
        %v2888 = vpack.c.bf16 %v2868, %v2866
        %v2889 = vpack.c.bf16 %v2872, %v2870
        %v2890 = vpack.c.bf16 %v2876, %v2874
        %v2891 = vpack.c.bf16 %v2880, %v2878
        %v2892 = vpack.c.bf16 %v2884, %v2882
        %2893 = vrot.lane.b32.xlu0 %v475, 96
        %v2894 = vpop.permute.xlu0 %2893
        %2895 = vrot.lane.b32.xlu0 %v476, 96
        %v2896 = vpop.permute.xlu0 %2895
        %2897 = vrot.lane.b32.xlu0 %v477, 96
        %v2898 = vpop.permute.xlu0 %2897
        %2899 = vrot.lane.b32.xlu0 %v478, 96
        %v2900 = vpop.permute.xlu0 %2899
        %2901 = vrot.lane.b32.xlu0 %v479, 96
        %v2902 = vpop.permute.xlu0 %2901
        %2903 = vrot.lane.b32.xlu0 %v480, 96
        %v2904 = vpop.permute.xlu0 %2903
        %2905 = vrot.lane.b32.xlu0 %v481, 96
        %v2906 = vpop.permute.xlu0 %2905
        %2907 = vrot.lane.b32.xlu0 %v482, 96
        %v2908 = vpop.permute.xlu0 %2907
        %2917 = vmatprep.subr.bf16.mxu0 0
        %2918 = vmatpush1.bf16.msra.mxu0 %v2908
        %2919 = vmatprep.subr.bf16.mxu0 0
        %2920 = vmatpush1.bf16.msra.mxu0 %v2906
        %2921 = vmatprep.subr.bf16.mxu0 0
        %2922 = vmatpush1.bf16.msra.mxu0 %v2904
        %2923 = vmatprep.subr.bf16.mxu0 0
        %2924 = vmatpush1.bf16.msra.mxu0 %v2902
        %2925 = vmatprep.subr.bf16.mxu0 0
        %2926 = vmatpush1.bf16.msra.mxu0 %v2900
        %2927 = vmatprep.subr.bf16.mxu0 0
        %2928 = vmatpush1.bf16.msra.mxu0 %v2898
        %2929 = vmatprep.subr.bf16.mxu0 0
        %2930 = vmatpush1.bf16.msra.mxu0 %v2896
        %2931 = vmatprep.subr.bf16.mxu0 0
        %2932 = vmatpush1.bf16.msra.mxu0 %v2894
        %2933 = vmatprep.subr.bf16.mxu0 0
        %2934 = vmatpush2.bf16.msra.mxu0 0
        %2935 = vmatprep.subr.bf16.mxu0 0
        %2936 = vmatpush2.bf16.msra.mxu0 0
        %2937 = vmatprep.subr.bf16.mxu0 0
        %2938 = vmatpush2.bf16.msra.mxu0 0
        %2939 = vmatprep.subr.bf16.mxu0 0
        %2940 = vmatpush2.bf16.msra.mxu0 0
        %2941 = vmatprep.subr.bf16.mxu0 0
        %2942 = vmatpush2.bf16.msra.mxu0 0
        %2943 = vmatprep.subr.bf16.mxu0 0
        %2944 = vmatpush2.bf16.msra.mxu0 0
        %2945 = vmatprep.subr.bf16.mxu0 0
        %2946 = vmatpush2.bf16.msra.mxu0 0
        %2947 = vmatprep.subr.bf16.mxu0 0
        %2948 = vmatpush2.bf16.msra.mxu0 0
        %2949 = vmatprep.mubr.bf16.mxu0 0
        %2950 = vmatmul.mubr.bf16.gmra.mxu0 %v2885
        %v2951 = vpop.f32.mrf.mxu0
        %v2952 = vadd.f32 0.0, %v2951
        %v2953 = vpop.f32.mrf.mxu0
        %v2954 = vpop.f32.mrf.mxu0
        %v2955 = vadd.f32 0.0, %v2954
        %v2956 = vpop.f32.mrf.mxu0
        %2957 = vmatprep.mubr.bf16.mxu0 0
        %2958 = vmatmul.mubr.bf16.gmra.mxu0 %v2886
        %v2959 = vpop.f32.mrf.mxu0
        %v2960 = vadd.f32 0.0, %v2959
        %v2961 = vpop.f32.mrf.mxu0
        %v2962 = vpop.f32.mrf.mxu0
        %v2963 = vadd.f32 0.0, %v2962
        %v2964 = vpop.f32.mrf.mxu0
        %2965 = vmatprep.mubr.bf16.mxu0 0
        %2966 = vmatmul.mubr.bf16.gmra.mxu0 %v2887
        %v2967 = vpop.f32.mrf.mxu0
        %v2968 = vadd.f32 0.0, %v2967
        %v2969 = vpop.f32.mrf.mxu0
        %v2970 = vpop.f32.mrf.mxu0
        %v2971 = vadd.f32 0.0, %v2970
        %v2972 = vpop.f32.mrf.mxu0
        %2973 = vmatprep.mubr.bf16.mxu0 0
        %2974 = vmatmul.mubr.bf16.gmra.mxu0 %v2888
        %v2975 = vpop.f32.mrf.mxu0
        %v2976 = vadd.f32 0.0, %v2975
        %v2977 = vpop.f32.mrf.mxu0
        %v2978 = vpop.f32.mrf.mxu0
        %v2979 = vadd.f32 0.0, %v2978
        %v2980 = vpop.f32.mrf.mxu0
        %2981 = vmatprep.mubr.bf16.mxu0 0
        %2982 = vmatmul.mubr.bf16.gmra.mxu0 %v2889
        %v2983 = vpop.f32.mrf.mxu0
        %v2984 = vadd.f32 0.0, %v2983
        %v2985 = vpop.f32.mrf.mxu0
        %v2986 = vpop.f32.mrf.mxu0
        %v2987 = vadd.f32 0.0, %v2986
        %v2988 = vpop.f32.mrf.mxu0
        %2989 = vmatprep.mubr.bf16.mxu0 0
        %2990 = vmatmul.mubr.bf16.gmra.mxu0 %v2890
        %v2991 = vpop.f32.mrf.mxu0
        %v2992 = vadd.f32 0.0, %v2991
        %v2993 = vpop.f32.mrf.mxu0
        %v2994 = vpop.f32.mrf.mxu0
        %v2995 = vadd.f32 0.0, %v2994
        %v2996 = vpop.f32.mrf.mxu0
        %2997 = vmatprep.mubr.bf16.mxu0 0
        %2998 = vmatmul.mubr.bf16.gmra.mxu0 %v2891
        %v2999 = vpop.f32.mrf.mxu0
        %v3000 = vadd.f32 0.0, %v2999
        %v3001 = vpop.f32.mrf.mxu0
        %v3002 = vpop.f32.mrf.mxu0
        %v3003 = vadd.f32 0.0, %v3002
        %v3004 = vpop.f32.mrf.mxu0
        %3005 = vmatprep.mubr.bf16.mxu0 0
        %3006 = vmatmul.mubr.bf16.gmra.mxu0 %v2892
        %v3007 = vpop.f32.mrf.mxu0
        %v3008 = vadd.f32 0.0, %v3007
        %v3009 = vpop.f32.mrf.mxu0
        %v3010 = vpop.f32.mrf.mxu0
        %v3011 = vadd.f32 0.0, %v3010
        %v3012 = vpop.f32.mrf.mxu0
        %3013 = vdwg.mxu0
        %3030 = vrot.lane.b32.xlu0 %v2952, 32
        %v3031 = vpop.permute.xlu0 %3030
        %3032 = vrot.lane.b32.xlu0 %v2955, 32
        %v3033 = vpop.permute.xlu0 %3032
        %3034 = vrot.lane.b32.xlu0 %v2960, 32
        %v3035 = vpop.permute.xlu0 %3034
        %3036 = vrot.lane.b32.xlu0 %v2963, 32
        %v3037 = vpop.permute.xlu0 %3036
        %3038 = vrot.lane.b32.xlu0 %v2968, 32
        %v3039 = vpop.permute.xlu0 %3038
        %3040 = vrot.lane.b32.xlu0 %v2971, 32
        %v3041 = vpop.permute.xlu0 %3040
        %3042 = vrot.lane.b32.xlu0 %v2976, 32
        %v3043 = vpop.permute.xlu0 %3042
        %3044 = vrot.lane.b32.xlu0 %v2979, 32
        %v3045 = vpop.permute.xlu0 %3044
        %3046 = vrot.lane.b32.xlu0 %v2984, 32
        %v3047 = vpop.permute.xlu0 %3046
        %3048 = vrot.lane.b32.xlu0 %v2987, 32
        %v3049 = vpop.permute.xlu0 %3048
        %3050 = vrot.lane.b32.xlu0 %v2992, 32
        %v3051 = vpop.permute.xlu0 %3050
        %3052 = vrot.lane.b32.xlu0 %v2995, 32
        %v3053 = vpop.permute.xlu0 %3052
        %3054 = vrot.lane.b32.xlu0 %v3000, 32
        %v3055 = vpop.permute.xlu0 %3054
        %3056 = vrot.lane.b32.xlu0 %v3003, 32
        %v3057 = vpop.permute.xlu0 %3056
        %3058 = vrot.lane.b32.xlu0 %v3008, 32
        %v3059 = vpop.permute.xlu0 %3058
        %3060 = vrot.lane.b32.xlu0 %v3011, 32
        %v3061 = vpop.permute.xlu0 %3060
        %vm3078 = vcmask 326912
        %3079 = vst.msk [vmem:[#allocation2] sm:$0xff] %vm3078, %v3031
        %3080 = vst.msk [vmem:[#allocation2 + $0x8] sm:$0xff] %vm3078, %v3033
        %3081 = vst.msk [vmem:[#allocation2 + $0x10] sm:$0xff] %vm3078, %v3035
        %3082 = vst.msk [vmem:[#allocation2 + $0x18] sm:$0xff] %vm3078, %v3037
        %3083 = vst.msk [vmem:[#allocation2 + $0x20] sm:$0xff] %vm3078, %v3039
        %3084 = vst.msk [vmem:[#allocation2 + $0x28] sm:$0xff] %vm3078, %v3041
        %3085 = vst.msk [vmem:[#allocation2 + $0x30] sm:$0xff] %vm3078, %v3043
        %3086 = vst.msk [vmem:[#allocation2 + $0x38] sm:$0xff] %vm3078, %v3045
        %3087 = vst.msk [vmem:[#allocation2 + $0x40] sm:$0xff] %vm3078, %v3047
        %3088 = vst.msk [vmem:[#allocation2 + $0x48] sm:$0xff] %vm3078, %v3049
        %3089 = vst.msk [vmem:[#allocation2 + $0x50] sm:$0xff] %vm3078, %v3051
        %3090 = vst.msk [vmem:[#allocation2 + $0x58] sm:$0xff] %vm3078, %v3053
        %3091 = vst.msk [vmem:[#allocation2 + $0x60] sm:$0xff] %vm3078, %v3055
        %3092 = vst.msk [vmem:[#allocation2 + $0x68] sm:$0xff] %vm3078, %v3057
        %3093 = vst.msk [vmem:[#allocation2 + $0x70] sm:$0xff] %vm3078, %v3059
        %3094 = vst.msk [vmem:[#allocation2 + $0x78] sm:$0xff] %vm3078, %v3061
        %3095 = vset.pattern.permute.xlu0 13
        %3096 = vperm.xlu0 %3095, %v555
        %v3097 = vpop.permute.xlu0 %3096
        %3099 = vset.pattern.permute.xlu0 13
        %3100 = vperm.xlu0 %3099, %v558
        %v3101 = vpop.permute.xlu0 %3100
        %3103 = vset.pattern.permute.xlu0 13
        %3104 = vperm.xlu0 %3103, %v563
        %v3105 = vpop.permute.xlu0 %3104
        %3107 = vset.pattern.permute.xlu0 13
        %3108 = vperm.xlu0 %3107, %v566
        %v3109 = vpop.permute.xlu0 %3108
        %3111 = vset.pattern.permute.xlu0 13
        %3112 = vperm.xlu0 %3111, %v571
        %v3113 = vpop.permute.xlu0 %3112
        %3115 = vset.pattern.permute.xlu0 13
        %3116 = vperm.xlu0 %3115, %v574
        %v3117 = vpop.permute.xlu0 %3116
        %3119 = vset.pattern.permute.xlu0 13
        %3120 = vperm.xlu0 %3119, %v579
        %v3121 = vpop.permute.xlu0 %3120
        %3123 = vset.pattern.permute.xlu0 13
        %3124 = vperm.xlu0 %3123, %v582
        %v3125 = vpop.permute.xlu0 %3124
        %3127 = vset.pattern.permute.xlu0 13
        %3128 = vperm.xlu0 %3127, %v587
        %v3129 = vpop.permute.xlu0 %3128
        %3131 = vset.pattern.permute.xlu0 13
        %3132 = vperm.xlu0 %3131, %v590
        %v3133 = vpop.permute.xlu0 %3132
        %3135 = vset.pattern.permute.xlu0 13
        %3136 = vperm.xlu0 %3135, %v595
        %v3137 = vpop.permute.xlu0 %3136
        %3139 = vset.pattern.permute.xlu0 13
        %3140 = vperm.xlu0 %3139, %v598
        %v3141 = vpop.permute.xlu0 %3140
        %3143 = vset.pattern.permute.xlu0 13
        %3144 = vperm.xlu0 %3143, %v603
        %v3145 = vpop.permute.xlu0 %3144
        %3147 = vset.pattern.permute.xlu0 13
        %3148 = vperm.xlu0 %3147, %v606
        %v3149 = vpop.permute.xlu0 %3148
        %3151 = vset.pattern.permute.xlu0 13
        %3152 = vperm.xlu0 %3151, %v611
        %v3153 = vpop.permute.xlu0 %3152
        %3155 = vset.pattern.permute.xlu0 13
        %3156 = vperm.xlu0 %3155, %v614
        %v3157 = vpop.permute.xlu0 %3156
        %v3159 = vlaneseq
        %v3160 = vshrl.u32 %v3159, 7
        %v3161 = vsub.s32 5, %v3160
        %v3162 = vrot.slane %v633, %v3161
        %v3163 = vadd.f32 %v3097, %v3162
        %v3164 = vadd.f32 %v3101, %v3162
        %v3165 = vadd.f32 %v3105, %v3162
        %v3166 = vadd.f32 %v3109, %v3162
        %v3167 = vadd.f32 %v3113, %v3162
        %v3168 = vadd.f32 %v3117, %v3162
        %v3169 = vadd.f32 %v3121, %v3162
        %v3170 = vadd.f32 %v3125, %v3162
        %v3171 = vadd.f32 %v3129, %v3162
        %v3172 = vadd.f32 %v3133, %v3162
        %v3173 = vadd.f32 %v3137, %v3162
        %v3174 = vadd.f32 %v3141, %v3162
        %v3175 = vadd.f32 %v3145, %v3162
        %v3176 = vadd.f32 %v3149, %v3162
        %v3177 = vadd.f32 %v3153, %v3162
        %v3178 = vadd.f32 %v3157, %v3162
        %vm3179 = vcmp.ge.f32.partialorder %v3163, 0.0
        %vm3180 = vcmp.ge.f32.partialorder %v3164, 0.0
        %vm3181 = vcmp.ge.f32.partialorder %v3165, 0.0
        %vm3182 = vcmp.ge.f32.partialorder %v3166, 0.0
        %vm3183 = vcmp.ge.f32.partialorder %v3167, 0.0
        %vm3184 = vcmp.ge.f32.partialorder %v3168, 0.0
        %vm3185 = vcmp.ge.f32.partialorder %v3169, 0.0
        %vm3186 = vcmp.ge.f32.partialorder %v3170, 0.0
        %vm3187 = vcmp.ge.f32.partialorder %v3171, 0.0
        %vm3188 = vcmp.ge.f32.partialorder %v3172, 0.0
        %vm3189 = vcmp.ge.f32.partialorder %v3173, 0.0
        %vm3190 = vcmp.ge.f32.partialorder %v3174, 0.0
        %vm3191 = vcmp.ge.f32.partialorder %v3175, 0.0
        %vm3192 = vcmp.ge.f32.partialorder %v3176, 0.0
        %vm3193 = vcmp.ge.f32.partialorder %v3177, 0.0
        %vm3194 = vcmp.ge.f32.partialorder %v3178, 0.0
        %v3195 = vmul.f32 %v3163, 0.2
        %v3196 = vmul.f32 %v3164, 0.2
        %v3197 = vmul.f32 %v3165, 0.2
        %v3198 = vmul.f32 %v3166, 0.2
        %v3199 = vmul.f32 %v3167, 0.2
        %v3200 = vmul.f32 %v3168, 0.2
        %v3201 = vmul.f32 %v3169, 0.2
        %v3202 = vmul.f32 %v3170, 0.2
        %v3203 = vmul.f32 %v3171, 0.2
        %v3204 = vmul.f32 %v3172, 0.2
        %v3205 = vmul.f32 %v3173, 0.2
        %v3206 = vmul.f32 %v3174, 0.2
        %v3207 = vmul.f32 %v3175, 0.2
        %v3208 = vmul.f32 %v3176, 0.2
        %v3209 = vmul.f32 %v3177, 0.2
        %v3210 = vmul.f32 %v3178, 0.2
        %v3211 = vsel %vm3179, %v3163, %v3195
        %v3212 = vsel %vm3180, %v3164, %v3196
        %v3213 = vsel %vm3181, %v3165, %v3197
        %v3214 = vsel %vm3182, %v3166, %v3198
        %v3215 = vsel %vm3183, %v3167, %v3199
        %v3216 = vsel %vm3184, %v3168, %v3200
        %v3217 = vsel %vm3185, %v3169, %v3201
        %v3218 = vsel %vm3186, %v3170, %v3202
        %v3219 = vsel %vm3187, %v3171, %v3203
        %v3220 = vsel %vm3188, %v3172, %v3204
        %v3221 = vsel %vm3189, %v3173, %v3205
        %v3222 = vsel %vm3190, %v3174, %v3206
        %v3223 = vsel %vm3191, %v3175, %v3207
        %v3224 = vsel %vm3192, %v3176, %v3208
        %v3225 = vsel %vm3193, %v3177, %v3209
        %v3226 = vsel %vm3194, %v3178, %v3210
        %v3227 = vadd.f32 %v3211, %v323
        %v3228 = vadd.f32 %v3212, %v324
        %v3229 = vadd.f32 %v3213, %v325
        %v3230 = vadd.f32 %v3214, %v326
        %v3231 = vadd.f32 %v3215, %v327
        %v3232 = vadd.f32 %v3216, %v328
        %v3233 = vadd.f32 %v3217, %v329
        %v3234 = vadd.f32 %v3218, %v330
        %v3235 = vadd.f32 %v3219, %v331
        %v3236 = vadd.f32 %v3220, %v332
        %v3237 = vadd.f32 %v3221, %v333
        %v3238 = vadd.f32 %v3222, %v334
        %v3239 = vadd.f32 %v3223, %v335
        %v3240 = vadd.f32 %v3224, %v336
        %v3241 = vadd.f32 %v3225, %v337
        %v3242 = vadd.f32 %v3226, %v338
        %3243 = vmax.xlane.f32.xlu0 %v3227
        %v3244 = vpop.xlane.xlu0 %3243
        %3245 = vmax.xlane.f32.xlu0 %v3228
        %v3246 = vpop.xlane.xlu0 %3245
        %3247 = vmax.xlane.f32.xlu0 %v3229
        %v3248 = vpop.xlane.xlu0 %3247
        %3249 = vmax.xlane.f32.xlu0 %v3230
        %v3250 = vpop.xlane.xlu0 %3249
        %3251 = vmax.xlane.f32.xlu0 %v3231
        %v3252 = vpop.xlane.xlu0 %3251
        %3253 = vmax.xlane.f32.xlu0 %v3232
        %v3254 = vpop.xlane.xlu0 %3253
        %3255 = vmax.xlane.f32.xlu0 %v3233
        %v3256 = vpop.xlane.xlu0 %3255
        %3257 = vmax.xlane.f32.xlu0 %v3234
        %v3258 = vpop.xlane.xlu0 %3257
        %3259 = vmax.xlane.f32.xlu0 %v3235
        %v3260 = vpop.xlane.xlu0 %3259
        %3261 = vmax.xlane.f32.xlu0 %v3236
        %v3262 = vpop.xlane.xlu0 %3261
        %3263 = vmax.xlane.f32.xlu0 %v3237
        %v3264 = vpop.xlane.xlu0 %3263
        %3265 = vmax.xlane.f32.xlu0 %v3238
        %v3266 = vpop.xlane.xlu0 %3265
        %3267 = vmax.xlane.f32.xlu0 %v3239
        %v3268 = vpop.xlane.xlu0 %3267
        %3269 = vmax.xlane.f32.xlu0 %v3240
        %v3270 = vpop.xlane.xlu0 %3269
        %3271 = vmax.xlane.f32.xlu0 %v3241
        %v3272 = vpop.xlane.xlu0 %3271
        %3273 = vmax.xlane.f32.xlu0 %v3242
        %v3274 = vpop.xlane.xlu0 %3273
        %v3275 = vsub.f32 %v3227, %v3244
        %v3276 = vsub.f32 %v3228, %v3246
        %v3277 = vsub.f32 %v3229, %v3248
        %v3278 = vsub.f32 %v3230, %v3250
        %v3279 = vsub.f32 %v3231, %v3252
        %v3280 = vsub.f32 %v3232, %v3254
        %v3281 = vsub.f32 %v3233, %v3256
        %v3282 = vsub.f32 %v3234, %v3258
        %v3283 = vsub.f32 %v3235, %v3260
        %v3284 = vsub.f32 %v3236, %v3262
        %v3285 = vsub.f32 %v3237, %v3264
        %v3286 = vsub.f32 %v3238, %v3266
        %v3287 = vsub.f32 %v3239, %v3268
        %v3288 = vsub.f32 %v3240, %v3270
        %v3289 = vsub.f32 %v3241, %v3272
        %v3290 = vsub.f32 %v3242, %v3274
        %v3291 = vmul.f32 %v3275, 1.442695
        %v3292 = vpow.pop %v3291
        %v3293 = vmul.f32 %v3276, 1.442695
        %v3294 = vpow.pop %v3293
        %v3295 = vmul.f32 %v3277, 1.442695
        %v3296 = vpow.pop %v3295
        %v3297 = vmul.f32 %v3278, 1.442695
        %v3298 = vpow.pop %v3297
        %v3299 = vmul.f32 %v3279, 1.442695
        %v3300 = vpow.pop %v3299
        %v3301 = vmul.f32 %v3280, 1.442695
        %v3302 = vpow.pop %v3301
        %v3303 = vmul.f32 %v3281, 1.442695
        %v3304 = vpow.pop %v3303
        %v3305 = vmul.f32 %v3282, 1.442695
        %v3306 = vpow.pop %v3305
        %v3307 = vmul.f32 %v3283, 1.442695
        %v3308 = vpow.pop %v3307
        %v3309 = vmul.f32 %v3284, 1.442695
        %v3310 = vpow.pop %v3309
        %v3311 = vmul.f32 %v3285, 1.442695
        %v3312 = vpow.pop %v3311
        %v3313 = vmul.f32 %v3286, 1.442695
        %v3314 = vpow.pop %v3313
        %v3315 = vmul.f32 %v3287, 1.442695
        %v3316 = vpow.pop %v3315
        %v3317 = vmul.f32 %v3288, 1.442695
        %v3318 = vpow.pop %v3317
        %v3319 = vmul.f32 %v3289, 1.442695
        %v3320 = vpow.pop %v3319
        %v3321 = vmul.f32 %v3290, 1.442695
        %v3322 = vpow.pop %v3321
        %3323 = vadd.xlane.f32.xlu0 %v3292
        %v3324 = vpop.xlane.xlu0 %3323
        %3325 = vadd.xlane.f32.xlu0 %v3294
        %v3326 = vpop.xlane.xlu0 %3325
        %3327 = vadd.xlane.f32.xlu0 %v3296
        %v3328 = vpop.xlane.xlu0 %3327
        %3329 = vadd.xlane.f32.xlu0 %v3298
        %v3330 = vpop.xlane.xlu0 %3329
        %3331 = vadd.xlane.f32.xlu0 %v3300
        %v3332 = vpop.xlane.xlu0 %3331
        %3333 = vadd.xlane.f32.xlu0 %v3302
        %v3334 = vpop.xlane.xlu0 %3333
        %3335 = vadd.xlane.f32.xlu0 %v3304
        %v3336 = vpop.xlane.xlu0 %3335
        %3337 = vadd.xlane.f32.xlu0 %v3306
        %v3338 = vpop.xlane.xlu0 %3337
        %3339 = vadd.xlane.f32.xlu0 %v3308
        %v3340 = vpop.xlane.xlu0 %3339
        %3341 = vadd.xlane.f32.xlu0 %v3310
        %v3342 = vpop.xlane.xlu0 %3341
        %3343 = vadd.xlane.f32.xlu0 %v3312
        %v3344 = vpop.xlane.xlu0 %3343
        %3345 = vadd.xlane.f32.xlu0 %v3314
        %v3346 = vpop.xlane.xlu0 %3345
        %3347 = vadd.xlane.f32.xlu0 %v3316
        %v3348 = vpop.xlane.xlu0 %3347
        %3349 = vadd.xlane.f32.xlu0 %v3318
        %v3350 = vpop.xlane.xlu0 %3349
        %3351 = vadd.xlane.f32.xlu0 %v3320
        %v3352 = vpop.xlane.xlu0 %3351
        %3353 = vadd.xlane.f32.xlu0 %v3322
        %v3354 = vpop.xlane.xlu0 %3353
        %v3355 = vrcp.pop %v3324
        %v3356 = vmul.f32 %v3292, %v3355
        %v3357 = vrcp.pop %v3326
        %v3358 = vmul.f32 %v3294, %v3357
        %v3359 = vrcp.pop %v3328
        %v3360 = vmul.f32 %v3296, %v3359
        %v3361 = vrcp.pop %v3330
        %v3362 = vmul.f32 %v3298, %v3361
        %v3363 = vrcp.pop %v3332
        %v3364 = vmul.f32 %v3300, %v3363
        %v3365 = vrcp.pop %v3334
        %v3366 = vmul.f32 %v3302, %v3365
        %v3367 = vrcp.pop %v3336
        %v3368 = vmul.f32 %v3304, %v3367
        %v3369 = vrcp.pop %v3338
        %v3370 = vmul.f32 %v3306, %v3369
        %v3371 = vrcp.pop %v3340
        %v3372 = vmul.f32 %v3308, %v3371
        %v3373 = vrcp.pop %v3342
        %v3374 = vmul.f32 %v3310, %v3373
        %v3375 = vrcp.pop %v3344
        %v3376 = vmul.f32 %v3312, %v3375
        %v3377 = vrcp.pop %v3346
        %v3378 = vmul.f32 %v3314, %v3377
        %v3379 = vrcp.pop %v3348
        %v3380 = vmul.f32 %v3316, %v3379
        %v3381 = vrcp.pop %v3350
        %v3382 = vmul.f32 %v3318, %v3381
        %v3383 = vrcp.pop %v3352
        %v3384 = vmul.f32 %v3320, %v3383
        %v3385 = vrcp.pop %v3354
        %v3386 = vmul.f32 %v3322, %v3385
        %v3387 = vpack.c.bf16 %v3358, %v3356
        %v3388 = vpack.c.bf16 %v3362, %v3360
        %v3389 = vpack.c.bf16 %v3366, %v3364
        %v3390 = vpack.c.bf16 %v3370, %v3368
        %v3391 = vpack.c.bf16 %v3374, %v3372
        %v3392 = vpack.c.bf16 %v3378, %v3376
        %v3393 = vpack.c.bf16 %v3382, %v3380
        %v3394 = vpack.c.bf16 %v3386, %v3384
        %3395 = vrot.lane.b32.xlu0 %v475, 88
        %v3396 = vpop.permute.xlu0 %3395
        %3397 = vrot.lane.b32.xlu0 %v476, 88
        %v3398 = vpop.permute.xlu0 %3397
        %3399 = vrot.lane.b32.xlu0 %v477, 88
        %v3400 = vpop.permute.xlu0 %3399
        %3401 = vrot.lane.b32.xlu0 %v478, 88
        %v3402 = vpop.permute.xlu0 %3401
        %3403 = vrot.lane.b32.xlu0 %v479, 88
        %v3404 = vpop.permute.xlu0 %3403
        %3405 = vrot.lane.b32.xlu0 %v480, 88
        %v3406 = vpop.permute.xlu0 %3405
        %3407 = vrot.lane.b32.xlu0 %v481, 88
        %v3408 = vpop.permute.xlu0 %3407
        %3409 = vrot.lane.b32.xlu0 %v482, 88
        %v3410 = vpop.permute.xlu0 %3409
        %3419 = vmatprep.subr.bf16.mxu0 0
        %3420 = vmatpush1.bf16.msra.mxu0 %v3410
        %3421 = vmatprep.subr.bf16.mxu0 0
        %3422 = vmatpush1.bf16.msra.mxu0 %v3408
        %3423 = vmatprep.subr.bf16.mxu0 0
        %3424 = vmatpush1.bf16.msra.mxu0 %v3406
        %3425 = vmatprep.subr.bf16.mxu0 0
        %3426 = vmatpush1.bf16.msra.mxu0 %v3404
        %3427 = vmatprep.subr.bf16.mxu0 0
        %3428 = vmatpush1.bf16.msra.mxu0 %v3402
        %3429 = vmatprep.subr.bf16.mxu0 0
        %3430 = vmatpush1.bf16.msra.mxu0 %v3400
        %3431 = vmatprep.subr.bf16.mxu0 0
        %3432 = vmatpush1.bf16.msra.mxu0 %v3398
        %3433 = vmatprep.subr.bf16.mxu0 0
        %3434 = vmatpush1.bf16.msra.mxu0 %v3396
        %3435 = vmatprep.subr.bf16.mxu0 0
        %3436 = vmatpush2.bf16.msra.mxu0 0
        %3437 = vmatprep.subr.bf16.mxu0 0
        %3438 = vmatpush2.bf16.msra.mxu0 0
        %3439 = vmatprep.subr.bf16.mxu0 0
        %3440 = vmatpush2.bf16.msra.mxu0 0
        %3441 = vmatprep.subr.bf16.mxu0 0
        %3442 = vmatpush2.bf16.msra.mxu0 0
        %3443 = vmatprep.subr.bf16.mxu0 0
        %3444 = vmatpush2.bf16.msra.mxu0 0
        %3445 = vmatprep.subr.bf16.mxu0 0
        %3446 = vmatpush2.bf16.msra.mxu0 0
        %3447 = vmatprep.subr.bf16.mxu0 0
        %3448 = vmatpush2.bf16.msra.mxu0 0
        %3449 = vmatprep.subr.bf16.mxu0 0
        %3450 = vmatpush2.bf16.msra.mxu0 0
        %3451 = vmatprep.mubr.bf16.mxu0 0
        %3452 = vmatmul.mubr.bf16.gmra.mxu0 %v3387
        %v3453 = vpop.f32.mrf.mxu0
        %v3454 = vadd.f32 0.0, %v3453
        %v3455 = vpop.f32.mrf.mxu0
        %v3456 = vpop.f32.mrf.mxu0
        %v3457 = vadd.f32 0.0, %v3456
        %v3458 = vpop.f32.mrf.mxu0
        %3459 = vmatprep.mubr.bf16.mxu0 0
        %3460 = vmatmul.mubr.bf16.gmra.mxu0 %v3388
        %v3461 = vpop.f32.mrf.mxu0
        %v3462 = vadd.f32 0.0, %v3461
        %v3463 = vpop.f32.mrf.mxu0
        %v3464 = vpop.f32.mrf.mxu0
        %v3465 = vadd.f32 0.0, %v3464
        %v3466 = vpop.f32.mrf.mxu0
        %3467 = vmatprep.mubr.bf16.mxu0 0
        %3468 = vmatmul.mubr.bf16.gmra.mxu0 %v3389
        %v3469 = vpop.f32.mrf.mxu0
        %v3470 = vadd.f32 0.0, %v3469
        %v3471 = vpop.f32.mrf.mxu0
        %v3472 = vpop.f32.mrf.mxu0
        %v3473 = vadd.f32 0.0, %v3472
        %v3474 = vpop.f32.mrf.mxu0
        %3475 = vmatprep.mubr.bf16.mxu0 0
        %3476 = vmatmul.mubr.bf16.gmra.mxu0 %v3390
        %v3477 = vpop.f32.mrf.mxu0
        %v3478 = vadd.f32 0.0, %v3477
        %v3479 = vpop.f32.mrf.mxu0
        %v3480 = vpop.f32.mrf.mxu0
        %v3481 = vadd.f32 0.0, %v3480
        %v3482 = vpop.f32.mrf.mxu0
        %3483 = vmatprep.mubr.bf16.mxu0 0
        %3484 = vmatmul.mubr.bf16.gmra.mxu0 %v3391
        %v3485 = vpop.f32.mrf.mxu0
        %v3486 = vadd.f32 0.0, %v3485
        %v3487 = vpop.f32.mrf.mxu0
        %v3488 = vpop.f32.mrf.mxu0
        %v3489 = vadd.f32 0.0, %v3488
        %v3490 = vpop.f32.mrf.mxu0
        %3491 = vmatprep.mubr.bf16.mxu0 0
        %3492 = vmatmul.mubr.bf16.gmra.mxu0 %v3392
        %v3493 = vpop.f32.mrf.mxu0
        %v3494 = vadd.f32 0.0, %v3493
        %v3495 = vpop.f32.mrf.mxu0
        %v3496 = vpop.f32.mrf.mxu0
        %v3497 = vadd.f32 0.0, %v3496
        %v3498 = vpop.f32.mrf.mxu0
        %3499 = vmatprep.mubr.bf16.mxu0 0
        %3500 = vmatmul.mubr.bf16.gmra.mxu0 %v3393
        %v3501 = vpop.f32.mrf.mxu0
        %v3502 = vadd.f32 0.0, %v3501
        %v3503 = vpop.f32.mrf.mxu0
        %v3504 = vpop.f32.mrf.mxu0
        %v3505 = vadd.f32 0.0, %v3504
        %v3506 = vpop.f32.mrf.mxu0
        %3507 = vmatprep.mubr.bf16.mxu0 0
        %3508 = vmatmul.mubr.bf16.gmra.mxu0 %v3394
        %v3509 = vpop.f32.mrf.mxu0
        %v3510 = vadd.f32 0.0, %v3509
        %v3511 = vpop.f32.mrf.mxu0
        %v3512 = vpop.f32.mrf.mxu0
        %v3513 = vadd.f32 0.0, %v3512
        %v3514 = vpop.f32.mrf.mxu0
        %3515 = vdwg.mxu0
        %3532 = vrot.lane.b32.xlu0 %v3454, 40
        %v3533 = vpop.permute.xlu0 %3532
        %3534 = vrot.lane.b32.xlu0 %v3457, 40
        %v3535 = vpop.permute.xlu0 %3534
        %3536 = vrot.lane.b32.xlu0 %v3462, 40
        %v3537 = vpop.permute.xlu0 %3536
        %3538 = vrot.lane.b32.xlu0 %v3465, 40
        %v3539 = vpop.permute.xlu0 %3538
        %3540 = vrot.lane.b32.xlu0 %v3470, 40
        %v3541 = vpop.permute.xlu0 %3540
        %3542 = vrot.lane.b32.xlu0 %v3473, 40
        %v3543 = vpop.permute.xlu0 %3542
        %3544 = vrot.lane.b32.xlu0 %v3478, 40
        %v3545 = vpop.permute.xlu0 %3544
        %3546 = vrot.lane.b32.xlu0 %v3481, 40
        %v3547 = vpop.permute.xlu0 %3546
        %3548 = vrot.lane.b32.xlu0 %v3486, 40
        %v3549 = vpop.permute.xlu0 %3548
        %3550 = vrot.lane.b32.xlu0 %v3489, 40
        %v3551 = vpop.permute.xlu0 %3550
        %3552 = vrot.lane.b32.xlu0 %v3494, 40
        %v3553 = vpop.permute.xlu0 %3552
        %3554 = vrot.lane.b32.xlu0 %v3497, 40
        %v3555 = vpop.permute.xlu0 %3554
        %3556 = vrot.lane.b32.xlu0 %v3502, 40
        %v3557 = vpop.permute.xlu0 %3556
        %3558 = vrot.lane.b32.xlu0 %v3505, 40
        %v3559 = vpop.permute.xlu0 %3558
        %3560 = vrot.lane.b32.xlu0 %v3510, 40
        %v3561 = vpop.permute.xlu0 %3560
        %3562 = vrot.lane.b32.xlu0 %v3513, 40
        %v3563 = vpop.permute.xlu0 %3562
        %vm3580 = vcmask 392512
        %3581 = vst.msk [vmem:[#allocation2] sm:$0xff] %vm3580, %v3533
        %3582 = vst.msk [vmem:[#allocation2 + $0x8] sm:$0xff] %vm3580, %v3535
        %3583 = vst.msk [vmem:[#allocation2 + $0x10] sm:$0xff] %vm3580, %v3537
        %3584 = vst.msk [vmem:[#allocation2 + $0x18] sm:$0xff] %vm3580, %v3539
        %3585 = vst.msk [vmem:[#allocation2 + $0x20] sm:$0xff] %vm3580, %v3541
        %3586 = vst.msk [vmem:[#allocation2 + $0x28] sm:$0xff] %vm3580, %v3543
        %3587 = vst.msk [vmem:[#allocation2 + $0x30] sm:$0xff] %vm3580, %v3545
        %3588 = vst.msk [vmem:[#allocation2 + $0x38] sm:$0xff] %vm3580, %v3547
        %3589 = vst.msk [vmem:[#allocation2 + $0x40] sm:$0xff] %vm3580, %v3549
        %3590 = vst.msk [vmem:[#allocation2 + $0x48] sm:$0xff] %vm3580, %v3551
        %3591 = vst.msk [vmem:[#allocation2 + $0x50] sm:$0xff] %vm3580, %v3553
        %3592 = vst.msk [vmem:[#allocation2 + $0x58] sm:$0xff] %vm3580, %v3555
        %3593 = vst.msk [vmem:[#allocation2 + $0x60] sm:$0xff] %vm3580, %v3557
        %3594 = vst.msk [vmem:[#allocation2 + $0x68] sm:$0xff] %vm3580, %v3559
        %3595 = vst.msk [vmem:[#allocation2 + $0x70] sm:$0xff] %vm3580, %v3561
        %3596 = vst.msk [vmem:[#allocation2 + $0x78] sm:$0xff] %vm3580, %v3563
        %3597 = vset.pattern.permute.xlu0 14
        %3598 = vperm.xlu0 %3597, %v555
        %v3599 = vpop.permute.xlu0 %3598
        %3601 = vset.pattern.permute.xlu0 14
        %3602 = vperm.xlu0 %3601, %v558
        %v3603 = vpop.permute.xlu0 %3602
        %3605 = vset.pattern.permute.xlu0 14
        %3606 = vperm.xlu0 %3605, %v563
        %v3607 = vpop.permute.xlu0 %3606
        %3609 = vset.pattern.permute.xlu0 14
        %3610 = vperm.xlu0 %3609, %v566
        %v3611 = vpop.permute.xlu0 %3610
        %3613 = vset.pattern.permute.xlu0 14
        %3614 = vperm.xlu0 %3613, %v571
        %v3615 = vpop.permute.xlu0 %3614
        %3617 = vset.pattern.permute.xlu0 14
        %3618 = vperm.xlu0 %3617, %v574
        %v3619 = vpop.permute.xlu0 %3618
        %3621 = vset.pattern.permute.xlu0 14
        %3622 = vperm.xlu0 %3621, %v579
        %v3623 = vpop.permute.xlu0 %3622
        %3625 = vset.pattern.permute.xlu0 14
        %3626 = vperm.xlu0 %3625, %v582
        %v3627 = vpop.permute.xlu0 %3626
        %3629 = vset.pattern.permute.xlu0 14
        %3630 = vperm.xlu0 %3629, %v587
        %v3631 = vpop.permute.xlu0 %3630
        %3633 = vset.pattern.permute.xlu0 14
        %3634 = vperm.xlu0 %3633, %v590
        %v3635 = vpop.permute.xlu0 %3634
        %3637 = vset.pattern.permute.xlu0 14
        %3638 = vperm.xlu0 %3637, %v595
        %v3639 = vpop.permute.xlu0 %3638
        %3641 = vset.pattern.permute.xlu0 14
        %3642 = vperm.xlu0 %3641, %v598
        %v3643 = vpop.permute.xlu0 %3642
        %3645 = vset.pattern.permute.xlu0 14
        %3646 = vperm.xlu0 %3645, %v603
        %v3647 = vpop.permute.xlu0 %3646
        %3649 = vset.pattern.permute.xlu0 14
        %3650 = vperm.xlu0 %3649, %v606
        %v3651 = vpop.permute.xlu0 %3650
        %3653 = vset.pattern.permute.xlu0 14
        %3654 = vperm.xlu0 %3653, %v611
        %v3655 = vpop.permute.xlu0 %3654
        %3657 = vset.pattern.permute.xlu0 14
        %3658 = vperm.xlu0 %3657, %v614
        %v3659 = vpop.permute.xlu0 %3658
        %v3661 = vlaneseq
        %v3662 = vshrl.u32 %v3661, 7
        %v3663 = vsub.s32 6, %v3662
        %v3664 = vrot.slane %v633, %v3663
        %v3665 = vadd.f32 %v3599, %v3664
        %v3666 = vadd.f32 %v3603, %v3664
        %v3667 = vadd.f32 %v3607, %v3664
        %v3668 = vadd.f32 %v3611, %v3664
        %v3669 = vadd.f32 %v3615, %v3664
        %v3670 = vadd.f32 %v3619, %v3664
        %v3671 = vadd.f32 %v3623, %v3664
        %v3672 = vadd.f32 %v3627, %v3664
        %v3673 = vadd.f32 %v3631, %v3664
        %v3674 = vadd.f32 %v3635, %v3664
        %v3675 = vadd.f32 %v3639, %v3664
        %v3676 = vadd.f32 %v3643, %v3664
        %v3677 = vadd.f32 %v3647, %v3664
        %v3678 = vadd.f32 %v3651, %v3664
        %v3679 = vadd.f32 %v3655, %v3664
        %v3680 = vadd.f32 %v3659, %v3664
        %vm3681 = vcmp.ge.f32.partialorder %v3665, 0.0
        %vm3682 = vcmp.ge.f32.partialorder %v3666, 0.0
        %vm3683 = vcmp.ge.f32.partialorder %v3667, 0.0
        %vm3684 = vcmp.ge.f32.partialorder %v3668, 0.0
        %vm3685 = vcmp.ge.f32.partialorder %v3669, 0.0
        %vm3686 = vcmp.ge.f32.partialorder %v3670, 0.0
        %vm3687 = vcmp.ge.f32.partialorder %v3671, 0.0
        %vm3688 = vcmp.ge.f32.partialorder %v3672, 0.0
        %vm3689 = vcmp.ge.f32.partialorder %v3673, 0.0
        %vm3690 = vcmp.ge.f32.partialorder %v3674, 0.0
        %vm3691 = vcmp.ge.f32.partialorder %v3675, 0.0
        %vm3692 = vcmp.ge.f32.partialorder %v3676, 0.0
        %vm3693 = vcmp.ge.f32.partialorder %v3677, 0.0
        %vm3694 = vcmp.ge.f32.partialorder %v3678, 0.0
        %vm3695 = vcmp.ge.f32.partialorder %v3679, 0.0
        %vm3696 = vcmp.ge.f32.partialorder %v3680, 0.0
        %v3697 = vmul.f32 %v3665, 0.2
        %v3698 = vmul.f32 %v3666, 0.2
        %v3699 = vmul.f32 %v3667, 0.2
        %v3700 = vmul.f32 %v3668, 0.2
        %v3701 = vmul.f32 %v3669, 0.2
        %v3702 = vmul.f32 %v3670, 0.2
        %v3703 = vmul.f32 %v3671, 0.2
        %v3704 = vmul.f32 %v3672, 0.2
        %v3705 = vmul.f32 %v3673, 0.2
        %v3706 = vmul.f32 %v3674, 0.2
        %v3707 = vmul.f32 %v3675, 0.2
        %v3708 = vmul.f32 %v3676, 0.2
        %v3709 = vmul.f32 %v3677, 0.2
        %v3710 = vmul.f32 %v3678, 0.2
        %v3711 = vmul.f32 %v3679, 0.2
        %v3712 = vmul.f32 %v3680, 0.2
        %v3713 = vsel %vm3681, %v3665, %v3697
        %v3714 = vsel %vm3682, %v3666, %v3698
        %v3715 = vsel %vm3683, %v3667, %v3699
        %v3716 = vsel %vm3684, %v3668, %v3700
        %v3717 = vsel %vm3685, %v3669, %v3701
        %v3718 = vsel %vm3686, %v3670, %v3702
        %v3719 = vsel %vm3687, %v3671, %v3703
        %v3720 = vsel %vm3688, %v3672, %v3704
        %v3721 = vsel %vm3689, %v3673, %v3705
        %v3722 = vsel %vm3690, %v3674, %v3706
        %v3723 = vsel %vm3691, %v3675, %v3707
        %v3724 = vsel %vm3692, %v3676, %v3708
        %v3725 = vsel %vm3693, %v3677, %v3709
        %v3726 = vsel %vm3694, %v3678, %v3710
        %v3727 = vsel %vm3695, %v3679, %v3711
        %v3728 = vsel %vm3696, %v3680, %v3712
        %v3729 = vadd.f32 %v3713, %v323
        %v3730 = vadd.f32 %v3714, %v324
        %v3731 = vadd.f32 %v3715, %v325
        %v3732 = vadd.f32 %v3716, %v326
        %v3733 = vadd.f32 %v3717, %v327
        %v3734 = vadd.f32 %v3718, %v328
        %v3735 = vadd.f32 %v3719, %v329
        %v3736 = vadd.f32 %v3720, %v330
        %v3737 = vadd.f32 %v3721, %v331
        %v3738 = vadd.f32 %v3722, %v332
        %v3739 = vadd.f32 %v3723, %v333
        %v3740 = vadd.f32 %v3724, %v334
        %v3741 = vadd.f32 %v3725, %v335
        %v3742 = vadd.f32 %v3726, %v336
        %v3743 = vadd.f32 %v3727, %v337
        %v3744 = vadd.f32 %v3728, %v338
        %3745 = vmax.xlane.f32.xlu0 %v3729
        %v3746 = vpop.xlane.xlu0 %3745
        %3747 = vmax.xlane.f32.xlu0 %v3730
        %v3748 = vpop.xlane.xlu0 %3747
        %3749 = vmax.xlane.f32.xlu0 %v3731
        %v3750 = vpop.xlane.xlu0 %3749
        %3751 = vmax.xlane.f32.xlu0 %v3732
        %v3752 = vpop.xlane.xlu0 %3751
        %3753 = vmax.xlane.f32.xlu0 %v3733
        %v3754 = vpop.xlane.xlu0 %3753
        %3755 = vmax.xlane.f32.xlu0 %v3734
        %v3756 = vpop.xlane.xlu0 %3755
        %3757 = vmax.xlane.f32.xlu0 %v3735
        %v3758 = vpop.xlane.xlu0 %3757
        %3759 = vmax.xlane.f32.xlu0 %v3736
        %v3760 = vpop.xlane.xlu0 %3759
        %3761 = vmax.xlane.f32.xlu0 %v3737
        %v3762 = vpop.xlane.xlu0 %3761
        %3763 = vmax.xlane.f32.xlu0 %v3738
        %v3764 = vpop.xlane.xlu0 %3763
        %3765 = vmax.xlane.f32.xlu0 %v3739
        %v3766 = vpop.xlane.xlu0 %3765
        %3767 = vmax.xlane.f32.xlu0 %v3740
        %v3768 = vpop.xlane.xlu0 %3767
        %3769 = vmax.xlane.f32.xlu0 %v3741
        %v3770 = vpop.xlane.xlu0 %3769
        %3771 = vmax.xlane.f32.xlu0 %v3742
        %v3772 = vpop.xlane.xlu0 %3771
        %3773 = vmax.xlane.f32.xlu0 %v3743
        %v3774 = vpop.xlane.xlu0 %3773
        %3775 = vmax.xlane.f32.xlu0 %v3744
        %v3776 = vpop.xlane.xlu0 %3775
        %v3777 = vsub.f32 %v3729, %v3746
        %v3778 = vsub.f32 %v3730, %v3748
        %v3779 = vsub.f32 %v3731, %v3750
        %v3780 = vsub.f32 %v3732, %v3752
        %v3781 = vsub.f32 %v3733, %v3754
        %v3782 = vsub.f32 %v3734, %v3756
        %v3783 = vsub.f32 %v3735, %v3758
        %v3784 = vsub.f32 %v3736, %v3760
        %v3785 = vsub.f32 %v3737, %v3762
        %v3786 = vsub.f32 %v3738, %v3764
        %v3787 = vsub.f32 %v3739, %v3766
        %v3788 = vsub.f32 %v3740, %v3768
        %v3789 = vsub.f32 %v3741, %v3770
        %v3790 = vsub.f32 %v3742, %v3772
        %v3791 = vsub.f32 %v3743, %v3774
        %v3792 = vsub.f32 %v3744, %v3776
        %v3793 = vmul.f32 %v3777, 1.442695
        %v3794 = vpow.pop %v3793
        %v3795 = vmul.f32 %v3778, 1.442695
        %v3796 = vpow.pop %v3795
        %v3797 = vmul.f32 %v3779, 1.442695
        %v3798 = vpow.pop %v3797
        %v3799 = vmul.f32 %v3780, 1.442695
        %v3800 = vpow.pop %v3799
        %v3801 = vmul.f32 %v3781, 1.442695
        %v3802 = vpow.pop %v3801
        %v3803 = vmul.f32 %v3782, 1.442695
        %v3804 = vpow.pop %v3803
        %v3805 = vmul.f32 %v3783, 1.442695
        %v3806 = vpow.pop %v3805
        %v3807 = vmul.f32 %v3784, 1.442695
        %v3808 = vpow.pop %v3807
        %v3809 = vmul.f32 %v3785, 1.442695
        %v3810 = vpow.pop %v3809
        %v3811 = vmul.f32 %v3786, 1.442695
        %v3812 = vpow.pop %v3811
        %v3813 = vmul.f32 %v3787, 1.442695
        %v3814 = vpow.pop %v3813
        %v3815 = vmul.f32 %v3788, 1.442695
        %v3816 = vpow.pop %v3815
        %v3817 = vmul.f32 %v3789, 1.442695
        %v3818 = vpow.pop %v3817
        %v3819 = vmul.f32 %v3790, 1.442695
        %v3820 = vpow.pop %v3819
        %v3821 = vmul.f32 %v3791, 1.442695
        %v3822 = vpow.pop %v3821
        %v3823 = vmul.f32 %v3792, 1.442695
        %v3824 = vpow.pop %v3823
        %3825 = vadd.xlane.f32.xlu0 %v3794
        %v3826 = vpop.xlane.xlu0 %3825
        %3827 = vadd.xlane.f32.xlu0 %v3796
        %v3828 = vpop.xlane.xlu0 %3827
        %3829 = vadd.xlane.f32.xlu0 %v3798
        %v3830 = vpop.xlane.xlu0 %3829
        %3831 = vadd.xlane.f32.xlu0 %v3800
        %v3832 = vpop.xlane.xlu0 %3831
        %3833 = vadd.xlane.f32.xlu0 %v3802
        %v3834 = vpop.xlane.xlu0 %3833
        %3835 = vadd.xlane.f32.xlu0 %v3804
        %v3836 = vpop.xlane.xlu0 %3835
        %3837 = vadd.xlane.f32.xlu0 %v3806
        %v3838 = vpop.xlane.xlu0 %3837
        %3839 = vadd.xlane.f32.xlu0 %v3808
        %v3840 = vpop.xlane.xlu0 %3839
        %3841 = vadd.xlane.f32.xlu0 %v3810
        %v3842 = vpop.xlane.xlu0 %3841
        %3843 = vadd.xlane.f32.xlu0 %v3812
        %v3844 = vpop.xlane.xlu0 %3843
        %3845 = vadd.xlane.f32.xlu0 %v3814
        %v3846 = vpop.xlane.xlu0 %3845
        %3847 = vadd.xlane.f32.xlu0 %v3816
        %v3848 = vpop.xlane.xlu0 %3847
        %3849 = vadd.xlane.f32.xlu0 %v3818
        %v3850 = vpop.xlane.xlu0 %3849
        %3851 = vadd.xlane.f32.xlu0 %v3820
        %v3852 = vpop.xlane.xlu0 %3851
        %3853 = vadd.xlane.f32.xlu0 %v3822
        %v3854 = vpop.xlane.xlu0 %3853
        %3855 = vadd.xlane.f32.xlu0 %v3824
        %v3856 = vpop.xlane.xlu0 %3855
        %v3857 = vrcp.pop %v3826
        %v3858 = vmul.f32 %v3794, %v3857
        %v3859 = vrcp.pop %v3828
        %v3860 = vmul.f32 %v3796, %v3859
        %v3861 = vrcp.pop %v3830
        %v3862 = vmul.f32 %v3798, %v3861
        %v3863 = vrcp.pop %v3832
        %v3864 = vmul.f32 %v3800, %v3863
        %v3865 = vrcp.pop %v3834
        %v3866 = vmul.f32 %v3802, %v3865
        %v3867 = vrcp.pop %v3836
        %v3868 = vmul.f32 %v3804, %v3867
        %v3869 = vrcp.pop %v3838
        %v3870 = vmul.f32 %v3806, %v3869
        %v3871 = vrcp.pop %v3840
        %v3872 = vmul.f32 %v3808, %v3871
        %v3873 = vrcp.pop %v3842
        %v3874 = vmul.f32 %v3810, %v3873
        %v3875 = vrcp.pop %v3844
        %v3876 = vmul.f32 %v3812, %v3875
        %v3877 = vrcp.pop %v3846
        %v3878 = vmul.f32 %v3814, %v3877
        %v3879 = vrcp.pop %v3848
        %v3880 = vmul.f32 %v3816, %v3879
        %v3881 = vrcp.pop %v3850
        %v3882 = vmul.f32 %v3818, %v3881
        %v3883 = vrcp.pop %v3852
        %v3884 = vmul.f32 %v3820, %v3883
        %v3885 = vrcp.pop %v3854
        %v3886 = vmul.f32 %v3822, %v3885
        %v3887 = vrcp.pop %v3856
        %v3888 = vmul.f32 %v3824, %v3887
        %v3889 = vpack.c.bf16 %v3860, %v3858
        %v3890 = vpack.c.bf16 %v3864, %v3862
        %v3891 = vpack.c.bf16 %v3868, %v3866
        %v3892 = vpack.c.bf16 %v3872, %v3870
        %v3893 = vpack.c.bf16 %v3876, %v3874
        %v3894 = vpack.c.bf16 %v3880, %v3878
        %v3895 = vpack.c.bf16 %v3884, %v3882
        %v3896 = vpack.c.bf16 %v3888, %v3886
        %3897 = vrot.lane.b32.xlu0 %v475, 80
        %v3898 = vpop.permute.xlu0 %3897
        %3899 = vrot.lane.b32.xlu0 %v476, 80
        %v3900 = vpop.permute.xlu0 %3899
        %3901 = vrot.lane.b32.xlu0 %v477, 80
        %v3902 = vpop.permute.xlu0 %3901
        %3903 = vrot.lane.b32.xlu0 %v478, 80
        %v3904 = vpop.permute.xlu0 %3903
        %3905 = vrot.lane.b32.xlu0 %v479, 80
        %v3906 = vpop.permute.xlu0 %3905
        %3907 = vrot.lane.b32.xlu0 %v480, 80
        %v3908 = vpop.permute.xlu0 %3907
        %3909 = vrot.lane.b32.xlu0 %v481, 80
        %v3910 = vpop.permute.xlu0 %3909
        %3911 = vrot.lane.b32.xlu0 %v482, 80
        %v3912 = vpop.permute.xlu0 %3911
        %3921 = vmatprep.subr.bf16.mxu0 0
        %3922 = vmatpush1.bf16.msra.mxu0 %v3912
        %3923 = vmatprep.subr.bf16.mxu0 0
        %3924 = vmatpush1.bf16.msra.mxu0 %v3910
        %3925 = vmatprep.subr.bf16.mxu0 0
        %3926 = vmatpush1.bf16.msra.mxu0 %v3908
        %3927 = vmatprep.subr.bf16.mxu0 0
        %3928 = vmatpush1.bf16.msra.mxu0 %v3906
        %3929 = vmatprep.subr.bf16.mxu0 0
        %3930 = vmatpush1.bf16.msra.mxu0 %v3904
        %3931 = vmatprep.subr.bf16.mxu0 0
        %3932 = vmatpush1.bf16.msra.mxu0 %v3902
        %3933 = vmatprep.subr.bf16.mxu0 0
        %3934 = vmatpush1.bf16.msra.mxu0 %v3900
        %3935 = vmatprep.subr.bf16.mxu0 0
        %3936 = vmatpush1.bf16.msra.mxu0 %v3898
        %3937 = vmatprep.subr.bf16.mxu0 0
        %3938 = vmatpush2.bf16.msra.mxu0 0
        %3939 = vmatprep.subr.bf16.mxu0 0
        %3940 = vmatpush2.bf16.msra.mxu0 0
        %3941 = vmatprep.subr.bf16.mxu0 0
        %3942 = vmatpush2.bf16.msra.mxu0 0
        %3943 = vmatprep.subr.bf16.mxu0 0
        %3944 = vmatpush2.bf16.msra.mxu0 0
        %3945 = vmatprep.subr.bf16.mxu0 0
        %3946 = vmatpush2.bf16.msra.mxu0 0
        %3947 = vmatprep.subr.bf16.mxu0 0
        %3948 = vmatpush2.bf16.msra.mxu0 0
        %3949 = vmatprep.subr.bf16.mxu0 0
        %3950 = vmatpush2.bf16.msra.mxu0 0
        %3951 = vmatprep.subr.bf16.mxu0 0
        %3952 = vmatpush2.bf16.msra.mxu0 0
        %3953 = vmatprep.mubr.bf16.mxu0 0
        %3954 = vmatmul.mubr.bf16.gmra.mxu0 %v3889
        %v3955 = vpop.f32.mrf.mxu0
        %v3956 = vadd.f32 0.0, %v3955
        %v3957 = vpop.f32.mrf.mxu0
        %v3958 = vpop.f32.mrf.mxu0
        %v3959 = vadd.f32 0.0, %v3958
        %v3960 = vpop.f32.mrf.mxu0
        %3961 = vmatprep.mubr.bf16.mxu0 0
        %3962 = vmatmul.mubr.bf16.gmra.mxu0 %v3890
        %v3963 = vpop.f32.mrf.mxu0
        %v3964 = vadd.f32 0.0, %v3963
        %v3965 = vpop.f32.mrf.mxu0
        %v3966 = vpop.f32.mrf.mxu0
        %v3967 = vadd.f32 0.0, %v3966
        %v3968 = vpop.f32.mrf.mxu0
        %3969 = vmatprep.mubr.bf16.mxu0 0
        %3970 = vmatmul.mubr.bf16.gmra.mxu0 %v3891
        %v3971 = vpop.f32.mrf.mxu0
        %v3972 = vadd.f32 0.0, %v3971
        %v3973 = vpop.f32.mrf.mxu0
        %v3974 = vpop.f32.mrf.mxu0
        %v3975 = vadd.f32 0.0, %v3974
        %v3976 = vpop.f32.mrf.mxu0
        %3977 = vmatprep.mubr.bf16.mxu0 0
        %3978 = vmatmul.mubr.bf16.gmra.mxu0 %v3892
        %v3979 = vpop.f32.mrf.mxu0
        %v3980 = vadd.f32 0.0, %v3979
        %v3981 = vpop.f32.mrf.mxu0
        %v3982 = vpop.f32.mrf.mxu0
        %v3983 = vadd.f32 0.0, %v3982
        %v3984 = vpop.f32.mrf.mxu0
        %3985 = vmatprep.mubr.bf16.mxu0 0
        %3986 = vmatmul.mubr.bf16.gmra.mxu0 %v3893
        %v3987 = vpop.f32.mrf.mxu0
        %v3988 = vadd.f32 0.0, %v3987
        %v3989 = vpop.f32.mrf.mxu0
        %v3990 = vpop.f32.mrf.mxu0
        %v3991 = vadd.f32 0.0, %v3990
        %v3992 = vpop.f32.mrf.mxu0
        %3993 = vmatprep.mubr.bf16.mxu0 0
        %3994 = vmatmul.mubr.bf16.gmra.mxu0 %v3894
        %v3995 = vpop.f32.mrf.mxu0
        %v3996 = vadd.f32 0.0, %v3995
        %v3997 = vpop.f32.mrf.mxu0
        %v3998 = vpop.f32.mrf.mxu0
        %v3999 = vadd.f32 0.0, %v3998
        %v4000 = vpop.f32.mrf.mxu0
        %4001 = vmatprep.mubr.bf16.mxu0 0
        %4002 = vmatmul.mubr.bf16.gmra.mxu0 %v3895
        %v4003 = vpop.f32.mrf.mxu0
        %v4004 = vadd.f32 0.0, %v4003
        %v4005 = vpop.f32.mrf.mxu0
        %v4006 = vpop.f32.mrf.mxu0
        %v4007 = vadd.f32 0.0, %v4006
        %v4008 = vpop.f32.mrf.mxu0
        %4009 = vmatprep.mubr.bf16.mxu0 0
        %4010 = vmatmul.mubr.bf16.gmra.mxu0 %v3896
        %v4011 = vpop.f32.mrf.mxu0
        %v4012 = vadd.f32 0.0, %v4011
        %v4013 = vpop.f32.mrf.mxu0
        %v4014 = vpop.f32.mrf.mxu0
        %v4015 = vadd.f32 0.0, %v4014
        %v4016 = vpop.f32.mrf.mxu0
        %4017 = vdwg.mxu0
        %4034 = vrot.lane.b32.xlu0 %v3956, 48
        %v4035 = vpop.permute.xlu0 %4034
        %4036 = vrot.lane.b32.xlu0 %v3959, 48
        %v4037 = vpop.permute.xlu0 %4036
        %4038 = vrot.lane.b32.xlu0 %v3964, 48
        %v4039 = vpop.permute.xlu0 %4038
        %4040 = vrot.lane.b32.xlu0 %v3967, 48
        %v4041 = vpop.permute.xlu0 %4040
        %4042 = vrot.lane.b32.xlu0 %v3972, 48
        %v4043 = vpop.permute.xlu0 %4042
        %4044 = vrot.lane.b32.xlu0 %v3975, 48
        %v4045 = vpop.permute.xlu0 %4044
        %4046 = vrot.lane.b32.xlu0 %v3980, 48
        %v4047 = vpop.permute.xlu0 %4046
        %4048 = vrot.lane.b32.xlu0 %v3983, 48
        %v4049 = vpop.permute.xlu0 %4048
        %4050 = vrot.lane.b32.xlu0 %v3988, 48
        %v4051 = vpop.permute.xlu0 %4050
        %4052 = vrot.lane.b32.xlu0 %v3991, 48
        %v4053 = vpop.permute.xlu0 %4052
        %4054 = vrot.lane.b32.xlu0 %v3996, 48
        %v4055 = vpop.permute.xlu0 %4054
        %4056 = vrot.lane.b32.xlu0 %v3999, 48
        %v4057 = vpop.permute.xlu0 %4056
        %4058 = vrot.lane.b32.xlu0 %v4004, 48
        %v4059 = vpop.permute.xlu0 %4058
        %4060 = vrot.lane.b32.xlu0 %v4007, 48
        %v4061 = vpop.permute.xlu0 %4060
        %4062 = vrot.lane.b32.xlu0 %v4012, 48
        %v4063 = vpop.permute.xlu0 %4062
        %4064 = vrot.lane.b32.xlu0 %v4015, 48
        %v4065 = vpop.permute.xlu0 %4064
        %vm4082 = vcmask 458112
        %4083 = vst.msk [vmem:[#allocation2] sm:$0xff] %vm4082, %v4035
        %4084 = vst.msk [vmem:[#allocation2 + $0x8] sm:$0xff] %vm4082, %v4037
        %4085 = vst.msk [vmem:[#allocation2 + $0x10] sm:$0xff] %vm4082, %v4039
        %4086 = vst.msk [vmem:[#allocation2 + $0x18] sm:$0xff] %vm4082, %v4041
        %4087 = vst.msk [vmem:[#allocation2 + $0x20] sm:$0xff] %vm4082, %v4043
        %4088 = vst.msk [vmem:[#allocation2 + $0x28] sm:$0xff] %vm4082, %v4045
        %4089 = vst.msk [vmem:[#allocation2 + $0x30] sm:$0xff] %vm4082, %v4047
        %4090 = vst.msk [vmem:[#allocation2 + $0x38] sm:$0xff] %vm4082, %v4049
        %4091 = vst.msk [vmem:[#allocation2 + $0x40] sm:$0xff] %vm4082, %v4051
        %4092 = vst.msk [vmem:[#allocation2 + $0x48] sm:$0xff] %vm4082, %v4053
        %4093 = vst.msk [vmem:[#allocation2 + $0x50] sm:$0xff] %vm4082, %v4055
        %4094 = vst.msk [vmem:[#allocation2 + $0x58] sm:$0xff] %vm4082, %v4057
        %4095 = vst.msk [vmem:[#allocation2 + $0x60] sm:$0xff] %vm4082, %v4059
        %4096 = vst.msk [vmem:[#allocation2 + $0x68] sm:$0xff] %vm4082, %v4061
        %4097 = vst.msk [vmem:[#allocation2 + $0x70] sm:$0xff] %vm4082, %v4063
        %4098 = vst.msk [vmem:[#allocation2 + $0x78] sm:$0xff] %vm4082, %v4065
        %4099 = vset.pattern.permute.xlu0 15
        %4100 = vperm.xlu0 %4099, %v555
        %v4101 = vpop.permute.xlu0 %4100
        %4103 = vset.pattern.permute.xlu0 15
        %4104 = vperm.xlu0 %4103, %v558
        %v4105 = vpop.permute.xlu0 %4104
        %4107 = vset.pattern.permute.xlu0 15
        %4108 = vperm.xlu0 %4107, %v563
        %v4109 = vpop.permute.xlu0 %4108
        %4111 = vset.pattern.permute.xlu0 15
        %4112 = vperm.xlu0 %4111, %v566
        %v4113 = vpop.permute.xlu0 %4112
        %4115 = vset.pattern.permute.xlu0 15
        %4116 = vperm.xlu0 %4115, %v571
        %v4117 = vpop.permute.xlu0 %4116
        %4119 = vset.pattern.permute.xlu0 15
        %4120 = vperm.xlu0 %4119, %v574
        %v4121 = vpop.permute.xlu0 %4120
        %4123 = vset.pattern.permute.xlu0 15
        %4124 = vperm.xlu0 %4123, %v579
        %v4125 = vpop.permute.xlu0 %4124
        %4127 = vset.pattern.permute.xlu0 15
        %4128 = vperm.xlu0 %4127, %v582
        %v4129 = vpop.permute.xlu0 %4128
        %4131 = vset.pattern.permute.xlu0 15
        %4132 = vperm.xlu0 %4131, %v587
        %v4133 = vpop.permute.xlu0 %4132
        %4135 = vset.pattern.permute.xlu0 15
        %4136 = vperm.xlu0 %4135, %v590
        %v4137 = vpop.permute.xlu0 %4136
        %4139 = vset.pattern.permute.xlu0 15
        %4140 = vperm.xlu0 %4139, %v595
        %v4141 = vpop.permute.xlu0 %4140
        %4143 = vset.pattern.permute.xlu0 15
        %4144 = vperm.xlu0 %4143, %v598
        %v4145 = vpop.permute.xlu0 %4144
        %4147 = vset.pattern.permute.xlu0 15
        %4148 = vperm.xlu0 %4147, %v603
        %v4149 = vpop.permute.xlu0 %4148
        %4151 = vset.pattern.permute.xlu0 15
        %4152 = vperm.xlu0 %4151, %v606
        %v4153 = vpop.permute.xlu0 %4152
        %4155 = vset.pattern.permute.xlu0 15
        %4156 = vperm.xlu0 %4155, %v611
        %v4157 = vpop.permute.xlu0 %4156
        %4159 = vset.pattern.permute.xlu0 15
        %4160 = vperm.xlu0 %4159, %v614
        %v4161 = vpop.permute.xlu0 %4160
        %v4163 = vlaneseq
        %v4164 = vshrl.u32 %v4163, 7
        %v4165 = vsub.s32 7, %v4164
        %v4166 = vrot.slane %v633, %v4165
        %v4167 = vadd.f32 %v4101, %v4166
        %v4168 = vadd.f32 %v4105, %v4166
        %v4169 = vadd.f32 %v4109, %v4166
        %v4170 = vadd.f32 %v4113, %v4166
        %v4171 = vadd.f32 %v4117, %v4166
        %v4172 = vadd.f32 %v4121, %v4166
        %v4173 = vadd.f32 %v4125, %v4166
        %v4174 = vadd.f32 %v4129, %v4166
        %v4175 = vadd.f32 %v4133, %v4166
        %v4176 = vadd.f32 %v4137, %v4166
        %v4177 = vadd.f32 %v4141, %v4166
        %v4178 = vadd.f32 %v4145, %v4166
        %v4179 = vadd.f32 %v4149, %v4166
        %v4180 = vadd.f32 %v4153, %v4166
        %v4181 = vadd.f32 %v4157, %v4166
        %v4182 = vadd.f32 %v4161, %v4166
        %vm4183 = vcmp.ge.f32.partialorder %v4167, 0.0
        %vm4184 = vcmp.ge.f32.partialorder %v4168, 0.0
        %vm4185 = vcmp.ge.f32.partialorder %v4169, 0.0
        %vm4186 = vcmp.ge.f32.partialorder %v4170, 0.0
        %vm4187 = vcmp.ge.f32.partialorder %v4171, 0.0
        %vm4188 = vcmp.ge.f32.partialorder %v4172, 0.0
        %vm4189 = vcmp.ge.f32.partialorder %v4173, 0.0
        %vm4190 = vcmp.ge.f32.partialorder %v4174, 0.0
        %vm4191 = vcmp.ge.f32.partialorder %v4175, 0.0
        %vm4192 = vcmp.ge.f32.partialorder %v4176, 0.0
        %vm4193 = vcmp.ge.f32.partialorder %v4177, 0.0
        %vm4194 = vcmp.ge.f32.partialorder %v4178, 0.0
        %vm4195 = vcmp.ge.f32.partialorder %v4179, 0.0
        %vm4196 = vcmp.ge.f32.partialorder %v4180, 0.0
        %vm4197 = vcmp.ge.f32.partialorder %v4181, 0.0
        %vm4198 = vcmp.ge.f32.partialorder %v4182, 0.0
        %v4199 = vmul.f32 %v4167, 0.2
        %v4200 = vmul.f32 %v4168, 0.2
        %v4201 = vmul.f32 %v4169, 0.2
        %v4202 = vmul.f32 %v4170, 0.2
        %v4203 = vmul.f32 %v4171, 0.2
        %v4204 = vmul.f32 %v4172, 0.2
        %v4205 = vmul.f32 %v4173, 0.2
        %v4206 = vmul.f32 %v4174, 0.2
        %v4207 = vmul.f32 %v4175, 0.2
        %v4208 = vmul.f32 %v4176, 0.2
        %v4209 = vmul.f32 %v4177, 0.2
        %v4210 = vmul.f32 %v4178, 0.2
        %v4211 = vmul.f32 %v4179, 0.2
        %v4212 = vmul.f32 %v4180, 0.2
        %v4213 = vmul.f32 %v4181, 0.2
        %v4214 = vmul.f32 %v4182, 0.2
        %v4215 = vsel %vm4183, %v4167, %v4199
        %v4216 = vsel %vm4184, %v4168, %v4200
        %v4217 = vsel %vm4185, %v4169, %v4201
        %v4218 = vsel %vm4186, %v4170, %v4202
        %v4219 = vsel %vm4187, %v4171, %v4203
        %v4220 = vsel %vm4188, %v4172, %v4204
        %v4221 = vsel %vm4189, %v4173, %v4205
        %v4222 = vsel %vm4190, %v4174, %v4206
        %v4223 = vsel %vm4191, %v4175, %v4207
        %v4224 = vsel %vm4192, %v4176, %v4208
        %v4225 = vsel %vm4193, %v4177, %v4209
        %v4226 = vsel %vm4194, %v4178, %v4210
        %v4227 = vsel %vm4195, %v4179, %v4211
        %v4228 = vsel %vm4196, %v4180, %v4212
        %v4229 = vsel %vm4197, %v4181, %v4213
        %v4230 = vsel %vm4198, %v4182, %v4214
        %v4231 = vadd.f32 %v4215, %v323
        %v4232 = vadd.f32 %v4216, %v324
        %v4233 = vadd.f32 %v4217, %v325
        %v4234 = vadd.f32 %v4218, %v326
        %v4235 = vadd.f32 %v4219, %v327
        %v4236 = vadd.f32 %v4220, %v328
        %v4237 = vadd.f32 %v4221, %v329
        %v4238 = vadd.f32 %v4222, %v330
        %v4239 = vadd.f32 %v4223, %v331
        %v4240 = vadd.f32 %v4224, %v332
        %v4241 = vadd.f32 %v4225, %v333
        %v4242 = vadd.f32 %v4226, %v334
        %v4243 = vadd.f32 %v4227, %v335
        %v4244 = vadd.f32 %v4228, %v336
        %v4245 = vadd.f32 %v4229, %v337
        %v4246 = vadd.f32 %v4230, %v338
        %4247 = vmax.xlane.f32.xlu0 %v4231
        %v4248 = vpop.xlane.xlu0 %4247
        %4249 = vmax.xlane.f32.xlu0 %v4232
        %v4250 = vpop.xlane.xlu0 %4249
        %4251 = vmax.xlane.f32.xlu0 %v4233
        %v4252 = vpop.xlane.xlu0 %4251
        %4253 = vmax.xlane.f32.xlu0 %v4234
        %v4254 = vpop.xlane.xlu0 %4253
        %4255 = vmax.xlane.f32.xlu0 %v4235
        %v4256 = vpop.xlane.xlu0 %4255
        %4257 = vmax.xlane.f32.xlu0 %v4236
        %v4258 = vpop.xlane.xlu0 %4257
        %4259 = vmax.xlane.f32.xlu0 %v4237
        %v4260 = vpop.xlane.xlu0 %4259
        %4261 = vmax.xlane.f32.xlu0 %v4238
        %v4262 = vpop.xlane.xlu0 %4261
        %4263 = vmax.xlane.f32.xlu0 %v4239
        %v4264 = vpop.xlane.xlu0 %4263
        %4265 = vmax.xlane.f32.xlu0 %v4240
        %v4266 = vpop.xlane.xlu0 %4265
        %4267 = vmax.xlane.f32.xlu0 %v4241
        %v4268 = vpop.xlane.xlu0 %4267
        %4269 = vmax.xlane.f32.xlu0 %v4242
        %v4270 = vpop.xlane.xlu0 %4269
        %4271 = vmax.xlane.f32.xlu0 %v4243
        %v4272 = vpop.xlane.xlu0 %4271
        %4273 = vmax.xlane.f32.xlu0 %v4244
        %v4274 = vpop.xlane.xlu0 %4273
        %4275 = vmax.xlane.f32.xlu0 %v4245
        %v4276 = vpop.xlane.xlu0 %4275
        %4277 = vmax.xlane.f32.xlu0 %v4246
        %v4278 = vpop.xlane.xlu0 %4277
        %v4279 = vsub.f32 %v4231, %v4248
        %v4280 = vsub.f32 %v4232, %v4250
        %v4281 = vsub.f32 %v4233, %v4252
        %v4282 = vsub.f32 %v4234, %v4254
        %v4283 = vsub.f32 %v4235, %v4256
        %v4284 = vsub.f32 %v4236, %v4258
        %v4285 = vsub.f32 %v4237, %v4260
        %v4286 = vsub.f32 %v4238, %v4262
        %v4287 = vsub.f32 %v4239, %v4264
        %v4288 = vsub.f32 %v4240, %v4266
        %v4289 = vsub.f32 %v4241, %v4268
        %v4290 = vsub.f32 %v4242, %v4270
        %v4291 = vsub.f32 %v4243, %v4272
        %v4292 = vsub.f32 %v4244, %v4274
        %v4293 = vsub.f32 %v4245, %v4276
        %v4294 = vsub.f32 %v4246, %v4278
        %v4295 = vmul.f32 %v4279, 1.442695
        %v4296 = vpow.pop %v4295
        %v4297 = vmul.f32 %v4280, 1.442695
        %v4298 = vpow.pop %v4297
        %v4299 = vmul.f32 %v4281, 1.442695
        %v4300 = vpow.pop %v4299
        %v4301 = vmul.f32 %v4282, 1.442695
        %v4302 = vpow.pop %v4301
        %v4303 = vmul.f32 %v4283, 1.442695
        %v4304 = vpow.pop %v4303
        %v4305 = vmul.f32 %v4284, 1.442695
        %v4306 = vpow.pop %v4305
        %v4307 = vmul.f32 %v4285, 1.442695
        %v4308 = vpow.pop %v4307
        %v4309 = vmul.f32 %v4286, 1.442695
        %v4310 = vpow.pop %v4309
        %v4311 = vmul.f32 %v4287, 1.442695
        %v4312 = vpow.pop %v4311
        %v4313 = vmul.f32 %v4288, 1.442695
        %v4314 = vpow.pop %v4313
        %v4315 = vmul.f32 %v4289, 1.442695
        %v4316 = vpow.pop %v4315
        %v4317 = vmul.f32 %v4290, 1.442695
        %v4318 = vpow.pop %v4317
        %v4319 = vmul.f32 %v4291, 1.442695
        %v4320 = vpow.pop %v4319
        %v4321 = vmul.f32 %v4292, 1.442695
        %v4322 = vpow.pop %v4321
        %v4323 = vmul.f32 %v4293, 1.442695
        %v4324 = vpow.pop %v4323
        %v4325 = vmul.f32 %v4294, 1.442695
        %v4326 = vpow.pop %v4325
        %4327 = vadd.xlane.f32.xlu0 %v4296
        %v4328 = vpop.xlane.xlu0 %4327
        %4329 = vadd.xlane.f32.xlu0 %v4298
        %v4330 = vpop.xlane.xlu0 %4329
        %4331 = vadd.xlane.f32.xlu0 %v4300
        %v4332 = vpop.xlane.xlu0 %4331
        %4333 = vadd.xlane.f32.xlu0 %v4302
        %v4334 = vpop.xlane.xlu0 %4333
        %4335 = vadd.xlane.f32.xlu0 %v4304
        %v4336 = vpop.xlane.xlu0 %4335
        %4337 = vadd.xlane.f32.xlu0 %v4306
        %v4338 = vpop.xlane.xlu0 %4337
        %4339 = vadd.xlane.f32.xlu0 %v4308
        %v4340 = vpop.xlane.xlu0 %4339
        %4341 = vadd.xlane.f32.xlu0 %v4310
        %v4342 = vpop.xlane.xlu0 %4341
        %4343 = vadd.xlane.f32.xlu0 %v4312
        %v4344 = vpop.xlane.xlu0 %4343
        %4345 = vadd.xlane.f32.xlu0 %v4314
        %v4346 = vpop.xlane.xlu0 %4345
        %4347 = vadd.xlane.f32.xlu0 %v4316
        %v4348 = vpop.xlane.xlu0 %4347
        %4349 = vadd.xlane.f32.xlu0 %v4318
        %v4350 = vpop.xlane.xlu0 %4349
        %4351 = vadd.xlane.f32.xlu0 %v4320
        %v4352 = vpop.xlane.xlu0 %4351
        %4353 = vadd.xlane.f32.xlu0 %v4322
        %v4354 = vpop.xlane.xlu0 %4353
        %4355 = vadd.xlane.f32.xlu0 %v4324
        %v4356 = vpop.xlane.xlu0 %4355
        %4357 = vadd.xlane.f32.xlu0 %v4326
        %v4358 = vpop.xlane.xlu0 %4357
        %v4359 = vrcp.pop %v4328
        %v4360 = vmul.f32 %v4296, %v4359
        %v4361 = vrcp.pop %v4330
        %v4362 = vmul.f32 %v4298, %v4361
        %v4363 = vrcp.pop %v4332
        %v4364 = vmul.f32 %v4300, %v4363
        %v4365 = vrcp.pop %v4334
        %v4366 = vmul.f32 %v4302, %v4365
        %v4367 = vrcp.pop %v4336
        %v4368 = vmul.f32 %v4304, %v4367
        %v4369 = vrcp.pop %v4338
        %v4370 = vmul.f32 %v4306, %v4369
        %v4371 = vrcp.pop %v4340
        %v4372 = vmul.f32 %v4308, %v4371
        %v4373 = vrcp.pop %v4342
        %v4374 = vmul.f32 %v4310, %v4373
        %v4375 = vrcp.pop %v4344
        %v4376 = vmul.f32 %v4312, %v4375
        %v4377 = vrcp.pop %v4346
        %v4378 = vmul.f32 %v4314, %v4377
        %v4379 = vrcp.pop %v4348
        %v4380 = vmul.f32 %v4316, %v4379
        %v4381 = vrcp.pop %v4350
        %v4382 = vmul.f32 %v4318, %v4381
        %v4383 = vrcp.pop %v4352
        %v4384 = vmul.f32 %v4320, %v4383
        %v4385 = vrcp.pop %v4354
        %v4386 = vmul.f32 %v4322, %v4385
        %v4387 = vrcp.pop %v4356
        %v4388 = vmul.f32 %v4324, %v4387
        %v4389 = vrcp.pop %v4358
        %v4390 = vmul.f32 %v4326, %v4389
        %v4391 = vpack.c.bf16 %v4362, %v4360
        %v4392 = vpack.c.bf16 %v4366, %v4364
        %v4393 = vpack.c.bf16 %v4370, %v4368
        %v4394 = vpack.c.bf16 %v4374, %v4372
        %v4395 = vpack.c.bf16 %v4378, %v4376
        %v4396 = vpack.c.bf16 %v4382, %v4380
        %v4397 = vpack.c.bf16 %v4386, %v4384
        %v4398 = vpack.c.bf16 %v4390, %v4388
        %4399 = vrot.lane.b32.xlu0 %v475, 72
        %v4400 = vpop.permute.xlu0 %4399
        %4401 = vrot.lane.b32.xlu0 %v476, 72
        %v4402 = vpop.permute.xlu0 %4401
        %4403 = vrot.lane.b32.xlu0 %v477, 72
        %v4404 = vpop.permute.xlu0 %4403
        %4405 = vrot.lane.b32.xlu0 %v478, 72
        %v4406 = vpop.permute.xlu0 %4405
        %4407 = vrot.lane.b32.xlu0 %v479, 72
        %v4408 = vpop.permute.xlu0 %4407
        %4409 = vrot.lane.b32.xlu0 %v480, 72
        %v4410 = vpop.permute.xlu0 %4409
        %4411 = vrot.lane.b32.xlu0 %v481, 72
        %v4412 = vpop.permute.xlu0 %4411
        %4413 = vrot.lane.b32.xlu0 %v482, 72
        %v4414 = vpop.permute.xlu0 %4413
        %4423 = vmatprep.subr.bf16.mxu0 0
        %4424 = vmatpush1.bf16.msra.mxu0 %v4414
        %4425 = vmatprep.subr.bf16.mxu0 0
        %4426 = vmatpush1.bf16.msra.mxu0 %v4412
        %4427 = vmatprep.subr.bf16.mxu0 0
        %4428 = vmatpush1.bf16.msra.mxu0 %v4410
        %4429 = vmatprep.subr.bf16.mxu0 0
        %4430 = vmatpush1.bf16.msra.mxu0 %v4408
        %4431 = vmatprep.subr.bf16.mxu0 0
        %4432 = vmatpush1.bf16.msra.mxu0 %v4406
        %4433 = vmatprep.subr.bf16.mxu0 0
        %4434 = vmatpush1.bf16.msra.mxu0 %v4404
        %4435 = vmatprep.subr.bf16.mxu0 0
        %4436 = vmatpush1.bf16.msra.mxu0 %v4402
        %4437 = vmatprep.subr.bf16.mxu0 0
        %4438 = vmatpush1.bf16.msra.mxu0 %v4400
        %4439 = vmatprep.subr.bf16.mxu0 0
        %4440 = vmatpush2.bf16.msra.mxu0 0
        %4441 = vmatprep.subr.bf16.mxu0 0
        %4442 = vmatpush2.bf16.msra.mxu0 0
        %4443 = vmatprep.subr.bf16.mxu0 0
        %4444 = vmatpush2.bf16.msra.mxu0 0
        %4445 = vmatprep.subr.bf16.mxu0 0
        %4446 = vmatpush2.bf16.msra.mxu0 0
        %4447 = vmatprep.subr.bf16.mxu0 0
        %4448 = vmatpush2.bf16.msra.mxu0 0
        %4449 = vmatprep.subr.bf16.mxu0 0
        %4450 = vmatpush2.bf16.msra.mxu0 0
        %4451 = vmatprep.subr.bf16.mxu0 0
        %4452 = vmatpush2.bf16.msra.mxu0 0
        %4453 = vmatprep.subr.bf16.mxu0 0
        %4454 = vmatpush2.bf16.msra.mxu0 0
        %4455 = vmatprep.mubr.bf16.mxu0 0
        %4456 = vmatmul.mubr.bf16.gmra.mxu0 %v4391
        %v4457 = vpop.f32.mrf.mxu0
        %v4458 = vadd.f32 0.0, %v4457
        %v4459 = vpop.f32.mrf.mxu0
        %v4460 = vpop.f32.mrf.mxu0
        %v4461 = vadd.f32 0.0, %v4460
        %v4462 = vpop.f32.mrf.mxu0
        %4463 = vmatprep.mubr.bf16.mxu0 0
        %4464 = vmatmul.mubr.bf16.gmra.mxu0 %v4392
        %v4465 = vpop.f32.mrf.mxu0
        %v4466 = vadd.f32 0.0, %v4465
        %v4467 = vpop.f32.mrf.mxu0
        %v4468 = vpop.f32.mrf.mxu0
        %v4469 = vadd.f32 0.0, %v4468
        %v4470 = vpop.f32.mrf.mxu0
        %4471 = vmatprep.mubr.bf16.mxu0 0
        %4472 = vmatmul.mubr.bf16.gmra.mxu0 %v4393
        %v4473 = vpop.f32.mrf.mxu0
        %v4474 = vadd.f32 0.0, %v4473
        %v4475 = vpop.f32.mrf.mxu0
        %v4476 = vpop.f32.mrf.mxu0
        %v4477 = vadd.f32 0.0, %v4476
        %v4478 = vpop.f32.mrf.mxu0
        %4479 = vmatprep.mubr.bf16.mxu0 0
        %4480 = vmatmul.mubr.bf16.gmra.mxu0 %v4394
        %v4481 = vpop.f32.mrf.mxu0
        %v4482 = vadd.f32 0.0, %v4481
        %v4483 = vpop.f32.mrf.mxu0
        %v4484 = vpop.f32.mrf.mxu0
        %v4485 = vadd.f32 0.0, %v4484
        %v4486 = vpop.f32.mrf.mxu0
        %4487 = vmatprep.mubr.bf16.mxu0 0
        %4488 = vmatmul.mubr.bf16.gmra.mxu0 %v4395
        %v4489 = vpop.f32.mrf.mxu0
        %v4490 = vadd.f32 0.0, %v4489
        %v4491 = vpop.f32.mrf.mxu0
        %v4492 = vpop.f32.mrf.mxu0
        %v4493 = vadd.f32 0.0, %v4492
        %v4494 = vpop.f32.mrf.mxu0
        %4495 = vmatprep.mubr.bf16.mxu0 0
        %4496 = vmatmul.mubr.bf16.gmra.mxu0 %v4396
        %v4497 = vpop.f32.mrf.mxu0
        %v4498 = vadd.f32 0.0, %v4497
        %v4499 = vpop.f32.mrf.mxu0
        %v4500 = vpop.f32.mrf.mxu0
        %v4501 = vadd.f32 0.0, %v4500
        %v4502 = vpop.f32.mrf.mxu0
        %4503 = vmatprep.mubr.bf16.mxu0 0
        %4504 = vmatmul.mubr.bf16.gmra.mxu0 %v4397
        %v4505 = vpop.f32.mrf.mxu0
        %v4506 = vadd.f32 0.0, %v4505
        %v4507 = vpop.f32.mrf.mxu0
        %v4508 = vpop.f32.mrf.mxu0
        %v4509 = vadd.f32 0.0, %v4508
        %v4510 = vpop.f32.mrf.mxu0
        %4511 = vmatprep.mubr.bf16.mxu0 0
        %4512 = vmatmul.mubr.bf16.gmra.mxu0 %v4398
        %v4513 = vpop.f32.mrf.mxu0
        %v4514 = vadd.f32 0.0, %v4513
        %v4515 = vpop.f32.mrf.mxu0
        %v4516 = vpop.f32.mrf.mxu0
        %v4517 = vadd.f32 0.0, %v4516
        %v4518 = vpop.f32.mrf.mxu0
        %4519 = vdwg.mxu0
        %4536 = vrot.lane.b32.xlu0 %v4458, 56
        %v4537 = vpop.permute.xlu0 %4536
        %4538 = vrot.lane.b32.xlu0 %v4461, 56
        %v4539 = vpop.permute.xlu0 %4538
        %4540 = vrot.lane.b32.xlu0 %v4466, 56
        %v4541 = vpop.permute.xlu0 %4540
        %4542 = vrot.lane.b32.xlu0 %v4469, 56
        %v4543 = vpop.permute.xlu0 %4542
        %4544 = vrot.lane.b32.xlu0 %v4474, 56
        %v4545 = vpop.permute.xlu0 %4544
        %4546 = vrot.lane.b32.xlu0 %v4477, 56
        %v4547 = vpop.permute.xlu0 %4546
        %4548 = vrot.lane.b32.xlu0 %v4482, 56
        %v4549 = vpop.permute.xlu0 %4548
        %4550 = vrot.lane.b32.xlu0 %v4485, 56
        %v4551 = vpop.permute.xlu0 %4550
        %4552 = vrot.lane.b32.xlu0 %v4490, 56
        %v4553 = vpop.permute.xlu0 %4552
        %4554 = vrot.lane.b32.xlu0 %v4493, 56
        %v4555 = vpop.permute.xlu0 %4554
        %4556 = vrot.lane.b32.xlu0 %v4498, 56
        %v4557 = vpop.permute.xlu0 %4556
        %4558 = vrot.lane.b32.xlu0 %v4501, 56
        %v4559 = vpop.permute.xlu0 %4558
        %4560 = vrot.lane.b32.xlu0 %v4506, 56
        %v4561 = vpop.permute.xlu0 %4560
        %4562 = vrot.lane.b32.xlu0 %v4509, 56
        %v4563 = vpop.permute.xlu0 %4562
        %4564 = vrot.lane.b32.xlu0 %v4514, 56
        %v4565 = vpop.permute.xlu0 %4564
        %4566 = vrot.lane.b32.xlu0 %v4517, 56
        %v4567 = vpop.permute.xlu0 %4566
        %vm4584 = vcmask 523712
        %4585 = vst.msk [vmem:[#allocation2] sm:$0xff] %vm4584, %v4537
        %4586 = vst.msk [vmem:[#allocation2 + $0x8] sm:$0xff] %vm4584, %v4539
        %4587 = vst.msk [vmem:[#allocation2 + $0x10] sm:$0xff] %vm4584, %v4541
        %4588 = vst.msk [vmem:[#allocation2 + $0x18] sm:$0xff] %vm4584, %v4543
        %4589 = vst.msk [vmem:[#allocation2 + $0x20] sm:$0xff] %vm4584, %v4545
        %4590 = vst.msk [vmem:[#allocation2 + $0x28] sm:$0xff] %vm4584, %v4547
        %4591 = vst.msk [vmem:[#allocation2 + $0x30] sm:$0xff] %vm4584, %v4549
        %4592 = vst.msk [vmem:[#allocation2 + $0x38] sm:$0xff] %vm4584, %v4551
        %4593 = vst.msk [vmem:[#allocation2 + $0x40] sm:$0xff] %vm4584, %v4553
        %4594 = vst.msk [vmem:[#allocation2 + $0x48] sm:$0xff] %vm4584, %v4555
        %4595 = vst.msk [vmem:[#allocation2 + $0x50] sm:$0xff] %vm4584, %v4557
        %4596 = vst.msk [vmem:[#allocation2 + $0x58] sm:$0xff] %vm4584, %v4559
        %4597 = vst.msk [vmem:[#allocation2 + $0x60] sm:$0xff] %vm4584, %v4561
        %4598 = vst.msk [vmem:[#allocation2 + $0x68] sm:$0xff] %vm4584, %v4563
        %4599 = vst.msk [vmem:[#allocation2 + $0x70] sm:$0xff] %vm4584, %v4565
        %4600 = vst.msk [vmem:[#allocation2 + $0x78] sm:$0xff] %vm4584, %v4567
        %v4601 = vld [vmem:[#allocation2] sm:$0xff]
        %v4602 = vld [vmem:[#allocation2 + $0x8] sm:$0xff]
        %v4603 = vld [vmem:[#allocation2 + $0x10] sm:$0xff]
        %v4604 = vld [vmem:[#allocation2 + $0x18] sm:$0xff]
        %v4605 = vld [vmem:[#allocation2 + $0x20] sm:$0xff]
        %v4606 = vld [vmem:[#allocation2 + $0x28] sm:$0xff]
        %v4607 = vld [vmem:[#allocation2 + $0x30] sm:$0xff]
        %v4608 = vld [vmem:[#allocation2 + $0x38] sm:$0xff]
        %v4609 = vld [vmem:[#allocation2 + $0x40] sm:$0xff]
        %v4610 = vld [vmem:[#allocation2 + $0x48] sm:$0xff]
        %v4611 = vld [vmem:[#allocation2 + $0x50] sm:$0xff]
        %v4612 = vld [vmem:[#allocation2 + $0x58] sm:$0xff]
        %v4613 = vld [vmem:[#allocation2 + $0x60] sm:$0xff]
        %v4614 = vld [vmem:[#allocation2 + $0x68] sm:$0xff]
        %v4615 = vld [vmem:[#allocation2 + $0x70] sm:$0xff]
        %v4616 = vld [vmem:[#allocation2 + $0x78] sm:$0xff]
        %v4617 = vld [vmem:[%s4] sm:$0x1]
        %v4619 = vlaneseq
        %v4620 = vshrl.u32 %v4619, 7
        %v4621 = vsub.s32 0, %v4620
        %v4622 = vrot.slane %v4617, %v4621
        %v4624 = vadd.f32 %v4601, %v4622
        %v4625 = vadd.f32 %v4602, %v4622
        %v4626 = vadd.f32 %v4603, %v4622
        %v4627 = vadd.f32 %v4604, %v4622
        %v4628 = vadd.f32 %v4605, %v4622
        %v4629 = vadd.f32 %v4606, %v4622
        %v4630 = vadd.f32 %v4607, %v4622
        %v4631 = vadd.f32 %v4608, %v4622
        %v4632 = vadd.f32 %v4609, %v4622
        %v4633 = vadd.f32 %v4610, %v4622
        %v4634 = vadd.f32 %v4611, %v4622
        %v4635 = vadd.f32 %v4612, %v4622
        %v4636 = vadd.f32 %v4613, %v4622
        %v4637 = vadd.f32 %v4614, %v4622
        %v4638 = vadd.f32 %v4615, %v4622
        %v4639 = vadd.f32 %v4616, %v4622
        %vm4640 = vcmp.gt.f32.partialorder %v4624, 0.0
        %vm4641 = vcmp.gt.f32.partialorder %v4625, 0.0
        %vm4642 = vcmp.gt.f32.partialorder %v4626, 0.0
        %vm4643 = vcmp.gt.f32.partialorder %v4627, 0.0
        %vm4644 = vcmp.gt.f32.partialorder %v4628, 0.0
        %vm4645 = vcmp.gt.f32.partialorder %v4629, 0.0
        %vm4646 = vcmp.gt.f32.partialorder %v4630, 0.0
        %vm4647 = vcmp.gt.f32.partialorder %v4631, 0.0
        %vm4648 = vcmp.gt.f32.partialorder %v4632, 0.0
        %vm4649 = vcmp.gt.f32.partialorder %v4633, 0.0
        %vm4650 = vcmp.gt.f32.partialorder %v4634, 0.0
        %vm4651 = vcmp.gt.f32.partialorder %v4635, 0.0
        %vm4652 = vcmp.gt.f32.partialorder %v4636, 0.0
        %vm4653 = vcmp.gt.f32.partialorder %v4637, 0.0
        %vm4654 = vcmp.gt.f32.partialorder %v4638, 0.0
        %vm4655 = vcmp.gt.f32.partialorder %v4639, 0.0
        %v4656 = vmul.f32 %v4624, 1.442695
        %v4657 = vpow.pop %v4656
        %v4658 = vmul.f32 %v4625, 1.442695
        %v4659 = vpow.pop %v4658
        %v4660 = vmul.f32 %v4626, 1.442695
        %v4661 = vpow.pop %v4660
        %v4662 = vmul.f32 %v4627, 1.442695
        %v4663 = vpow.pop %v4662
        %v4664 = vmul.f32 %v4628, 1.442695
        %v4665 = vpow.pop %v4664
        %v4666 = vmul.f32 %v4629, 1.442695
        %v4667 = vpow.pop %v4666
        %v4668 = vmul.f32 %v4630, 1.442695
        %v4669 = vpow.pop %v4668
        %v4670 = vmul.f32 %v4631, 1.442695
        %v4671 = vpow.pop %v4670
        %v4672 = vmul.f32 %v4632, 1.442695
        %v4673 = vpow.pop %v4672
        %v4674 = vmul.f32 %v4633, 1.442695
        %v4675 = vpow.pop %v4674
        %v4676 = vmul.f32 %v4634, 1.442695
        %v4677 = vpow.pop %v4676
        %v4678 = vmul.f32 %v4635, 1.442695
        %v4679 = vpow.pop %v4678
        %v4680 = vmul.f32 %v4636, 1.442695
        %v4681 = vpow.pop %v4680
        %v4682 = vmul.f32 %v4637, 1.442695
        %v4683 = vpow.pop %v4682
        %v4684 = vmul.f32 %v4638, 1.442695
        %v4685 = vpow.pop %v4684
        %v4686 = vmul.f32 %v4639, 1.442695
        %v4687 = vpow.pop %v4686
        %v4688 = vsub.f32 %v4657, 1.0
        %v4689 = vsub.f32 %v4659, 1.0
        %v4690 = vsub.f32 %v4661, 1.0
        %v4691 = vsub.f32 %v4663, 1.0
        %v4692 = vsub.f32 %v4665, 1.0
        %v4693 = vsub.f32 %v4667, 1.0
        %v4694 = vsub.f32 %v4669, 1.0
        %v4695 = vsub.f32 %v4671, 1.0
        %v4696 = vsub.f32 %v4673, 1.0
        %v4697 = vsub.f32 %v4675, 1.0
        %v4698 = vsub.f32 %v4677, 1.0
        %v4699 = vsub.f32 %v4679, 1.0
        %v4700 = vsub.f32 %v4681, 1.0
        %v4701 = vsub.f32 %v4683, 1.0
        %v4702 = vsub.f32 %v4685, 1.0
        %v4703 = vsub.f32 %v4687, 1.0
        %v4704 = vsel %vm4640, %v4624, %v4688
        %v4705 = vsel %vm4641, %v4625, %v4689
        %v4706 = vsel %vm4642, %v4626, %v4690
        %v4707 = vsel %vm4643, %v4627, %v4691
        %v4708 = vsel %vm4644, %v4628, %v4692
        %v4709 = vsel %vm4645, %v4629, %v4693
        %v4710 = vsel %vm4646, %v4630, %v4694
        %v4711 = vsel %vm4647, %v4631, %v4695
        %v4712 = vsel %vm4648, %v4632, %v4696
        %v4713 = vsel %vm4649, %v4633, %v4697
        %v4714 = vsel %vm4650, %v4634, %v4698
        %v4715 = vsel %vm4651, %v4635, %v4699
        %v4716 = vsel %vm4652, %v4636, %v4700
        %v4717 = vsel %vm4653, %v4637, %v4701
        %v4718 = vsel %vm4654, %v4638, %v4702
        %v4719 = vsel %vm4655, %v4639, %v4703
        %v4720 = vpack.c.bf16 %v4705, %v4704
        %v4721 = vpack.c.bf16 %v4707, %v4706
        %v4722 = vpack.c.bf16 %v4709, %v4708
        %v4723 = vpack.c.bf16 %v4711, %v4710
        %v4724 = vpack.c.bf16 %v4713, %v4712
        %v4725 = vpack.c.bf16 %v4715, %v4714
        %v4726 = vpack.c.bf16 %v4717, %v4716
        %v4727 = vpack.c.bf16 %v4719, %v4718
        %v4728 = vld [vmem:[%s5] sm:$0xff]
        %v4729 = vld [vmem:[%s5 + $0x8] sm:$0xff]
        %v4730 = vld [vmem:[%s5 + $0x10] sm:$0xff]
        %v4731 = vld [vmem:[%s5 + $0x18] sm:$0xff]
        %v4732 = vld [vmem:[%s5 + $0x20] sm:$0xff]
        %v4733 = vld [vmem:[%s5 + $0x28] sm:$0xff]
        %v4734 = vld [vmem:[%s5 + $0x30] sm:$0xff]
        %v4735 = vld [vmem:[%s5 + $0x38] sm:$0xff]
        %v4736 = vpack.c.bf16 %v4729, %v4728
        %v4737 = vpack.c.bf16 %v4731, %v4730
        %v4738 = vpack.c.bf16 %v4733, %v4732
        %v4739 = vpack.c.bf16 %v4735, %v4734
        %v4741 = vsel %vm495, %v4720, 0
        %v4744 = vsel %vm495, %v4721, 0
        %v4747 = vsel %vm495, %v4722, 0
        %v4750 = vsel %vm495, %v4723, 0
        %v4753 = vsel %vm495, %v4724, 0
        %v4756 = vsel %vm495, %v4725, 0
        %v4759 = vsel %vm495, %v4726, 0
        %v4762 = vsel %vm495, %v4727, 0
        %4764 = vmatprep.subr.bf16.mxu0 0
        %4765 = vmatpush1.bf16.msra.mxu0 0
        %4766 = vmatprep.subr.bf16.mxu0 0
        %4767 = vmatpush1.bf16.msra.mxu0 0
        %4768 = vmatprep.subr.bf16.mxu0 0
        %4769 = vmatpush1.bf16.msra.mxu0 0
        %4770 = vmatprep.subr.bf16.mxu0 0
        %4771 = vmatpush1.bf16.msra.mxu0 0
        %4772 = vmatprep.subr.bf16.mxu0 0
        %4773 = vmatpush1.bf16.msra.mxu0 %v4739
        %4774 = vmatprep.subr.bf16.mxu0 0
        %4775 = vmatpush1.bf16.msra.mxu0 %v4738
        %4776 = vmatprep.subr.bf16.mxu0 0
        %4777 = vmatpush1.bf16.msra.mxu0 %v4737
        %4778 = vmatprep.subr.bf16.mxu0 0
        %4779 = vmatpush1.bf16.msra.mxu0 %v4736
        %4780 = vmatprep.subr.bf16.mxu0 0
        %4781 = vmatpush2.bf16.msra.mxu0 0
        %4782 = vmatprep.subr.bf16.mxu0 0
        %4783 = vmatpush2.bf16.msra.mxu0 0
        %4784 = vmatprep.subr.bf16.mxu0 0
        %4785 = vmatpush2.bf16.msra.mxu0 0
        %4786 = vmatprep.subr.bf16.mxu0 0
        %4787 = vmatpush2.bf16.msra.mxu0 0
        %4788 = vmatprep.subr.bf16.mxu0 0
        %4789 = vmatpush2.bf16.msra.mxu0 0
        %4790 = vmatprep.subr.bf16.mxu0 0
        %4791 = vmatpush2.bf16.msra.mxu0 0
        %4792 = vmatprep.subr.bf16.mxu0 0
        %4793 = vmatpush2.bf16.msra.mxu0 0
        %4794 = vmatprep.subr.bf16.mxu0 0
        %4795 = vmatpush2.bf16.msra.mxu0 0
        %4796 = vmatprep.mubr.bf16.mxu0 0
        %4797 = vmatmul.mubr.bf16.gmra.mxu0 %v4741
        %v4798 = vpop.f32.mrf.mxu0
        %v4799 = vadd.f32 0.0, %v4798
        %v4800 = vpop.f32.mrf.mxu0
        %v4801 = vpop.f32.mrf.mxu0
        %v4802 = vadd.f32 0.0, %v4801
        %v4803 = vpop.f32.mrf.mxu0
        %4804 = vmatprep.mubr.bf16.mxu0 0
        %4805 = vmatmul.mubr.bf16.gmra.mxu0 %v4744
        %v4806 = vpop.f32.mrf.mxu0
        %v4807 = vadd.f32 0.0, %v4806
        %v4808 = vpop.f32.mrf.mxu0
        %v4809 = vpop.f32.mrf.mxu0
        %v4810 = vadd.f32 0.0, %v4809
        %v4811 = vpop.f32.mrf.mxu0
        %4812 = vmatprep.mubr.bf16.mxu0 0
        %4813 = vmatmul.mubr.bf16.gmra.mxu0 %v4747
        %v4814 = vpop.f32.mrf.mxu0
        %v4815 = vadd.f32 0.0, %v4814
        %v4816 = vpop.f32.mrf.mxu0
        %v4817 = vpop.f32.mrf.mxu0
        %v4818 = vadd.f32 0.0, %v4817
        %v4819 = vpop.f32.mrf.mxu0
        %4820 = vmatprep.mubr.bf16.mxu0 0
        %4821 = vmatmul.mubr.bf16.gmra.mxu0 %v4750
        %v4822 = vpop.f32.mrf.mxu0
        %v4823 = vadd.f32 0.0, %v4822
        %v4824 = vpop.f32.mrf.mxu0
        %v4825 = vpop.f32.mrf.mxu0
        %v4826 = vadd.f32 0.0, %v4825
        %v4827 = vpop.f32.mrf.mxu0
        %4828 = vmatprep.mubr.bf16.mxu0 0
        %4829 = vmatmul.mubr.bf16.gmra.mxu0 %v4753
        %v4830 = vpop.f32.mrf.mxu0
        %v4831 = vadd.f32 0.0, %v4830
        %v4832 = vpop.f32.mrf.mxu0
        %v4833 = vpop.f32.mrf.mxu0
        %v4834 = vadd.f32 0.0, %v4833
        %v4835 = vpop.f32.mrf.mxu0
        %4836 = vmatprep.mubr.bf16.mxu0 0
        %4837 = vmatmul.mubr.bf16.gmra.mxu0 %v4756
        %v4838 = vpop.f32.mrf.mxu0
        %v4839 = vadd.f32 0.0, %v4838
        %v4840 = vpop.f32.mrf.mxu0
        %v4841 = vpop.f32.mrf.mxu0
        %v4842 = vadd.f32 0.0, %v4841
        %v4843 = vpop.f32.mrf.mxu0
        %4844 = vmatprep.mubr.bf16.mxu0 0
        %4845 = vmatmul.mubr.bf16.gmra.mxu0 %v4759
        %v4846 = vpop.f32.mrf.mxu0
        %v4847 = vadd.f32 0.0, %v4846
        %v4848 = vpop.f32.mrf.mxu0
        %v4849 = vpop.f32.mrf.mxu0
        %v4850 = vadd.f32 0.0, %v4849
        %v4851 = vpop.f32.mrf.mxu0
        %4852 = vmatprep.mubr.bf16.mxu0 0
        %4853 = vmatmul.mubr.bf16.gmra.mxu0 %v4762
        %v4854 = vpop.f32.mrf.mxu0
        %v4855 = vadd.f32 0.0, %v4854
        %v4856 = vpop.f32.mrf.mxu0
        %v4857 = vpop.f32.mrf.mxu0
        %v4858 = vadd.f32 0.0, %v4857
        %v4859 = vpop.f32.mrf.mxu0
        %4860 = vdwg.mxu0
        %v4861 = vpack.c.bf16 %v4802, %v4799
        %v4862 = vpack.c.bf16 %v4810, %v4807
        %v4863 = vpack.c.bf16 %v4818, %v4815
        %v4864 = vpack.c.bf16 %v4826, %v4823
        %v4865 = vpack.c.bf16 %v4834, %v4831
        %v4866 = vpack.c.bf16 %v4842, %v4839
        %v4867 = vpack.c.bf16 %v4850, %v4847
        %v4868 = vpack.c.bf16 %v4858, %v4855
        %v4869 = vld [vmem:[%s6] sm:$0xf]
        %v4870 = vpack.c.bf16 %v4869, %v4869
        %v4872 = vsel %vm349, %v4861, 0
        %v4875 = vsel %vm349, %v4862, 0
        %v4878 = vsel %vm349, %v4863, 0
        %v4881 = vsel %vm349, %v4864, 0
        %v4884 = vsel %vm349, %v4865, 0
        %v4887 = vsel %vm349, %v4866, 0
        %v4890 = vsel %vm349, %v4867, 0
        %v4893 = vsel %vm349, %v4868, 0
        %v4896 = vsel %vm374, %v4870, 0
        %4898 = vmatprep.subr.bf16.mxu0 0
        %4899 = vmatpush1.bf16.msra.mxu0 0
        %4900 = vmatprep.subr.bf16.mxu0 0
        %4901 = vmatpush1.bf16.msra.mxu0 0
        %4902 = vmatprep.subr.bf16.mxu0 0
        %4903 = vmatpush1.bf16.msra.mxu0 0
        %4904 = vmatprep.subr.bf16.mxu0 0
        %4905 = vmatpush1.bf16.msra.mxu0 0
        %4906 = vmatprep.subr.bf16.mxu0 0
        %4907 = vmatpush1.bf16.msra.mxu0 0
        %4908 = vmatprep.subr.bf16.mxu0 0
        %4909 = vmatpush1.bf16.msra.mxu0 0
        %4910 = vmatprep.subr.bf16.mxu0 0
        %4911 = vmatpush1.bf16.msra.mxu0 0
        %4912 = vmatprep.subr.bf16.mxu0 0
        %4913 = vmatpush1.bf16.msra.mxu0 %v4896
        %4914 = vmatprep.subr.bf16.mxu0 0
        %4915 = vmatpush2.bf16.msra.mxu0 0
        %4916 = vmatprep.subr.bf16.mxu0 0
        %4917 = vmatpush2.bf16.msra.mxu0 0
        %4918 = vmatprep.subr.bf16.mxu0 0
        %4919 = vmatpush2.bf16.msra.mxu0 0
        %4920 = vmatprep.subr.bf16.mxu0 0
        %4921 = vmatpush2.bf16.msra.mxu0 0
        %4922 = vmatprep.subr.bf16.mxu0 0
        %4923 = vmatpush2.bf16.msra.mxu0 0
        %4924 = vmatprep.subr.bf16.mxu0 0
        %4925 = vmatpush2.bf16.msra.mxu0 0
        %4926 = vmatprep.subr.bf16.mxu0 0
        %4927 = vmatpush2.bf16.msra.mxu0 0
        %4928 = vmatprep.subr.bf16.mxu0 0
        %4929 = vmatpush2.bf16.msra.mxu0 0
        %4930 = vmatprep.mubr.bf16.mxu0 0
        %4931 = vmatmul.mubr.bf16.gmra.mxu0 %v4872
        %v4932 = vpop.f32.mrf.mxu0
        %v4933 = vadd.f32 0.0, %v4932
        %v4934 = vpop.f32.mrf.mxu0
        %v4935 = vpop.f32.mrf.mxu0
        %v4936 = vadd.f32 0.0, %v4935
        %v4937 = vpop.f32.mrf.mxu0
        %4938 = vmatprep.mubr.bf16.mxu0 0
        %4939 = vmatmul.mubr.bf16.gmra.mxu0 %v4875
        %v4940 = vpop.f32.mrf.mxu0
        %v4941 = vadd.f32 0.0, %v4940
        %v4942 = vpop.f32.mrf.mxu0
        %v4943 = vpop.f32.mrf.mxu0
        %v4944 = vadd.f32 0.0, %v4943
        %v4945 = vpop.f32.mrf.mxu0
        %4946 = vmatprep.mubr.bf16.mxu0 0
        %4947 = vmatmul.mubr.bf16.gmra.mxu0 %v4878
        %v4948 = vpop.f32.mrf.mxu0
        %v4949 = vadd.f32 0.0, %v4948
        %v4950 = vpop.f32.mrf.mxu0
        %v4951 = vpop.f32.mrf.mxu0
        %v4952 = vadd.f32 0.0, %v4951
        %v4953 = vpop.f32.mrf.mxu0
        %4954 = vmatprep.mubr.bf16.mxu0 0
        %4955 = vmatmul.mubr.bf16.gmra.mxu0 %v4881
        %v4956 = vpop.f32.mrf.mxu0
        %v4957 = vadd.f32 0.0, %v4956
        %v4958 = vpop.f32.mrf.mxu0
        %v4959 = vpop.f32.mrf.mxu0
        %v4960 = vadd.f32 0.0, %v4959
        %v4961 = vpop.f32.mrf.mxu0
        %4962 = vmatprep.mubr.bf16.mxu0 0
        %4963 = vmatmul.mubr.bf16.gmra.mxu0 %v4884
        %v4964 = vpop.f32.mrf.mxu0
        %v4965 = vadd.f32 0.0, %v4964
        %v4966 = vpop.f32.mrf.mxu0
        %v4967 = vpop.f32.mrf.mxu0
        %v4968 = vadd.f32 0.0, %v4967
        %v4969 = vpop.f32.mrf.mxu0
        %4970 = vmatprep.mubr.bf16.mxu0 0
        %4971 = vmatmul.mubr.bf16.gmra.mxu0 %v4887
        %v4972 = vpop.f32.mrf.mxu0
        %v4973 = vadd.f32 0.0, %v4972
        %v4974 = vpop.f32.mrf.mxu0
        %v4975 = vpop.f32.mrf.mxu0
        %v4976 = vadd.f32 0.0, %v4975
        %v4977 = vpop.f32.mrf.mxu0
        %4978 = vmatprep.mubr.bf16.mxu0 0
        %4979 = vmatmul.mubr.bf16.gmra.mxu0 %v4890
        %v4980 = vpop.f32.mrf.mxu0
        %v4981 = vadd.f32 0.0, %v4980
        %v4982 = vpop.f32.mrf.mxu0
        %v4983 = vpop.f32.mrf.mxu0
        %v4984 = vadd.f32 0.0, %v4983
        %v4985 = vpop.f32.mrf.mxu0
        %4986 = vmatprep.mubr.bf16.mxu0 0
        %4987 = vmatmul.mubr.bf16.gmra.mxu0 %v4893
        %v4988 = vpop.f32.mrf.mxu0
        %v4989 = vadd.f32 0.0, %v4988
        %v4990 = vpop.f32.mrf.mxu0
        %v4991 = vpop.f32.mrf.mxu0
        %v4992 = vadd.f32 0.0, %v4991
        %v4993 = vpop.f32.mrf.mxu0
        %4994 = vdwg.mxu0
        %4995 = vxpose.xlu0.b32.start [1/16] %v4933, 128
        %4996 = vxpose.xlu0.b32.cont [2/16] %v4936, 128
        %4997 = vxpose.xlu0.b32.cont [3/16] %v4941, 128
        %4998 = vxpose.xlu0.b32.cont [4/16] %v4944, 128
        %4999 = vxpose.xlu0.b32.cont [5/16] %v4949, 128
        %5000 = vxpose.xlu0.b32.cont [6/16] %v4952, 128
        %5001 = vxpose.xlu0.b32.cont [7/16] %v4957, 128
        %5002 = vxpose.xlu0.b32.cont [8/16] %v4960, 128
        %5003 = vxpose.xlu0.b32.cont [9/16] %v4965, 128
        %5004 = vxpose.xlu0.b32.cont [10/16] %v4968, 128
        %5005 = vxpose.xlu0.b32.cont [11/16] %v4973, 128
        %5006 = vxpose.xlu0.b32.cont [12/16] %v4976, 128
        %5007 = vxpose.xlu0.b32.cont [13/16] %v4981, 128
        %5008 = vxpose.xlu0.b32.cont [14/16] %v4984, 128
        %5009 = vxpose.xlu0.b32.cont [15/16] %v4989, 128
        %5010 = vxpose.xlu0.b32.end [16/16] %v4992, 128
        %v5011 = vpop.trf.xlu0
        %v5012 = vpop.trf.xlu0
        %v5013 = vpop.trf.xlu0
        %v5014 = vpop.trf.xlu0
        %v5015 = vpop.trf.xlu0
        %v5016 = vpop.trf.xlu0
        %v5017 = vpop.trf.xlu0
        %v5018 = vpop.trf.xlu0
        %v5019 = vpop.trf.xlu0
        %v5020 = vpop.trf.xlu0
        %v5021 = vpop.trf.xlu0
        %v5022 = vpop.trf.xlu0
        %v5023 = vpop.trf.xlu0
        %v5024 = vpop.trf.xlu0
        %v5025 = vpop.trf.xlu0
        %v5026 = vpop.trf.xlu0
        %5028 = vset.pattern.permute.xlu0 1
        %5029 = vperm.xlu0 %5028, %v4933
        %v5030 = vpop.permute.xlu0 %5029
        %5033 = vset.pattern.permute.xlu0 1
        %5034 = vperm.xlu0 %5033, %v4936
        %v5035 = vpop.permute.xlu0 %5034
        %5038 = vset.pattern.permute.xlu0 1
        %5039 = vperm.xlu0 %5038, %v4941
        %v5040 = vpop.permute.xlu0 %5039
        %5043 = vset.pattern.permute.xlu0 1
        %5044 = vperm.xlu0 %5043, %v4944
        %v5045 = vpop.permute.xlu0 %5044
        %5048 = vset.pattern.permute.xlu0 1
        %5049 = vperm.xlu0 %5048, %v4949
        %v5050 = vpop.permute.xlu0 %5049
        %5053 = vset.pattern.permute.xlu0 1
        %5054 = vperm.xlu0 %5053, %v4952
        %v5055 = vpop.permute.xlu0 %5054
        %5058 = vset.pattern.permute.xlu0 1
        %5059 = vperm.xlu0 %5058, %v4957
        %v5060 = vpop.permute.xlu0 %5059
        %5063 = vset.pattern.permute.xlu0 1
        %5064 = vperm.xlu0 %5063, %v4960
        %v5065 = vpop.permute.xlu0 %5064
        %5068 = vset.pattern.permute.xlu0 1
        %5069 = vperm.xlu0 %5068, %v4965
        %v5070 = vpop.permute.xlu0 %5069
        %5073 = vset.pattern.permute.xlu0 1
        %5074 = vperm.xlu0 %5073, %v4968
        %v5075 = vpop.permute.xlu0 %5074
        %5078 = vset.pattern.permute.xlu0 1
        %5079 = vperm.xlu0 %5078, %v4973
        %v5080 = vpop.permute.xlu0 %5079
        %5083 = vset.pattern.permute.xlu0 1
        %5084 = vperm.xlu0 %5083, %v4976
        %v5085 = vpop.permute.xlu0 %5084
        %5088 = vset.pattern.permute.xlu0 1
        %5089 = vperm.xlu0 %5088, %v4981
        %v5090 = vpop.permute.xlu0 %5089
        %5093 = vset.pattern.permute.xlu0 1
        %5094 = vperm.xlu0 %5093, %v4984
        %v5095 = vpop.permute.xlu0 %5094
        %5098 = vset.pattern.permute.xlu0 1
        %5099 = vperm.xlu0 %5098, %v4989
        %v5100 = vpop.permute.xlu0 %5099
        %5103 = vset.pattern.permute.xlu0 1
        %5104 = vperm.xlu0 %5103, %v4992
        %v5105 = vpop.permute.xlu0 %5104
        %v5107 = vlaneseq
        %v5108 = vshrl.u32 %v5107, 7
        %v5109 = vsub.s32 0, %v5108
        %v5110 = vrot.slane %v5011, %v5109
        %v5111 = vadd.f32 %v5030, %v5110
        %v5112 = vadd.f32 %v5035, %v5110
        %v5113 = vadd.f32 %v5040, %v5110
        %v5114 = vadd.f32 %v5045, %v5110
        %v5115 = vadd.f32 %v5050, %v5110
        %v5116 = vadd.f32 %v5055, %v5110
        %v5117 = vadd.f32 %v5060, %v5110
        %v5118 = vadd.f32 %v5065, %v5110
        %v5119 = vadd.f32 %v5070, %v5110
        %v5120 = vadd.f32 %v5075, %v5110
        %v5121 = vadd.f32 %v5080, %v5110
        %v5122 = vadd.f32 %v5085, %v5110
        %v5123 = vadd.f32 %v5090, %v5110
        %v5124 = vadd.f32 %v5095, %v5110
        %v5125 = vadd.f32 %v5100, %v5110
        %v5126 = vadd.f32 %v5105, %v5110
        %vm5127 = vcmp.ge.f32.partialorder %v5111, 0.0
        %vm5128 = vcmp.ge.f32.partialorder %v5112, 0.0
        %vm5129 = vcmp.ge.f32.partialorder %v5113, 0.0
        %vm5130 = vcmp.ge.f32.partialorder %v5114, 0.0
        %vm5131 = vcmp.ge.f32.partialorder %v5115, 0.0
        %vm5132 = vcmp.ge.f32.partialorder %v5116, 0.0
        %vm5133 = vcmp.ge.f32.partialorder %v5117, 0.0
        %vm5134 = vcmp.ge.f32.partialorder %v5118, 0.0
        %vm5135 = vcmp.ge.f32.partialorder %v5119, 0.0
        %vm5136 = vcmp.ge.f32.partialorder %v5120, 0.0
        %vm5137 = vcmp.ge.f32.partialorder %v5121, 0.0
        %vm5138 = vcmp.ge.f32.partialorder %v5122, 0.0
        %vm5139 = vcmp.ge.f32.partialorder %v5123, 0.0
        %vm5140 = vcmp.ge.f32.partialorder %v5124, 0.0
        %vm5141 = vcmp.ge.f32.partialorder %v5125, 0.0
        %vm5142 = vcmp.ge.f32.partialorder %v5126, 0.0
        %v5143 = vmul.f32 %v5111, 0.2
        %v5144 = vmul.f32 %v5112, 0.2
        %v5145 = vmul.f32 %v5113, 0.2
        %v5146 = vmul.f32 %v5114, 0.2
        %v5147 = vmul.f32 %v5115, 0.2
        %v5148 = vmul.f32 %v5116, 0.2
        %v5149 = vmul.f32 %v5117, 0.2
        %v5150 = vmul.f32 %v5118, 0.2
        %v5151 = vmul.f32 %v5119, 0.2
        %v5152 = vmul.f32 %v5120, 0.2
        %v5153 = vmul.f32 %v5121, 0.2
        %v5154 = vmul.f32 %v5122, 0.2
        %v5155 = vmul.f32 %v5123, 0.2
        %v5156 = vmul.f32 %v5124, 0.2
        %v5157 = vmul.f32 %v5125, 0.2
        %v5158 = vmul.f32 %v5126, 0.2
        %v5159 = vsel %vm5127, %v5111, %v5143
        %v5160 = vsel %vm5128, %v5112, %v5144
        %v5161 = vsel %vm5129, %v5113, %v5145
        %v5162 = vsel %vm5130, %v5114, %v5146
        %v5163 = vsel %vm5131, %v5115, %v5147
        %v5164 = vsel %vm5132, %v5116, %v5148
        %v5165 = vsel %vm5133, %v5117, %v5149
        %v5166 = vsel %vm5134, %v5118, %v5150
        %v5167 = vsel %vm5135, %v5119, %v5151
        %v5168 = vsel %vm5136, %v5120, %v5152
        %v5169 = vsel %vm5137, %v5121, %v5153
        %v5170 = vsel %vm5138, %v5122, %v5154
        %v5171 = vsel %vm5139, %v5123, %v5155
        %v5172 = vsel %vm5140, %v5124, %v5156
        %v5173 = vsel %vm5141, %v5125, %v5157
        %v5174 = vsel %vm5142, %v5126, %v5158
        %v5175 = vadd.f32 %v5159, %v323
        %v5176 = vadd.f32 %v5160, %v324
        %v5177 = vadd.f32 %v5161, %v325
        %v5178 = vadd.f32 %v5162, %v326
        %v5179 = vadd.f32 %v5163, %v327
        %v5180 = vadd.f32 %v5164, %v328
        %v5181 = vadd.f32 %v5165, %v329
        %v5182 = vadd.f32 %v5166, %v330
        %v5183 = vadd.f32 %v5167, %v331
        %v5184 = vadd.f32 %v5168, %v332
        %v5185 = vadd.f32 %v5169, %v333
        %v5186 = vadd.f32 %v5170, %v334
        %v5187 = vadd.f32 %v5171, %v335
        %v5188 = vadd.f32 %v5172, %v336
        %v5189 = vadd.f32 %v5173, %v337
        %v5190 = vadd.f32 %v5174, %v338
        %5191 = vmax.xlane.f32.xlu0 %v5175
        %v5192 = vpop.xlane.xlu0 %5191
        %5193 = vmax.xlane.f32.xlu0 %v5176
        %v5194 = vpop.xlane.xlu0 %5193
        %5195 = vmax.xlane.f32.xlu0 %v5177
        %v5196 = vpop.xlane.xlu0 %5195
        %5197 = vmax.xlane.f32.xlu0 %v5178
        %v5198 = vpop.xlane.xlu0 %5197
        %5199 = vmax.xlane.f32.xlu0 %v5179
        %v5200 = vpop.xlane.xlu0 %5199
        %5201 = vmax.xlane.f32.xlu0 %v5180
        %v5202 = vpop.xlane.xlu0 %5201
        %5203 = vmax.xlane.f32.xlu0 %v5181
        %v5204 = vpop.xlane.xlu0 %5203
        %5205 = vmax.xlane.f32.xlu0 %v5182
        %v5206 = vpop.xlane.xlu0 %5205
        %5207 = vmax.xlane.f32.xlu0 %v5183
        %v5208 = vpop.xlane.xlu0 %5207
        %5209 = vmax.xlane.f32.xlu0 %v5184
        %v5210 = vpop.xlane.xlu0 %5209
        %5211 = vmax.xlane.f32.xlu0 %v5185
        %v5212 = vpop.xlane.xlu0 %5211
        %5213 = vmax.xlane.f32.xlu0 %v5186
        %v5214 = vpop.xlane.xlu0 %5213
        %5215 = vmax.xlane.f32.xlu0 %v5187
        %v5216 = vpop.xlane.xlu0 %5215
        %5217 = vmax.xlane.f32.xlu0 %v5188
        %v5218 = vpop.xlane.xlu0 %5217
        %5219 = vmax.xlane.f32.xlu0 %v5189
        %v5220 = vpop.xlane.xlu0 %5219
        %5221 = vmax.xlane.f32.xlu0 %v5190
        %v5222 = vpop.xlane.xlu0 %5221
        %v5223 = vsub.f32 %v5175, %v5192
        %v5224 = vsub.f32 %v5176, %v5194
        %v5225 = vsub.f32 %v5177, %v5196
        %v5226 = vsub.f32 %v5178, %v5198
        %v5227 = vsub.f32 %v5179, %v5200
        %v5228 = vsub.f32 %v5180, %v5202
        %v5229 = vsub.f32 %v5181, %v5204
        %v5230 = vsub.f32 %v5182, %v5206
        %v5231 = vsub.f32 %v5183, %v5208
        %v5232 = vsub.f32 %v5184, %v5210
        %v5233 = vsub.f32 %v5185, %v5212
        %v5234 = vsub.f32 %v5186, %v5214
        %v5235 = vsub.f32 %v5187, %v5216
        %v5236 = vsub.f32 %v5188, %v5218
        %v5237 = vsub.f32 %v5189, %v5220
        %v5238 = vsub.f32 %v5190, %v5222
        %v5239 = vmul.f32 %v5223, 1.442695
        %v5240 = vpow.pop %v5239
        %v5241 = vmul.f32 %v5224, 1.442695
        %v5242 = vpow.pop %v5241
        %v5243 = vmul.f32 %v5225, 1.442695
        %v5244 = vpow.pop %v5243
        %v5245 = vmul.f32 %v5226, 1.442695
        %v5246 = vpow.pop %v5245
        %v5247 = vmul.f32 %v5227, 1.442695
        %v5248 = vpow.pop %v5247
        %v5249 = vmul.f32 %v5228, 1.442695
        %v5250 = vpow.pop %v5249
        %v5251 = vmul.f32 %v5229, 1.442695
        %v5252 = vpow.pop %v5251
        %v5253 = vmul.f32 %v5230, 1.442695
        %v5254 = vpow.pop %v5253
        %v5255 = vmul.f32 %v5231, 1.442695
        %v5256 = vpow.pop %v5255
        %v5257 = vmul.f32 %v5232, 1.442695
        %v5258 = vpow.pop %v5257
        %v5259 = vmul.f32 %v5233, 1.442695
        %v5260 = vpow.pop %v5259
        %v5261 = vmul.f32 %v5234, 1.442695
        %v5262 = vpow.pop %v5261
        %v5263 = vmul.f32 %v5235, 1.442695
        %v5264 = vpow.pop %v5263
        %v5265 = vmul.f32 %v5236, 1.442695
        %v5266 = vpow.pop %v5265
        %v5267 = vmul.f32 %v5237, 1.442695
        %v5268 = vpow.pop %v5267
        %v5269 = vmul.f32 %v5238, 1.442695
        %v5270 = vpow.pop %v5269
        %5271 = vadd.xlane.f32.xlu0 %v5240
        %v5272 = vpop.xlane.xlu0 %5271
        %5273 = vadd.xlane.f32.xlu0 %v5242
        %v5274 = vpop.xlane.xlu0 %5273
        %5275 = vadd.xlane.f32.xlu0 %v5244
        %v5276 = vpop.xlane.xlu0 %5275
        %5277 = vadd.xlane.f32.xlu0 %v5246
        %v5278 = vpop.xlane.xlu0 %5277
        %5279 = vadd.xlane.f32.xlu0 %v5248
        %v5280 = vpop.xlane.xlu0 %5279
        %5281 = vadd.xlane.f32.xlu0 %v5250
        %v5282 = vpop.xlane.xlu0 %5281
        %5283 = vadd.xlane.f32.xlu0 %v5252
        %v5284 = vpop.xlane.xlu0 %5283
        %5285 = vadd.xlane.f32.xlu0 %v5254
        %v5286 = vpop.xlane.xlu0 %5285
        %5287 = vadd.xlane.f32.xlu0 %v5256
        %v5288 = vpop.xlane.xlu0 %5287
        %5289 = vadd.xlane.f32.xlu0 %v5258
        %v5290 = vpop.xlane.xlu0 %5289
        %5291 = vadd.xlane.f32.xlu0 %v5260
        %v5292 = vpop.xlane.xlu0 %5291
        %5293 = vadd.xlane.f32.xlu0 %v5262
        %v5294 = vpop.xlane.xlu0 %5293
        %5295 = vadd.xlane.f32.xlu0 %v5264
        %v5296 = vpop.xlane.xlu0 %5295
        %5297 = vadd.xlane.f32.xlu0 %v5266
        %v5298 = vpop.xlane.xlu0 %5297
        %5299 = vadd.xlane.f32.xlu0 %v5268
        %v5300 = vpop.xlane.xlu0 %5299
        %5301 = vadd.xlane.f32.xlu0 %v5270
        %v5302 = vpop.xlane.xlu0 %5301
        %v5303 = vrcp.pop %v5272
        %v5304 = vmul.f32 %v5240, %v5303
        %v5305 = vrcp.pop %v5274
        %v5306 = vmul.f32 %v5242, %v5305
        %v5307 = vrcp.pop %v5276
        %v5308 = vmul.f32 %v5244, %v5307
        %v5309 = vrcp.pop %v5278
        %v5310 = vmul.f32 %v5246, %v5309
        %v5311 = vrcp.pop %v5280
        %v5312 = vmul.f32 %v5248, %v5311
        %v5313 = vrcp.pop %v5282
        %v5314 = vmul.f32 %v5250, %v5313
        %v5315 = vrcp.pop %v5284
        %v5316 = vmul.f32 %v5252, %v5315
        %v5317 = vrcp.pop %v5286
        %v5318 = vmul.f32 %v5254, %v5317
        %v5319 = vrcp.pop %v5288
        %v5320 = vmul.f32 %v5256, %v5319
        %v5321 = vrcp.pop %v5290
        %v5322 = vmul.f32 %v5258, %v5321
        %v5323 = vrcp.pop %v5292
        %v5324 = vmul.f32 %v5260, %v5323
        %v5325 = vrcp.pop %v5294
        %v5326 = vmul.f32 %v5262, %v5325
        %v5327 = vrcp.pop %v5296
        %v5328 = vmul.f32 %v5264, %v5327
        %v5329 = vrcp.pop %v5298
        %v5330 = vmul.f32 %v5266, %v5329
        %v5331 = vrcp.pop %v5300
        %v5332 = vmul.f32 %v5268, %v5331
        %v5333 = vrcp.pop %v5302
        %v5334 = vmul.f32 %v5270, %v5333
        %v5335 = vpack.c.bf16 %v5306, %v5304
        %v5336 = vpack.c.bf16 %v5310, %v5308
        %v5337 = vpack.c.bf16 %v5314, %v5312
        %v5338 = vpack.c.bf16 %v5318, %v5316
        %v5339 = vpack.c.bf16 %v5322, %v5320
        %v5340 = vpack.c.bf16 %v5326, %v5324
        %v5341 = vpack.c.bf16 %v5330, %v5328
        %v5342 = vpack.c.bf16 %v5334, %v5332
        %v5343 = vld [vmem:[%s7] sm:$0x1]
        %v5345 = vlaneseq
        %v5346 = vshrl.u32 %v5345, 7
        %v5347 = vsub.s32 0, %v5346
        %v5348 = vrot.slane %v5343, %v5347
        %5350 = vmatprep.subr.bf16.mxu0 0
        %5351 = vmatpush1.bf16.msra.mxu0 %v4868
        %5352 = vmatprep.subr.bf16.mxu0 0
        %5353 = vmatpush1.bf16.msra.mxu0 %v4867
        %5354 = vmatprep.subr.bf16.mxu0 0
        %5355 = vmatpush1.bf16.msra.mxu0 %v4866
        %5356 = vmatprep.subr.bf16.mxu0 0
        %5357 = vmatpush1.bf16.msra.mxu0 %v4865
        %5358 = vmatprep.subr.bf16.mxu0 0
        %5359 = vmatpush1.bf16.msra.mxu0 %v4864
        %5360 = vmatprep.subr.bf16.mxu0 0
        %5361 = vmatpush1.bf16.msra.mxu0 %v4863
        %5362 = vmatprep.subr.bf16.mxu0 0
        %5363 = vmatpush1.bf16.msra.mxu0 %v4862
        %5364 = vmatprep.subr.bf16.mxu0 0
        %5365 = vmatpush1.bf16.msra.mxu0 %v4861
        %5366 = vmatprep.subr.bf16.mxu0 0
        %5367 = vmatpush2.bf16.msra.mxu0 0
        %5368 = vmatprep.subr.bf16.mxu0 0
        %5369 = vmatpush2.bf16.msra.mxu0 0
        %5370 = vmatprep.subr.bf16.mxu0 0
        %5371 = vmatpush2.bf16.msra.mxu0 0
        %5372 = vmatprep.subr.bf16.mxu0 0
        %5373 = vmatpush2.bf16.msra.mxu0 0
        %5374 = vmatprep.subr.bf16.mxu0 0
        %5375 = vmatpush2.bf16.msra.mxu0 0
        %5376 = vmatprep.subr.bf16.mxu0 0
        %5377 = vmatpush2.bf16.msra.mxu0 0
        %5378 = vmatprep.subr.bf16.mxu0 0
        %5379 = vmatpush2.bf16.msra.mxu0 0
        %5380 = vmatprep.subr.bf16.mxu0 0
        %5381 = vmatpush2.bf16.msra.mxu0 0
        %5382 = vmatprep.mubr.bf16.mxu0 0
        %5383 = vmatmul.mubr.bf16.gmra.mxu0 %v5335
        %v5384 = vpop.f32.mrf.mxu0
        %v5385 = vadd.f32 %v5348, %v5384
        %v5386 = vpop.f32.mrf.mxu0
        %v5387 = vpop.f32.mrf.mxu0
        %v5388 = vadd.f32 %v5348, %v5387
        %v5389 = vpop.f32.mrf.mxu0
        %5390 = vmatprep.mubr.bf16.mxu0 0
        %5391 = vmatmul.mubr.bf16.gmra.mxu0 %v5336
        %v5392 = vpop.f32.mrf.mxu0
        %v5393 = vadd.f32 %v5348, %v5392
        %v5394 = vpop.f32.mrf.mxu0
        %v5395 = vpop.f32.mrf.mxu0
        %v5396 = vadd.f32 %v5348, %v5395
        %v5397 = vpop.f32.mrf.mxu0
        %5398 = vmatprep.mubr.bf16.mxu0 0
        %5399 = vmatmul.mubr.bf16.gmra.mxu0 %v5337
        %v5400 = vpop.f32.mrf.mxu0
        %v5401 = vadd.f32 %v5348, %v5400
        %v5402 = vpop.f32.mrf.mxu0
        %v5403 = vpop.f32.mrf.mxu0
        %v5404 = vadd.f32 %v5348, %v5403
        %v5405 = vpop.f32.mrf.mxu0
        %5406 = vmatprep.mubr.bf16.mxu0 0
        %5407 = vmatmul.mubr.bf16.gmra.mxu0 %v5338
        %v5408 = vpop.f32.mrf.mxu0
        %v5409 = vadd.f32 %v5348, %v5408
        %v5410 = vpop.f32.mrf.mxu0
        %v5411 = vpop.f32.mrf.mxu0
        %v5412 = vadd.f32 %v5348, %v5411
        %v5413 = vpop.f32.mrf.mxu0
        %5414 = vmatprep.mubr.bf16.mxu0 0
        %5415 = vmatmul.mubr.bf16.gmra.mxu0 %v5339
        %v5416 = vpop.f32.mrf.mxu0
        %v5417 = vadd.f32 %v5348, %v5416
        %v5418 = vpop.f32.mrf.mxu0
        %v5419 = vpop.f32.mrf.mxu0
        %v5420 = vadd.f32 %v5348, %v5419
        %v5421 = vpop.f32.mrf.mxu0
        %5422 = vmatprep.mubr.bf16.mxu0 0
        %5423 = vmatmul.mubr.bf16.gmra.mxu0 %v5340
        %v5424 = vpop.f32.mrf.mxu0
        %v5425 = vadd.f32 %v5348, %v5424
        %v5426 = vpop.f32.mrf.mxu0
        %v5427 = vpop.f32.mrf.mxu0
        %v5428 = vadd.f32 %v5348, %v5427
        %v5429 = vpop.f32.mrf.mxu0
        %5430 = vmatprep.mubr.bf16.mxu0 0
        %5431 = vmatmul.mubr.bf16.gmra.mxu0 %v5341
        %v5432 = vpop.f32.mrf.mxu0
        %v5433 = vadd.f32 %v5348, %v5432
        %v5434 = vpop.f32.mrf.mxu0
        %v5435 = vpop.f32.mrf.mxu0
        %v5436 = vadd.f32 %v5348, %v5435
        %v5437 = vpop.f32.mrf.mxu0
        %5438 = vmatprep.mubr.bf16.mxu0 0
        %5439 = vmatmul.mubr.bf16.gmra.mxu0 %v5342
        %v5440 = vpop.f32.mrf.mxu0
        %v5441 = vadd.f32 %v5348, %v5440
        %v5442 = vpop.f32.mrf.mxu0
        %v5443 = vpop.f32.mrf.mxu0
        %v5444 = vadd.f32 %v5348, %v5443
        %v5445 = vpop.f32.mrf.mxu0
        %5446 = vdwg.mxu0
        %v5447 = vsel %vm349, %v5385, -inf
        %5448 = vmax.xlane.f32.xlu0 %v5447
        %v5449 = vpop.xlane.xlu0 %5448
        %v5450 = vsel %vm349, %v5388, -inf
        %5451 = vmax.xlane.f32.xlu0 %v5450
        %v5452 = vpop.xlane.xlu0 %5451
        %v5453 = vsel %vm349, %v5393, -inf
        %5454 = vmax.xlane.f32.xlu0 %v5453
        %v5455 = vpop.xlane.xlu0 %5454
        %v5456 = vsel %vm349, %v5396, -inf
        %5457 = vmax.xlane.f32.xlu0 %v5456
        %v5458 = vpop.xlane.xlu0 %5457
        %v5459 = vsel %vm349, %v5401, -inf
        %5460 = vmax.xlane.f32.xlu0 %v5459
        %v5461 = vpop.xlane.xlu0 %5460
        %v5462 = vsel %vm349, %v5404, -inf
        %5463 = vmax.xlane.f32.xlu0 %v5462
        %v5464 = vpop.xlane.xlu0 %5463
        %v5465 = vsel %vm349, %v5409, -inf
        %5466 = vmax.xlane.f32.xlu0 %v5465
        %v5467 = vpop.xlane.xlu0 %5466
        %v5468 = vsel %vm349, %v5412, -inf
        %5469 = vmax.xlane.f32.xlu0 %v5468
        %v5470 = vpop.xlane.xlu0 %5469
        %v5471 = vsel %vm349, %v5417, -inf
        %5472 = vmax.xlane.f32.xlu0 %v5471
        %v5473 = vpop.xlane.xlu0 %5472
        %v5474 = vsel %vm349, %v5420, -inf
        %5475 = vmax.xlane.f32.xlu0 %v5474
        %v5476 = vpop.xlane.xlu0 %5475
        %v5477 = vsel %vm349, %v5425, -inf
        %5478 = vmax.xlane.f32.xlu0 %v5477
        %v5479 = vpop.xlane.xlu0 %5478
        %v5480 = vsel %vm349, %v5428, -inf
        %5481 = vmax.xlane.f32.xlu0 %v5480
        %v5482 = vpop.xlane.xlu0 %5481
        %v5483 = vsel %vm349, %v5433, -inf
        %5484 = vmax.xlane.f32.xlu0 %v5483
        %v5485 = vpop.xlane.xlu0 %5484
        %v5486 = vsel %vm349, %v5436, -inf
        %5487 = vmax.xlane.f32.xlu0 %v5486
        %v5488 = vpop.xlane.xlu0 %5487
        %v5489 = vsel %vm349, %v5441, -inf
        %5490 = vmax.xlane.f32.xlu0 %v5489
        %v5491 = vpop.xlane.xlu0 %5490
        %v5492 = vsel %vm349, %v5444, -inf
        %5493 = vmax.xlane.f32.xlu0 %v5492
        %v5494 = vpop.xlane.xlu0 %5493
        %v5495 = vsub.f32 %v5385, %v5449
        %v5496 = vsub.f32 %v5388, %v5452
        %v5497 = vsub.f32 %v5393, %v5455
        %v5498 = vsub.f32 %v5396, %v5458
        %v5499 = vsub.f32 %v5401, %v5461
        %v5500 = vsub.f32 %v5404, %v5464
        %v5501 = vsub.f32 %v5409, %v5467
        %v5502 = vsub.f32 %v5412, %v5470
        %v5503 = vsub.f32 %v5417, %v5473
        %v5504 = vsub.f32 %v5420, %v5476
        %v5505 = vsub.f32 %v5425, %v5479
        %v5506 = vsub.f32 %v5428, %v5482
        %v5507 = vsub.f32 %v5433, %v5485
        %v5508 = vsub.f32 %v5436, %v5488
        %v5509 = vsub.f32 %v5441, %v5491
        %v5510 = vsub.f32 %v5444, %v5494
        %v5511 = vmul.f32 %v5495, 1.442695
        %v5512 = vpow.pop %v5511
        %v5513 = vmul.f32 %v5496, 1.442695
        %v5514 = vpow.pop %v5513
        %v5515 = vmul.f32 %v5497, 1.442695
        %v5516 = vpow.pop %v5515
        %v5517 = vmul.f32 %v5498, 1.442695
        %v5518 = vpow.pop %v5517
        %v5519 = vmul.f32 %v5499, 1.442695
        %v5520 = vpow.pop %v5519
        %v5521 = vmul.f32 %v5500, 1.442695
        %v5522 = vpow.pop %v5521
        %v5523 = vmul.f32 %v5501, 1.442695
        %v5524 = vpow.pop %v5523
        %v5525 = vmul.f32 %v5502, 1.442695
        %v5526 = vpow.pop %v5525
        %v5527 = vmul.f32 %v5503, 1.442695
        %v5528 = vpow.pop %v5527
        %v5529 = vmul.f32 %v5504, 1.442695
        %v5530 = vpow.pop %v5529
        %v5531 = vmul.f32 %v5505, 1.442695
        %v5532 = vpow.pop %v5531
        %v5533 = vmul.f32 %v5506, 1.442695
        %v5534 = vpow.pop %v5533
        %v5535 = vmul.f32 %v5507, 1.442695
        %v5536 = vpow.pop %v5535
        %v5537 = vmul.f32 %v5508, 1.442695
        %v5538 = vpow.pop %v5537
        %v5539 = vmul.f32 %v5509, 1.442695
        %v5540 = vpow.pop %v5539
        %v5541 = vmul.f32 %v5510, 1.442695
        %v5542 = vpow.pop %v5541
        %v5543 = vsel %vm349, %v5512, 0.0
        %5544 = vadd.xlane.f32.xlu0 %v5543
        %v5545 = vpop.xlane.xlu0 %5544
        %v5546 = vsel %vm349, %v5514, 0.0
        %5547 = vadd.xlane.f32.xlu0 %v5546
        %v5548 = vpop.xlane.xlu0 %5547
        %v5549 = vsel %vm349, %v5516, 0.0
        %5550 = vadd.xlane.f32.xlu0 %v5549
        %v5551 = vpop.xlane.xlu0 %5550
        %v5552 = vsel %vm349, %v5518, 0.0
        %5553 = vadd.xlane.f32.xlu0 %v5552
        %v5554 = vpop.xlane.xlu0 %5553
        %v5555 = vsel %vm349, %v5520, 0.0
        %5556 = vadd.xlane.f32.xlu0 %v5555
        %v5557 = vpop.xlane.xlu0 %5556
        %v5558 = vsel %vm349, %v5522, 0.0
        %5559 = vadd.xlane.f32.xlu0 %v5558
        %v5560 = vpop.xlane.xlu0 %5559
        %v5561 = vsel %vm349, %v5524, 0.0
        %5562 = vadd.xlane.f32.xlu0 %v5561
        %v5563 = vpop.xlane.xlu0 %5562
        %v5564 = vsel %vm349, %v5526, 0.0
        %5565 = vadd.xlane.f32.xlu0 %v5564
        %v5566 = vpop.xlane.xlu0 %5565
        %v5567 = vsel %vm349, %v5528, 0.0
        %5568 = vadd.xlane.f32.xlu0 %v5567
        %v5569 = vpop.xlane.xlu0 %5568
        %v5570 = vsel %vm349, %v5530, 0.0
        %5571 = vadd.xlane.f32.xlu0 %v5570
        %v5572 = vpop.xlane.xlu0 %5571
        %v5573 = vsel %vm349, %v5532, 0.0
        %5574 = vadd.xlane.f32.xlu0 %v5573
        %v5575 = vpop.xlane.xlu0 %5574
        %v5576 = vsel %vm349, %v5534, 0.0
        %5577 = vadd.xlane.f32.xlu0 %v5576
        %v5578 = vpop.xlane.xlu0 %5577
        %v5579 = vsel %vm349, %v5536, 0.0
        %5580 = vadd.xlane.f32.xlu0 %v5579
        %v5581 = vpop.xlane.xlu0 %5580
        %v5582 = vsel %vm349, %v5538, 0.0
        %5583 = vadd.xlane.f32.xlu0 %v5582
        %v5584 = vpop.xlane.xlu0 %5583
        %v5585 = vsel %vm349, %v5540, 0.0
        %5586 = vadd.xlane.f32.xlu0 %v5585
        %v5587 = vpop.xlane.xlu0 %5586
        %v5588 = vsel %vm349, %v5542, 0.0
        %5589 = vadd.xlane.f32.xlu0 %v5588
        %v5590 = vpop.xlane.xlu0 %5589
        %v5591 = vlog2.pop %v5545
        %v5592 = vmul.f32 %v5591, 0.6931472
        %v5593 = vlog2.pop %v5548
        %v5594 = vmul.f32 %v5593, 0.6931472
        %v5595 = vlog2.pop %v5551
        %v5596 = vmul.f32 %v5595, 0.6931472
        %v5597 = vlog2.pop %v5554
        %v5598 = vmul.f32 %v5597, 0.6931472
        %v5599 = vlog2.pop %v5557
        %v5600 = vmul.f32 %v5599, 0.6931472
        %v5601 = vlog2.pop %v5560
        %v5602 = vmul.f32 %v5601, 0.6931472
        %v5603 = vlog2.pop %v5563
        %v5604 = vmul.f32 %v5603, 0.6931472
        %v5605 = vlog2.pop %v5566
        %v5606 = vmul.f32 %v5605, 0.6931472
        %v5607 = vlog2.pop %v5569
        %v5608 = vmul.f32 %v5607, 0.6931472
        %v5609 = vlog2.pop %v5572
        %v5610 = vmul.f32 %v5609, 0.6931472
        %v5611 = vlog2.pop %v5575
        %v5612 = vmul.f32 %v5611, 0.6931472
        %v5613 = vlog2.pop %v5578
        %v5614 = vmul.f32 %v5613, 0.6931472
        %v5615 = vlog2.pop %v5581
        %v5616 = vmul.f32 %v5615, 0.6931472
        %v5617 = vlog2.pop %v5584
        %v5618 = vmul.f32 %v5617, 0.6931472
        %v5619 = vlog2.pop %v5587
        %v5620 = vmul.f32 %v5619, 0.6931472
        %v5621 = vlog2.pop %v5590
        %v5622 = vmul.f32 %v5621, 0.6931472
        %v5623 = vadd.f32 %v5592, %v5449
        %v5624 = vadd.f32 %v5594, %v5452
        %v5625 = vadd.f32 %v5596, %v5455
        %v5626 = vadd.f32 %v5598, %v5458
        %v5627 = vadd.f32 %v5600, %v5461
        %v5628 = vadd.f32 %v5602, %v5464
        %v5629 = vadd.f32 %v5604, %v5467
        %v5630 = vadd.f32 %v5606, %v5470
        %v5631 = vadd.f32 %v5608, %v5473
        %v5632 = vadd.f32 %v5610, %v5476
        %v5633 = vadd.f32 %v5612, %v5479
        %v5634 = vadd.f32 %v5614, %v5482
        %v5635 = vadd.f32 %v5616, %v5485
        %v5636 = vadd.f32 %v5618, %v5488
        %v5637 = vadd.f32 %v5620, %v5491
        %v5638 = vadd.f32 %v5622, %v5494
        %v5639 = vsub.f32 %v5385, %v5623
        %v5640 = vsub.f32 %v5388, %v5624
        %v5641 = vsub.f32 %v5393, %v5625
        %v5642 = vsub.f32 %v5396, %v5626
        %v5643 = vsub.f32 %v5401, %v5627
        %v5644 = vsub.f32 %v5404, %v5628
        %v5645 = vsub.f32 %v5409, %v5629
        %v5646 = vsub.f32 %v5412, %v5630
        %v5647 = vsub.f32 %v5417, %v5631
        %v5648 = vsub.f32 %v5420, %v5632
        %v5649 = vsub.f32 %v5425, %v5633
        %v5650 = vsub.f32 %v5428, %v5634
        %v5651 = vsub.f32 %v5433, %v5635
        %v5652 = vsub.f32 %v5436, %v5636
        %v5653 = vsub.f32 %v5441, %v5637
        %v5654 = vsub.f32 %v5444, %v5638
        %5655 = vxpose.xlu0.b32.start [1/16] %v5639, 128
        %5656 = vxpose.xlu0.b32.cont [2/16] %v5640, 128
        %5657 = vxpose.xlu0.b32.cont [3/16] %v5641, 128
        %5658 = vxpose.xlu0.b32.cont [4/16] %v5642, 128
        %5659 = vxpose.xlu0.b32.cont [5/16] %v5643, 128
        %5660 = vxpose.xlu0.b32.cont [6/16] %v5644, 128
        %5661 = vxpose.xlu0.b32.cont [7/16] %v5645, 128
        %5662 = vxpose.xlu0.b32.cont [8/16] %v5646, 128
        %5663 = vxpose.xlu0.b32.cont [9/16] %v5647, 128
        %5664 = vxpose.xlu0.b32.cont [10/16] %v5648, 128
        %5665 = vxpose.xlu0.b32.cont [11/16] %v5649, 128
        %5666 = vxpose.xlu0.b32.cont [12/16] %v5650, 128
        %5667 = vxpose.xlu0.b32.cont [13/16] %v5651, 128
        %5668 = vxpose.xlu0.b32.cont [14/16] %v5652, 128
        %5669 = vxpose.xlu0.b32.cont [15/16] %v5653, 128
        %5670 = vxpose.xlu0.b32.end [16/16] %v5654, 128
        %v5671 = vpop.trf.xlu0
        %v5672 = vpop.trf.xlu0
        %v5673 = vpop.trf.xlu0
        %v5674 = vpop.trf.xlu0
        %v5675 = vpop.trf.xlu0
        %v5676 = vpop.trf.xlu0
        %v5677 = vpop.trf.xlu0
        %v5678 = vpop.trf.xlu0
        %v5679 = vpop.trf.xlu0
        %v5680 = vpop.trf.xlu0
        %v5681 = vpop.trf.xlu0
        %v5682 = vpop.trf.xlu0
        %v5683 = vpop.trf.xlu0
        %v5684 = vpop.trf.xlu0
        %v5685 = vpop.trf.xlu0
        %v5686 = vpop.trf.xlu0
        %5687 = vst [vmem:[%s299] sm:$0xf] %v5671
        %s5688 = sand.u32 %s203, 1
        %s5689 = scalar_lea.sflag [#allocation4], %s5688
        %s5690 = sand.u32 %s203, 1
        %s5691 = smul.addr %s5690, 4
        %s5692 = scalar_lea.vmem [#allocation3], %s5691
        // Predicated region
        $region53: #{tpu_custom_call.1} parent=51 // pred_check
          %p5693 = pneg %p213
        $region54: #{tpu_custom_call.1} parent=51 // pred_check_branch
          %5695 = sbr.rel (%p5693) target = $region56
        $region55: #{tpu_custom_call.1} parent=51 // pred_region
          %s5697 = ssub.s32 64, 64
          %5698 = vsyncadd %s5689, %s5697
          %s5699 = smul.addr %s22, 64
          %s5700 = scalar_lea.hbm %s8, %s5699
          %s5702 = sshll.u32 %s5692, 4
          %s5703 = int_to_ptr.vmem [resolvable:$true] %s5702
          %5705 = dma.vmem_to_hbm [thread:$0]  %s5703, 64, %s5700, %s5689
        $region56: #{tpu_custom_call.1} parent=51 // pred_fallthru
          _
      $region52: #{tpu_custom_call.1} parent=5 // pred_fallthru
        _
      %p5706 = scmp.le.s32.totalorder 2, %s17
      // Predicated region
      $region57: #{tpu_custom_call.1} parent=5 // pred_check
        %p5707 = pneg %p5706
      $region58: #{tpu_custom_call.1} parent=5 // pred_check_branch
        %5709 = sbr.rel (%p5707) target = $region60
      $region59: #{tpu_custom_call.1} parent=5 // pred_region
        %s5710 = ssub.s32 %s17, 2
        // Predicated region
        $region61: #{tpu_custom_call.1} parent=59 // pred_check
          %p5711 = pneg %p219
        $region62: #{tpu_custom_call.1} parent=59 // pred_check_branch
          %5713 = sbr.rel (%p5711) target = $region64
        $region63: #{tpu_custom_call.1} parent=59 // pred_region
          %s5714 = sand.u32 %s204, 1
          %s5715 = scalar_lea.sflag [#allocation4], %s5714
          %s5716 = sand.u32 %s204, 1
          %s5717 = smul.addr %s5716, 4
          %s5718 = scalar_lea.vmem [#allocation3], %s5717
          %5719 = dma.done %s5715, 64
        $region64: #{tpu_custom_call.1} parent=59 // pred_fallthru
          _
      $region60: #{tpu_custom_call.1} parent=5 // pred_fallthru
        _
    $region6: #{tpu_custom_call.1} parent=1 // loop_footer
      %s21 = sadd.s32 1, %s17
    $region7: #{tpu_custom_call.1} parent=1 // loop_footer_branch
      %16 = sbr.rel target = $region3
    $region8: #{tpu_custom_call.1} parent=1 // loop_exit
      _
    %5720 = vsyncpa [#allocation4], 1
    %s5721 = scalar_lea.sflag [#allocation4], 1
    %5722 = vsyncpa %s5721, 1

</llo_original>
